<compile_context>
chip_gen: v7x
topology: tpu7x:2x2x1
jax: 0.10.0
libtpu: 0.0.40
codegen_flags: <defaults>
</compile_context>

<pallas_src>
import functools
import math

import jax
import jax.numpy as jnp
from jax import lax
from jax.experimental import pallas as pl
from jax.experimental.pallas import tpu as pltpu

# ---- model hyper-parameters (small, consistent with the module) ----
EMBED = 32
HEADS = 4
HEAD_DIM = EMBED // HEADS
FWD_EXP = 4
HIDDEN = FWD_EXP * EMBED
EPS = 1e-5                       # torch.nn.LayerNorm default
NEG_INF = -1e20                  # python float (trace-safe)
INV_SQRT_D = 1.0 / math.sqrt(HEAD_DIM)
MASK_BIAS = NEG_INF * INV_SQRT_D  # additive bias == masked_fill(-1e20) then /sqrt(d)


# ---------------------------------------------------------------------------
# In-kernel helpers (operate on jnp values already loaded from VMEM refs)
# ---------------------------------------------------------------------------
def _layernorm(h, gamma, beta):
    mu = jnp.mean(h, axis=-1, keepdims=True)
    var = jnp.mean((h - mu) ** 2, axis=-1, keepdims=True)   # biased var (torch)
    return (h - mu) * lax.rsqrt(var + EPS) * gamma + beta


def _attn_core(q, k, v, biases, wo, bo, bb, lq, lk):
    """q:(bb*lq,E) scaled by 1/sqrt(d); k,v:(bb*lk,E); biases: bb (lq,lk) additive.

    Per-head (lq,d)x(lk,d) scores + softmax + attn@V, all kept in vregs; heads
    concatenated along lanes, batches along rows, then ONE fused wo projection."""
    dn = (((1,), (1,)), ((), ()))        # contract last dims: (lq,d)x(lk,d)->(lq,lk)
    rows = []
    for b in range(bb):
        bias_b = biases[b]
        qb = q[b * lq:(b + 1) * lq]
        kb = k[b * lk:(b + 1) * lk]
        vb = v[b * lk:(b + 1) * lk]
        heads = []
        for h in range(HEADS):
            sl = slice(h * HEAD_DIM, (h + 1) * HEAD_DIM)
            s = lax.dot_general(qb[:, sl], kb[:, sl], dn,
                                preferred_element_type=jnp.float32)
            s = s + bias_b                                  # precomputed mask bias
            s = s - jnp.max(s, axis=-1, keepdims=True)
            p = jnp.exp(s)
            attn = p * pl.reciprocal(jnp.sum(p, axis=-1, keepdims=True), approx=True)
            heads.append(jnp.dot(attn, vb[:, sl], preferred_element_type=jnp.float32))
        rows.append(jnp.concatenate(heads, axis=-1))        # (lq, E) in vregs
    o = rows[0] if bb == 1 else jnp.concatenate(rows, axis=0)   # (bb*lq, E)
    return jnp.dot(o, wo, preferred_element_type=jnp.float32) + bo


def _self_attention(x, biases, w_attn, bo, bb, lq):
    # q_in == k_in == v_in == x: one fused (bb*lq,32)@(32,96) projection.
    qkv = jnp.dot(x, w_attn[:, :3 * EMBED], preferred_element_type=jnp.float32)
    q = qkv[:, 0 * EMBED:1 * EMBED] * INV_SQRT_D
    k = qkv[:, 1 * EMBED:2 * EMBED]
    v = qkv[:, 2 * EMBED:3 * EMBED]
    return _attn_core(q, k, v, biases, w_attn[:, 3 * EMBED:], bo, bb, lq, lq)


def _cross_attention(q_in, k_in, v_in, biases, w_attn, bo, bb, lq, lk):
    q = jnp.dot(q_in, w_attn[:, 0 * EMBED:1 * EMBED],
                preferred_element_type=jnp.float32) * INV_SQRT_D
    k = jnp.dot(k_in, w_attn[:, 1 * EMBED:2 * EMBED],
                preferred_element_type=jnp.float32)
    v = jnp.dot(v_in, w_attn[:, 2 * EMBED:3 * EMBED],
                preferred_element_type=jnp.float32)
    return _attn_core(q, k, v, biases, w_attn[:, 3 * EMBED:], bo, bb, lq, lk)


# ---------------------------------------------------------------------------
# Kernel: one batch block per grid step; all weights resident in VMEM.
# ---------------------------------------------------------------------------
def decoder_block_kernel(slab_ref, bias_ref,
                         w_attn1_ref, w_attn2_ref,
                         w_ff1_ref, b_ff1_ref, w_ff2_ref, vecs_ref,
                         out_ref, *, bb, lq, lk):
    slab = slab_ref[...]                              # (bb, lq+2*lk, E) = [x|value|key]
    x = slab[:, :lq, :].reshape(bb * lq, EMBED)
    v_in = slab[:, lq:lq + lk, :].reshape(bb * lk, EMBED)
    k_in = slab[:, lq + lk:, :].reshape(bb * lk, EMBED)

    bias = bias_ref[...]                              # (bb, 2*lq, Lmax) additive biases
    trg_bias = [bias[b, :lq, :lq] for b in range(bb)]
    src_bias = [bias[b, lq:, :lk] for b in range(bb)]

    vecs = vecs_ref[...]                              # (9, E) packed bias/gamma/beta rows
    bo1, g0, b0 = vecs[0:1], vecs[1:2], vecs[2:3]
    bo2, g1, b1 = vecs[3:4], vecs[4:5], vecs[5:6]
    b2f, g2, b2 = vecs[6:7], vecs[7:8], vecs[8:9]

    # --- DecoderBlock: masked self-attention + residual LayerNorm (dropout=id) ---
    a1 = _self_attention(x, trg_bias, w_attn1_ref[...], bo1, bb, lq)
    query = _layernorm(a1 + x, g0, b0)

    # --- TransformerBlock: cross-attention(value, key, query) + residual norm ---
    a2 = _cross_attention(query, k_in, v_in, src_bias, w_attn2_ref[...], bo2,
                          bb, lq, lk)
    h = _layernorm(a2 + query, g1, b1)

    # --- feed-forward: Linear -> ReLU -> Linear + residual norm ---
    ff = jnp.dot(h, w_ff1_ref[...], preferred_element_type=jnp.float32) + b_ff1_ref[...]
    ff = jnp.maximum(ff, 0.0)
    ff = jnp.dot(ff, w_ff2_ref[...], preferred_element_type=jnp.float32) + b2f

    out_ref[...] = _layernorm(ff + h, g2, b2).reshape(bb, lq, EMBED)


# ---------------------------------------------------------------------------
# Wrapper
# ---------------------------------------------------------------------------
def _default_grid_steps(N):
    """1 grid step on single-TC chips (v5e/v6e) and tiny batches; 2 on v7x (2 TCs)
    only when each half-batch amortizes the per-step fixed cost."""
    try:
        kind = jax.devices()[0].device_kind.lower()
    except Exception:
        kind = ""
    two_tensorcores = ("v7" in kind) or ("tpu7" in kind) or ("7x" in kind)
    if two_tensorcores and N >= 8 and N % 2 == 0:
        return 2
    return 1


def decoder_block(x, value, key, src_mask, trg_mask, params, *, grid_steps=None):
    N, Lq, E = x.shape
    Lk = key.shape[1]
    assert E == EMBED
    if grid_steps is None:
        grid_steps = _default_grid_steps(N)
    assert N % grid_steps == 0
    bb = N // grid_steps

    # ---- pack parameters into a few lane-dense slabs (fewer, wider DMAs) ----
    w_attn1 = jnp.concatenate(
        [params["wq1"], params["wk1"], params["wv1"], params["wo1"]], axis=1)  # (32,128)
    w_attn2 = jnp.concatenate(
        [params["wq2"], params["wk2"], params["wv2"], params["wo2"]], axis=1)  # (32,128)
    vecs = jnp.concatenate(
        [params["bo1"], params["g0"], params["b0"],
         params["bo2"], params["g1"], params["b1"],
         params["b2f"], params["g2"], params["b2"]], axis=0)                   # (9,32)
    weights = [w_attn1, w_attn2, params["w1f"], params["b1f"], params["w2f"], vecs]

    # ---- precompute additive mask biases in the wrapper (no in-kernel compare) ----
    Lmax = max(Lq, Lk)
    trg_bias = jnp.where(trg_mask[:, 0] == 0, MASK_BIAS, 0.0).astype(jnp.float32)  # (N,Lq,Lq)
    src_bias = jnp.where(src_mask[:, 0] == 0, MASK_BIAS, 0.0).astype(jnp.float32)  # (N,Lq,Lk)

    def pad_last(a):
        pad = Lmax - a.shape[-1]
        return a if pad == 0 else jnp.pad(a, ((0, 0), (0, 0), (0, pad)))

    bias_slab = jnp.concatenate([pad_last(trg_bias), pad_last(src_bias)], axis=1)  # (N,2*Lq,Lmax)

    # ---- pack the per-batch tensors into one slab: [x | value | key] ----
    in_slab = jnp.concatenate([x, value, key], axis=1)                             # (N,Lq+2*Lk,E)

    def batch_spec(shape):
        nd = len(shape)
        return pl.BlockSpec((bb,) + tuple(shape[1:]),
                            lambda n, nd=nd: (n,) + (0,) * (nd - 1))

    def full_spec(shape):
        nd = len(shape)
        return pl.BlockSpec(tuple(shape), lambda n, nd=nd: (0,) * nd)

    in_specs = ([batch_spec(in_slab.shape), batch_spec(bias_slab.shape)]
                + [full_spec(w.shape) for w in weights])

    kernel = functools.partial(decoder_block_kernel, bb=bb, lq=Lq, lk=Lk)

    return pl.pallas_call(
        kernel,
        out_shape=jax.ShapeDtypeStruct((N, Lq, E), jnp.float32),
        grid_spec=pltpu.PrefetchScalarGridSpec(
            num_scalar_prefetch=0,
            grid=(grid_steps,),
            in_specs=in_specs,
            out_specs=batch_spec((N, Lq, E)),
            scratch_shapes=[]),
        compiler_params=pltpu.CompilerParams(
            dimension_semantics=("parallel",)),
    )(in_slab, bias_slab, *weights)


# ---------------------------------------------------------------------------
# Pure-JAX reference (mirrors the PyTorch forward) for a correctness check
# ---------------------------------------------------------------------------
def _ref_attention(values, keys, query, mask, wq, wk, wv, wo, bo):
    N, Lq, E = query.shape
    Lk = keys.shape[1]
    q = (query @ wq).reshape(N, Lq, HEADS, HEAD_DIM)
    k = (keys @ wk).reshape(N, Lk, HEADS, HEAD_DIM)
    v = (values @ wv).reshape(N, Lk, HEADS, HEAD_DIM)
    scores = jnp.einsum("nqhd,nkhd->nhqk", q, k)
    scores = jnp.where(mask == 0, NEG_INF, scores)
    attn = jax.nn.softmax(scores / math.sqrt(HEAD_DIM), axis=-1)
    out = jnp.einsum("nhqk,nkhd->nqhd", attn, v).reshape(N, Lq, E)
    return out @ wo + bo.reshape(E)


def _ref_layernorm(h, gamma, beta):
    mu = jnp.mean(h, axis=-1, keepdims=True)
    var = jnp.mean((h - mu) ** 2, axis=-1, keepdims=True)
    return (h - mu) * lax.rsqrt(var + EPS) * gamma.reshape(-1) + beta.reshape(-1)


def decoder_block_ref(x, value, key, src_mask, trg_mask, p):
    a1 = _ref_attention(x, x, x, trg_mask, p["wq1"], p["wk1"], p["wv1"], p["wo1"], p["bo1"])
    query = _ref_layernorm(a1 + x, p["g0"], p["b0"])
    a2 = _ref_attention(value, key, query, src_mask, p["wq2"], p["wk2"], p["wv2"], p["wo2"], p["bo2"])
    h = _ref_layernorm(a2 + query, p["g1"], p["b1"])
    ff = jnp.maximum(h @ p["w1f"] + p["b1f"].reshape(-1), 0.0) @ p["w2f"] + p["b2f"].reshape(-1)
    return _ref_layernorm(ff + h, p["g2"], p["b2"])


# ---------------------------------------------------------------------------
def init_params(rng):
    ks = jax.random.split(rng, 16)

    def w(k, shape, scale=0.05):
        return (scale * jax.random.normal(k, shape)).astype(jnp.float32)

    return {
        # DecoderBlock self-attention (no bias on q/k/v; bias on fc_out)
        "wq1": w(ks[0], (EMBED, EMBED)), "wk1": w(ks[1], (EMBED, EMBED)),
        "wv1": w(ks[2], (EMBED, EMBED)), "wo1": w(ks[3], (EMBED, EMBED)),
        "bo1": w(ks[4], (1, EMBED)),
        "g0": jnp.ones((1, EMBED), jnp.float32), "b0": jnp.zeros((1, EMBED), jnp.float32),
        # TransformerBlock cross-attention
        "wq2": w(ks[5], (EMBED, EMBED)), "wk2": w(ks[6], (EMBED, EMBED)),
        "wv2": w(ks[7], (EMBED, EMBED)), "wo2": w(ks[8], (EMBED, EMBED)),
        "bo2": w(ks[9], (1, EMBED)),
        "g1": jnp.ones((1, EMBED), jnp.float32), "b1": jnp.zeros((1, EMBED), jnp.float32),
        # feed-forward
        "w1f": w(ks[10], (EMBED, HIDDEN)), "b1f": w(ks[11], (1, HIDDEN)),
        "w2f": w(ks[12], (HIDDEN, EMBED)), "b2f": w(ks[13], (1, EMBED)),
        "g2": jnp.ones((1, EMBED), jnp.float32), "b2": jnp.zeros((1, EMBED), jnp.float32),
    }


if __name__ == "__main__":
    N, Lq, Lk = 2, 8, 8

    root = jax.random.PRNGKey(0)
    k_x, k_v, k_k, k_p = jax.random.split(root, 4)

    x = jax.random.normal(k_x, (N, Lq, EMBED), jnp.float32)
    value = jax.random.normal(k_v, (N, Lk, EMBED), jnp.float32)
    key = jax.random.normal(k_k, (N, Lk, EMBED), jnp.float32)

    # trg_mask: causal mask for the target self-attention; src_mask: all ones.
    trg_mask = jnp.tril(jnp.ones((Lq, Lq), jnp.float32))[None, None].repeat(N, 0)
    src_mask = jnp.ones((N, 1, Lq, Lk), jnp.float32)

    params = init_params(k_p)

    out = decoder_block(x, value, key, src_mask, trg_mask, params)
    out = jax.block_until_ready(out)

    ref = decoder_block_ref(x, value, key, src_mask, trg_mask, params)
    assert out.shape == (N, Lq, EMBED)
    assert jnp.allclose(out, ref, atol=1e-2, rtol=1e-2), float(jnp.max(jnp.abs(out - ref)))

    print("KERNEL_OK")
</pallas_src>

<mosaic_0001>
module attributes {stable_mosaic.version = 11 : i64} {
  func.func @decoder_block_kernel(%arg0: i32, %arg1: memref<2x24x32xf32, #tpu.memory_space<vmem>>, %arg2: memref<2x16x8xf32, #tpu.memory_space<vmem>>, %arg3: memref<32x128xf32, #tpu.memory_space<vmem>>, %arg4: memref<32x128xf32, #tpu.memory_space<vmem>>, %arg5: memref<32x128xf32, #tpu.memory_space<vmem>>, %arg6: memref<1x128xf32, #tpu.memory_space<vmem>>, %arg7: memref<128x32xf32, #tpu.memory_space<vmem>>, %arg8: memref<9x32xf32, #tpu.memory_space<vmem>>, %arg9: memref<2x8x32xf32, #tpu.memory_space<vmem>>) attributes {dimension_semantics = [#tpu.dimension_semantics<parallel>], iteration_bounds = array<i64: 1>, scalar_prefetch = 0 : i64, scratch_operands = 0 : i64, tpu.core_type = #tpu.core_type<tc>, window_params = [{transform_indices = @transform_0, window_bounds = array<i64: 2, 24, 32>}, {transform_indices = @transform_1, window_bounds = array<i64: 2, 16, 8>}, {pipeline_mode = #tpu.pipeline_mode<synchronous>, transform_indices = @transform_2, window_bounds = array<i64: 32, 128>}, {pipeline_mode = #tpu.pipeline_mode<synchronous>, transform_indices = @transform_3, window_bounds = array<i64: 32, 128>}, {pipeline_mode = #tpu.pipeline_mode<synchronous>, transform_indices = @transform_4, window_bounds = array<i64: 32, 128>}, {pipeline_mode = #tpu.pipeline_mode<synchronous>, transform_indices = @transform_5, window_bounds = array<i64: 1, 128>}, {pipeline_mode = #tpu.pipeline_mode<synchronous>, transform_indices = @transform_6, window_bounds = array<i64: 128, 32>}, {pipeline_mode = #tpu.pipeline_mode<synchronous>, transform_indices = @transform_7, window_bounds = array<i64: 9, 32>}, {transform_indices = @transform_8, window_bounds = array<i64: 2, 8, 32>}]} {
    %c0 = arith.constant 0 : index
    %c0_0 = arith.constant 0 : index
    %c0_1 = arith.constant 0 : index
    %0 = vector.load %arg1[%c0, %c0_0, %c0_1] : memref<2x24x32xf32, #tpu.memory_space<vmem>>, vector<2x24x32xf32>
    %1 = vector.extract_strided_slice %0 {offsets = [0, 0, 0], sizes = [2, 8, 32], strides = [1, 1, 1]} : vector<2x24x32xf32> to vector<2x8x32xf32>
    %2 = vector.shape_cast %1 : vector<2x8x32xf32> to vector<16x32xf32>
    %3 = vector.extract_strided_slice %0 {offsets = [0, 8, 0], sizes = [2, 8, 32], strides = [1, 1, 1]} : vector<2x24x32xf32> to vector<2x8x32xf32>
    %4 = vector.shape_cast %3 : vector<2x8x32xf32> to vector<16x32xf32>
    %5 = vector.extract_strided_slice %0 {offsets = [0, 16, 0], sizes = [2, 8, 32], strides = [1, 1, 1]} : vector<2x24x32xf32> to vector<2x8x32xf32>
    %6 = vector.shape_cast %5 : vector<2x8x32xf32> to vector<16x32xf32>
    %c0_2 = arith.constant 0 : index
    %c0_3 = arith.constant 0 : index
    %c0_4 = arith.constant 0 : index
    %7 = vector.load %arg2[%c0_2, %c0_3, %c0_4] : memref<2x16x8xf32, #tpu.memory_space<vmem>>, vector<2x16x8xf32>
    %8 = vector.extract_strided_slice %7 {offsets = [0, 0, 0], sizes = [1, 8, 8], strides = [1, 1, 1]} : vector<2x16x8xf32> to vector<1x8x8xf32>
    %9 = vector.shape_cast %8 : vector<1x8x8xf32> to vector<8x8xf32>
    %10 = vector.extract_strided_slice %7 {offsets = [1, 0, 0], sizes = [1, 8, 8], strides = [1, 1, 1]} : vector<2x16x8xf32> to vector<1x8x8xf32>
    %11 = vector.shape_cast %10 : vector<1x8x8xf32> to vector<8x8xf32>
    %12 = vector.extract_strided_slice %7 {offsets = [0, 8, 0], sizes = [1, 8, 8], strides = [1, 1, 1]} : vector<2x16x8xf32> to vector<1x8x8xf32>
    %13 = vector.shape_cast %12 : vector<1x8x8xf32> to vector<8x8xf32>
    %14 = vector.extract_strided_slice %7 {offsets = [1, 8, 0], sizes = [1, 8, 8], strides = [1, 1, 1]} : vector<2x16x8xf32> to vector<1x8x8xf32>
    %15 = vector.shape_cast %14 : vector<1x8x8xf32> to vector<8x8xf32>
    %c0_5 = arith.constant 0 : index
    %c0_6 = arith.constant 0 : index
    %16 = vector.load %arg8[%c0_5, %c0_6] : memref<9x32xf32, #tpu.memory_space<vmem>>, vector<9x32xf32>
    %17 = vector.extract_strided_slice %16 {offsets = [0, 0], sizes = [1, 32], strides = [1, 1]} : vector<9x32xf32> to vector<1x32xf32>
    %18 = vector.extract_strided_slice %16 {offsets = [1, 0], sizes = [1, 32], strides = [1, 1]} : vector<9x32xf32> to vector<1x32xf32>
    %19 = vector.extract_strided_slice %16 {offsets = [2, 0], sizes = [1, 32], strides = [1, 1]} : vector<9x32xf32> to vector<1x32xf32>
    %20 = vector.extract_strided_slice %16 {offsets = [3, 0], sizes = [1, 32], strides = [1, 1]} : vector<9x32xf32> to vector<1x32xf32>
    %21 = vector.extract_strided_slice %16 {offsets = [4, 0], sizes = [1, 32], strides = [1, 1]} : vector<9x32xf32> to vector<1x32xf32>
    %22 = vector.extract_strided_slice %16 {offsets = [5, 0], sizes = [1, 32], strides = [1, 1]} : vector<9x32xf32> to vector<1x32xf32>
    %23 = vector.extract_strided_slice %16 {offsets = [6, 0], sizes = [1, 32], strides = [1, 1]} : vector<9x32xf32> to vector<1x32xf32>
    %24 = vector.extract_strided_slice %16 {offsets = [7, 0], sizes = [1, 32], strides = [1, 1]} : vector<9x32xf32> to vector<1x32xf32>
    %25 = vector.extract_strided_slice %16 {offsets = [8, 0], sizes = [1, 32], strides = [1, 1]} : vector<9x32xf32> to vector<1x32xf32>
    %c0_7 = arith.constant 0 : index
    %c0_8 = arith.constant 0 : index
    %26 = vector.load %arg3[%c0_7, %c0_8] : memref<32x128xf32, #tpu.memory_space<vmem>>, vector<32x128xf32>
    %27 = vector.extract_strided_slice %26 {offsets = [0, 0], sizes = [32, 96], strides = [1, 1]} : vector<32x128xf32> to vector<32x96xf32>
    %cst = arith.constant dense<0.000000e+00> : vector<16x96xf32>
    %28 = tpu.matmul %2, %27, %cst {dimension_numbers = #tpu.dot_dimension_numbers<[1], [0], [0], [1], [0, 0, 1, 1], [], []>} : vector<16x32xf32>, vector<32x96xf32>, vector<16x96xf32> -> vector<16x96xf32>
    %29 = vector.extract_strided_slice %28 {offsets = [0, 0], sizes = [16, 32], strides = [1, 1]} : vector<16x96xf32> to vector<16x32xf32>
    %cst_9 = arith.constant 0.353553385 : f32
    %30 = vector.broadcast %cst_9 : f32 to vector<16x32xf32>
    %31 = arith.mulf %29, %30 : vector<16x32xf32>
    %32 = vector.extract_strided_slice %28 {offsets = [0, 32], sizes = [16, 32], strides = [1, 1]} : vector<16x96xf32> to vector<16x32xf32>
    %33 = vector.extract_strided_slice %28 {offsets = [0, 64], sizes = [16, 32], strides = [1, 1]} : vector<16x96xf32> to vector<16x32xf32>
    %34 = vector.extract_strided_slice %26 {offsets = [0, 96], sizes = [32, 32], strides = [1, 1]} : vector<32x128xf32> to vector<32x32xf32>
    %35 = vector.extract_strided_slice %31 {offsets = [0, 0], sizes = [8, 32], strides = [1, 1]} : vector<16x32xf32> to vector<8x32xf32>
    %36 = vector.extract_strided_slice %32 {offsets = [0, 0], sizes = [8, 32], strides = [1, 1]} : vector<16x32xf32> to vector<8x32xf32>
    %37 = vector.extract_strided_slice %33 {offsets = [0, 0], sizes = [8, 32], strides = [1, 1]} : vector<16x32xf32> to vector<8x32xf32>
    %38 = vector.extract_strided_slice %35 {offsets = [0, 0], sizes = [8, 8], strides = [1, 1]} : vector<8x32xf32> to vector<8x8xf32>
    %39 = vector.extract_strided_slice %36 {offsets = [0, 0], sizes = [8, 8], strides = [1, 1]} : vector<8x32xf32> to vector<8x8xf32>
    %cst_10 = arith.constant dense<0.000000e+00> : vector<8x8xf32>
    %40 = tpu.matmul %38, %39, %cst_10 {dimension_numbers = #tpu.dot_dimension_numbers<[1], [1], [0], [0], [0, 0, 1, 0], [], []>} : vector<8x8xf32>, vector<8x8xf32>, vector<8x8xf32> -> vector<8x8xf32>
    %41 = arith.addf %40, %9 : vector<8x8xf32>
    %cst_11 = arith.constant dense<0xFF800000> : vector<8xf32>
    %42 = vector.multi_reduction <maximumf>, %41, %cst_11 [1] : vector<8x8xf32> to vector<8xf32>
    %43 = vector.shape_cast %42 : vector<8xf32> to vector<8x1xf32>
    %44 = vector.broadcast %43 : vector<8x1xf32> to vector<8x8xf32>
    %45 = arith.subf %41, %44 : vector<8x8xf32>
    %46 = math.exp %45 : vector<8x8xf32>
    %cst_12 = arith.constant dense<0.000000e+00> : vector<8xf32>
    %47 = vector.multi_reduction <add>, %46, %cst_12 [1] : vector<8x8xf32> to vector<8xf32>
    %48 = vector.shape_cast %47 : vector<8xf32> to vector<8x1xf32>
    %49 = tpu.reciprocal %48 {approx = true} : vector<8x1xf32> -> vector<8x1xf32>
    %50 = vector.broadcast %49 : vector<8x1xf32> to vector<8x8xf32>
    %51 = arith.mulf %46, %50 : vector<8x8xf32>
    %52 = vector.extract_strided_slice %37 {offsets = [0, 0], sizes = [8, 8], strides = [1, 1]} : vector<8x32xf32> to vector<8x8xf32>
    %cst_13 = arith.constant dense<0.000000e+00> : vector<8x8xf32>
    %53 = tpu.matmul %51, %52, %cst_13 {dimension_numbers = #tpu.dot_dimension_numbers<[1], [0], [0], [1], [0, 0, 1, 1], [], []>} : vector<8x8xf32>, vector<8x8xf32>, vector<8x8xf32> -> vector<8x8xf32>
    %54 = vector.extract_strided_slice %35 {offsets = [0, 8], sizes = [8, 8], strides = [1, 1]} : vector<8x32xf32> to vector<8x8xf32>
    %55 = vector.extract_strided_slice %36 {offsets = [0, 8], sizes = [8, 8], strides = [1, 1]} : vector<8x32xf32> to vector<8x8xf32>
    %cst_14 = arith.constant dense<0.000000e+00> : vector<8x8xf32>
    %56 = tpu.matmul %54, %55, %cst_14 {dimension_numbers = #tpu.dot_dimension_numbers<[1], [1], [0], [0], [0, 0, 1, 0], [], []>} : vector<8x8xf32>, vector<8x8xf32>, vector<8x8xf32> -> vector<8x8xf32>
    %57 = arith.addf %56, %9 : vector<8x8xf32>
    %cst_15 = arith.constant dense<0xFF800000> : vector<8xf32>
    %58 = vector.multi_reduction <maximumf>, %57, %cst_15 [1] : vector<8x8xf32> to vector<8xf32>
    %59 = vector.shape_cast %58 : vector<8xf32> to vector<8x1xf32>
    %60 = vector.broadcast %59 : vector<8x1xf32> to vector<8x8xf32>
    %61 = arith.subf %57, %60 : vector<8x8xf32>
    %62 = math.exp %61 : vector<8x8xf32>
    %cst_16 = arith.constant dense<0.000000e+00> : vector<8xf32>
    %63 = vector.multi_reduction <add>, %62, %cst_16 [1] : vector<8x8xf32> to vector<8xf32>
    %64 = vector.shape_cast %63 : vector<8xf32> to vector<8x1xf32>
    %65 = tpu.reciprocal %64 {approx = true} : vector<8x1xf32> -> vector<8x1xf32>
    %66 = vector.broadcast %65 : vector<8x1xf32> to vector<8x8xf32>
    %67 = arith.mulf %62, %66 : vector<8x8xf32>
    %68 = vector.extract_strided_slice %37 {offsets = [0, 8], sizes = [8, 8], strides = [1, 1]} : vector<8x32xf32> to vector<8x8xf32>
    %cst_17 = arith.constant dense<0.000000e+00> : vector<8x8xf32>
    %69 = tpu.matmul %67, %68, %cst_17 {dimension_numbers = #tpu.dot_dimension_numbers<[1], [0], [0], [1], [0, 0, 1, 1], [], []>} : vector<8x8xf32>, vector<8x8xf32>, vector<8x8xf32> -> vector<8x8xf32>
    %70 = vector.extract_strided_slice %35 {offsets = [0, 16], sizes = [8, 8], strides = [1, 1]} : vector<8x32xf32> to vector<8x8xf32>
    %71 = vector.extract_strided_slice %36 {offsets = [0, 16], sizes = [8, 8], strides = [1, 1]} : vector<8x32xf32> to vector<8x8xf32>
    %cst_18 = arith.constant dense<0.000000e+00> : vector<8x8xf32>
    %72 = tpu.matmul %70, %71, %cst_18 {dimension_numbers = #tpu.dot_dimension_numbers<[1], [1], [0], [0], [0, 0, 1, 0], [], []>} : vector<8x8xf32>, vector<8x8xf32>, vector<8x8xf32> -> vector<8x8xf32>
    %73 = arith.addf %72, %9 : vector<8x8xf32>
    %cst_19 = arith.constant dense<0xFF800000> : vector<8xf32>
    %74 = vector.multi_reduction <maximumf>, %73, %cst_19 [1] : vector<8x8xf32> to vector<8xf32>
    %75 = vector.shape_cast %74 : vector<8xf32> to vector<8x1xf32>
    %76 = vector.broadcast %75 : vector<8x1xf32> to vector<8x8xf32>
    %77 = arith.subf %73, %76 : vector<8x8xf32>
    %78 = math.exp %77 : vector<8x8xf32>
    %cst_20 = arith.constant dense<0.000000e+00> : vector<8xf32>
    %79 = vector.multi_reduction <add>, %78, %cst_20 [1] : vector<8x8xf32> to vector<8xf32>
    %80 = vector.shape_cast %79 : vector<8xf32> to vector<8x1xf32>
    %81 = tpu.reciprocal %80 {approx = true} : vector<8x1xf32> -> vector<8x1xf32>
    %82 = vector.broadcast %81 : vector<8x1xf32> to vector<8x8xf32>
    %83 = arith.mulf %78, %82 : vector<8x8xf32>
    %84 = vector.extract_strided_slice %37 {offsets = [0, 16], sizes = [8, 8], strides = [1, 1]} : vector<8x32xf32> to vector<8x8xf32>
    %cst_21 = arith.constant dense<0.000000e+00> : vector<8x8xf32>
    %85 = tpu.matmul %83, %84, %cst_21 {dimension_numbers = #tpu.dot_dimension_numbers<[1], [0], [0], [1], [0, 0, 1, 1], [], []>} : vector<8x8xf32>, vector<8x8xf32>, vector<8x8xf32> -> vector<8x8xf32>
    %86 = vector.extract_strided_slice %35 {offsets = [0, 24], sizes = [8, 8], strides = [1, 1]} : vector<8x32xf32> to vector<8x8xf32>
    %87 = vector.extract_strided_slice %36 {offsets = [0, 24], sizes = [8, 8], strides = [1, 1]} : vector<8x32xf32> to vector<8x8xf32>
    %cst_22 = arith.constant dense<0.000000e+00> : vector<8x8xf32>
    %88 = tpu.matmul %86, %87, %cst_22 {dimension_numbers = #tpu.dot_dimension_numbers<[1], [1], [0], [0], [0, 0, 1, 0], [], []>} : vector<8x8xf32>, vector<8x8xf32>, vector<8x8xf32> -> vector<8x8xf32>
    %89 = arith.addf %88, %9 : vector<8x8xf32>
    %cst_23 = arith.constant dense<0xFF800000> : vector<8xf32>
    %90 = vector.multi_reduction <maximumf>, %89, %cst_23 [1] : vector<8x8xf32> to vector<8xf32>
    %91 = vector.shape_cast %90 : vector<8xf32> to vector<8x1xf32>
    %92 = vector.broadcast %91 : vector<8x1xf32> to vector<8x8xf32>
    %93 = arith.subf %89, %92 : vector<8x8xf32>
    %94 = math.exp %93 : vector<8x8xf32>
    %cst_24 = arith.constant dense<0.000000e+00> : vector<8xf32>
    %95 = vector.multi_reduction <add>, %94, %cst_24 [1] : vector<8x8xf32> to vector<8xf32>
    %96 = vector.shape_cast %95 : vector<8xf32> to vector<8x1xf32>
    %97 = tpu.reciprocal %96 {approx = true} : vector<8x1xf32> -> vector<8x1xf32>
    %98 = vector.broadcast %97 : vector<8x1xf32> to vector<8x8xf32>
    %99 = arith.mulf %94, %98 : vector<8x8xf32>
    %100 = vector.extract_strided_slice %37 {offsets = [0, 24], sizes = [8, 8], strides = [1, 1]} : vector<8x32xf32> to vector<8x8xf32>
    %cst_25 = arith.constant dense<0.000000e+00> : vector<8x8xf32>
    %101 = tpu.matmul %99, %100, %cst_25 {dimension_numbers = #tpu.dot_dimension_numbers<[1], [0], [0], [1], [0, 0, 1, 1], [], []>} : vector<8x8xf32>, vector<8x8xf32>, vector<8x8xf32> -> vector<8x8xf32>
    %102 = tpu.concatenate %53, %69, %85, %101 in 1 : vector<8x8xf32>, vector<8x8xf32>, vector<8x8xf32>, vector<8x8xf32> -> vector<8x32xf32>
    %103 = vector.extract_strided_slice %31 {offsets = [8, 0], sizes = [8, 32], strides = [1, 1]} : vector<16x32xf32> to vector<8x32xf32>
    %104 = vector.extract_strided_slice %32 {offsets = [8, 0], sizes = [8, 32], strides = [1, 1]} : vector<16x32xf32> to vector<8x32xf32>
    %105 = vector.extract_strided_slice %33 {offsets = [8, 0], sizes = [8, 32], strides = [1, 1]} : vector<16x32xf32> to vector<8x32xf32>
    %106 = vector.extract_strided_slice %103 {offsets = [0, 0], sizes = [8, 8], strides = [1, 1]} : vector<8x32xf32> to vector<8x8xf32>
    %107 = vector.extract_strided_slice %104 {offsets = [0, 0], sizes = [8, 8], strides = [1, 1]} : vector<8x32xf32> to vector<8x8xf32>
    %cst_26 = arith.constant dense<0.000000e+00> : vector<8x8xf32>
    %108 = tpu.matmul %106, %107, %cst_26 {dimension_numbers = #tpu.dot_dimension_numbers<[1], [1], [0], [0], [0, 0, 1, 0], [], []>} : vector<8x8xf32>, vector<8x8xf32>, vector<8x8xf32> -> vector<8x8xf32>
    %109 = arith.addf %108, %11 : vector<8x8xf32>
    %cst_27 = arith.constant dense<0xFF800000> : vector<8xf32>
    %110 = vector.multi_reduction <maximumf>, %109, %cst_27 [1] : vector<8x8xf32> to vector<8xf32>
    %111 = vector.shape_cast %110 : vector<8xf32> to vector<8x1xf32>
    %112 = vector.broadcast %111 : vector<8x1xf32> to vector<8x8xf32>
    %113 = arith.subf %109, %112 : vector<8x8xf32>
    %114 = math.exp %113 : vector<8x8xf32>
    %cst_28 = arith.constant dense<0.000000e+00> : vector<8xf32>
    %115 = vector.multi_reduction <add>, %114, %cst_28 [1] : vector<8x8xf32> to vector<8xf32>
    %116 = vector.shape_cast %115 : vector<8xf32> to vector<8x1xf32>
    %117 = tpu.reciprocal %116 {approx = true} : vector<8x1xf32> -> vector<8x1xf32>
    %118 = vector.broadcast %117 : vector<8x1xf32> to vector<8x8xf32>
    %119 = arith.mulf %114, %118 : vector<8x8xf32>
    %120 = vector.extract_strided_slice %105 {offsets = [0, 0], sizes = [8, 8], strides = [1, 1]} : vector<8x32xf32> to vector<8x8xf32>
    %cst_29 = arith.constant dense<0.000000e+00> : vector<8x8xf32>
    %121 = tpu.matmul %119, %120, %cst_29 {dimension_numbers = #tpu.dot_dimension_numbers<[1], [0], [0], [1], [0, 0, 1, 1], [], []>} : vector<8x8xf32>, vector<8x8xf32>, vector<8x8xf32> -> vector<8x8xf32>
    %122 = vector.extract_strided_slice %103 {offsets = [0, 8], sizes = [8, 8], strides = [1, 1]} : vector<8x32xf32> to vector<8x8xf32>
    %123 = vector.extract_strided_slice %104 {offsets = [0, 8], sizes = [8, 8], strides = [1, 1]} : vector<8x32xf32> to vector<8x8xf32>
    %cst_30 = arith.constant dense<0.000000e+00> : vector<8x8xf32>
    %124 = tpu.matmul %122, %123, %cst_30 {dimension_numbers = #tpu.dot_dimension_numbers<[1], [1], [0], [0], [0, 0, 1, 0], [], []>} : vector<8x8xf32>, vector<8x8xf32>, vector<8x8xf32> -> vector<8x8xf32>
    %125 = arith.addf %124, %11 : vector<8x8xf32>
    %cst_31 = arith.constant dense<0xFF800000> : vector<8xf32>
    %126 = vector.multi_reduction <maximumf>, %125, %cst_31 [1] : vector<8x8xf32> to vector<8xf32>
    %127 = vector.shape_cast %126 : vector<8xf32> to vector<8x1xf32>
    %128 = vector.broadcast %127 : vector<8x1xf32> to vector<8x8xf32>
    %129 = arith.subf %125, %128 : vector<8x8xf32>
    %130 = math.exp %129 : vector<8x8xf32>
    %cst_32 = arith.constant dense<0.000000e+00> : vector<8xf32>
    %131 = vector.multi_reduction <add>, %130, %cst_32 [1] : vector<8x8xf32> to vector<8xf32>
    %132 = vector.shape_cast %131 : vector<8xf32> to vector<8x1xf32>
    %133 = tpu.reciprocal %132 {approx = true} : vector<8x1xf32> -> vector<8x1xf32>
    %134 = vector.broadcast %133 : vector<8x1xf32> to vector<8x8xf32>
    %135 = arith.mulf %130, %134 : vector<8x8xf32>
    %136 = vector.extract_strided_slice %105 {offsets = [0, 8], sizes = [8, 8], strides = [1, 1]} : vector<8x32xf32> to vector<8x8xf32>
    %cst_33 = arith.constant dense<0.000000e+00> : vector<8x8xf32>
    %137 = tpu.matmul %135, %136, %cst_33 {dimension_numbers = #tpu.dot_dimension_numbers<[1], [0], [0], [1], [0, 0, 1, 1], [], []>} : vector<8x8xf32>, vector<8x8xf32>, vector<8x8xf32> -> vector<8x8xf32>
    %138 = vector.extract_strided_slice %103 {offsets = [0, 16], sizes = [8, 8], strides = [1, 1]} : vector<8x32xf32> to vector<8x8xf32>
    %139 = vector.extract_strided_slice %104 {offsets = [0, 16], sizes = [8, 8], strides = [1, 1]} : vector<8x32xf32> to vector<8x8xf32>
    %cst_34 = arith.constant dense<0.000000e+00> : vector<8x8xf32>
    %140 = tpu.matmul %138, %139, %cst_34 {dimension_numbers = #tpu.dot_dimension_numbers<[1], [1], [0], [0], [0, 0, 1, 0], [], []>} : vector<8x8xf32>, vector<8x8xf32>, vector<8x8xf32> -> vector<8x8xf32>
    %141 = arith.addf %140, %11 : vector<8x8xf32>
    %cst_35 = arith.constant dense<0xFF800000> : vector<8xf32>
    %142 = vector.multi_reduction <maximumf>, %141, %cst_35 [1] : vector<8x8xf32> to vector<8xf32>
    %143 = vector.shape_cast %142 : vector<8xf32> to vector<8x1xf32>
    %144 = vector.broadcast %143 : vector<8x1xf32> to vector<8x8xf32>
    %145 = arith.subf %141, %144 : vector<8x8xf32>
    %146 = math.exp %145 : vector<8x8xf32>
    %cst_36 = arith.constant dense<0.000000e+00> : vector<8xf32>
    %147 = vector.multi_reduction <add>, %146, %cst_36 [1] : vector<8x8xf32> to vector<8xf32>
    %148 = vector.shape_cast %147 : vector<8xf32> to vector<8x1xf32>
    %149 = tpu.reciprocal %148 {approx = true} : vector<8x1xf32> -> vector<8x1xf32>
    %150 = vector.broadcast %149 : vector<8x1xf32> to vector<8x8xf32>
    %151 = arith.mulf %146, %150 : vector<8x8xf32>
    %152 = vector.extract_strided_slice %105 {offsets = [0, 16], sizes = [8, 8], strides = [1, 1]} : vector<8x32xf32> to vector<8x8xf32>
    %cst_37 = arith.constant dense<0.000000e+00> : vector<8x8xf32>
    %153 = tpu.matmul %151, %152, %cst_37 {dimension_numbers = #tpu.dot_dimension_numbers<[1], [0], [0], [1], [0, 0, 1, 1], [], []>} : vector<8x8xf32>, vector<8x8xf32>, vector<8x8xf32> -> vector<8x8xf32>
    %154 = vector.extract_strided_slice %103 {offsets = [0, 24], sizes = [8, 8], strides = [1, 1]} : vector<8x32xf32> to vector<8x8xf32>
    %155 = vector.extract_strided_slice %104 {offsets = [0, 24], sizes = [8, 8], strides = [1, 1]} : vector<8x32xf32> to vector<8x8xf32>
    %cst_38 = arith.constant dense<0.000000e+00> : vector<8x8xf32>
    %156 = tpu.matmul %154, %155, %cst_38 {dimension_numbers = #tpu.dot_dimension_numbers<[1], [1], [0], [0], [0, 0, 1, 0], [], []>} : vector<8x8xf32>, vector<8x8xf32>, vector<8x8xf32> -> vector<8x8xf32>
    %157 = arith.addf %156, %11 : vector<8x8xf32>
    %cst_39 = arith.constant dense<0xFF800000> : vector<8xf32>
    %158 = vector.multi_reduction <maximumf>, %157, %cst_39 [1] : vector<8x8xf32> to vector<8xf32>
    %159 = vector.shape_cast %158 : vector<8xf32> to vector<8x1xf32>
    %160 = vector.broadcast %159 : vector<8x1xf32> to vector<8x8xf32>
    %161 = arith.subf %157, %160 : vector<8x8xf32>
    %162 = math.exp %161 : vector<8x8xf32>
    %cst_40 = arith.constant dense<0.000000e+00> : vector<8xf32>
    %163 = vector.multi_reduction <add>, %162, %cst_40 [1] : vector<8x8xf32> to vector<8xf32>
    %164 = vector.shape_cast %163 : vector<8xf32> to vector<8x1xf32>
    %165 = tpu.reciprocal %164 {approx = true} : vector<8x1xf32> -> vector<8x1xf32>
    %166 = vector.broadcast %165 : vector<8x1xf32> to vector<8x8xf32>
    %167 = arith.mulf %162, %166 : vector<8x8xf32>
    %168 = vector.extract_strided_slice %105 {offsets = [0, 24], sizes = [8, 8], strides = [1, 1]} : vector<8x32xf32> to vector<8x8xf32>
    %cst_41 = arith.constant dense<0.000000e+00> : vector<8x8xf32>
    %169 = tpu.matmul %167, %168, %cst_41 {dimension_numbers = #tpu.dot_dimension_numbers<[1], [0], [0], [1], [0, 0, 1, 1], [], []>} : vector<8x8xf32>, vector<8x8xf32>, vector<8x8xf32> -> vector<8x8xf32>
    %170 = tpu.concatenate %121, %137, %153, %169 in 1 : vector<8x8xf32>, vector<8x8xf32>, vector<8x8xf32>, vector<8x8xf32> -> vector<8x32xf32>
    %171 = tpu.concatenate %102, %170 in 0 : vector<8x32xf32>, vector<8x32xf32> -> vector<16x32xf32>
    %cst_42 = arith.constant dense<0.000000e+00> : vector<16x32xf32>
    %172 = tpu.matmul %171, %34, %cst_42 {dimension_numbers = #tpu.dot_dimension_numbers<[1], [0], [0], [1], [0, 0, 1, 1], [], []>} : vector<16x32xf32>, vector<32x32xf32>, vector<16x32xf32> -> vector<16x32xf32>
    %173 = vector.broadcast %17 : vector<1x32xf32> to vector<16x32xf32>
    %174 = arith.addf %172, %173 : vector<16x32xf32>
    %175 = arith.addf %174, %2 : vector<16x32xf32>
    %cst_43 = arith.constant dense<0.000000e+00> : vector<16xf32>
    %176 = vector.multi_reduction <add>, %175, %cst_43 [1] : vector<16x32xf32> to vector<16xf32>
    %177 = vector.shape_cast %176 : vector<16xf32> to vector<16x1xf32>
    %cst_44 = arith.constant 3.200000e+01 : f32
    %178 = vector.broadcast %cst_44 : f32 to vector<16x1xf32>
    %179 = arith.divf %177, %178 : vector<16x1xf32>
    %180 = vector.broadcast %179 : vector<16x1xf32> to vector<16x32xf32>
    %181 = arith.subf %175, %180 : vector<16x32xf32>
    %182 = arith.mulf %181, %181 : vector<16x32xf32>
    %cst_45 = arith.constant dense<0.000000e+00> : vector<16xf32>
    %183 = vector.multi_reduction <add>, %182, %cst_45 [1] : vector<16x32xf32> to vector<16xf32>
    %184 = vector.shape_cast %183 : vector<16xf32> to vector<16x1xf32>
    %cst_46 = arith.constant 3.200000e+01 : f32
    %185 = vector.broadcast %cst_46 : f32 to vector<16x1xf32>
    %186 = arith.divf %184, %185 : vector<16x1xf32>
    %187 = vector.broadcast %179 : vector<16x1xf32> to vector<16x32xf32>
    %188 = arith.subf %175, %187 : vector<16x32xf32>
    %cst_47 = arith.constant 9.99999974E-6 : f32
    %189 = vector.broadcast %cst_47 : f32 to vector<16x1xf32>
    %190 = arith.addf %186, %189 : vector<16x1xf32>
    %191 = math.rsqrt %190 : vector<16x1xf32>
    %192 = vector.broadcast %191 : vector<16x1xf32> to vector<16x32xf32>
    %193 = arith.mulf %188, %192 : vector<16x32xf32>
    %194 = vector.broadcast %18 : vector<1x32xf32> to vector<16x32xf32>
    %195 = arith.mulf %193, %194 : vector<16x32xf32>
    %196 = vector.broadcast %19 : vector<1x32xf32> to vector<16x32xf32>
    %197 = arith.addf %195, %196 : vector<16x32xf32>
    %c0_48 = arith.constant 0 : index
    %c0_49 = arith.constant 0 : index
    %198 = vector.load %arg4[%c0_48, %c0_49] : memref<32x128xf32, #tpu.memory_space<vmem>>, vector<32x128xf32>
    %199 = vector.extract_strided_slice %198 {offsets = [0, 0], sizes = [32, 32], strides = [1, 1]} : vector<32x128xf32> to vector<32x32xf32>
    %cst_50 = arith.constant dense<0.000000e+00> : vector<16x32xf32>
    %200 = tpu.matmul %197, %199, %cst_50 {dimension_numbers = #tpu.dot_dimension_numbers<[1], [0], [0], [1], [0, 0, 1, 1], [], []>} : vector<16x32xf32>, vector<32x32xf32>, vector<16x32xf32> -> vector<16x32xf32>
    %cst_51 = arith.constant 0.353553385 : f32
    %201 = vector.broadcast %cst_51 : f32 to vector<16x32xf32>
    %202 = arith.mulf %200, %201 : vector<16x32xf32>
    %203 = vector.extract_strided_slice %198 {offsets = [0, 32], sizes = [32, 32], strides = [1, 1]} : vector<32x128xf32> to vector<32x32xf32>
    %cst_52 = arith.constant dense<0.000000e+00> : vector<16x32xf32>
    %204 = tpu.matmul %6, %203, %cst_52 {dimension_numbers = #tpu.dot_dimension_numbers<[1], [0], [0], [1], [0, 0, 1, 1], [], []>} : vector<16x32xf32>, vector<32x32xf32>, vector<16x32xf32> -> vector<16x32xf32>
    %205 = vector.extract_strided_slice %198 {offsets = [0, 64], sizes = [32, 32], strides = [1, 1]} : vector<32x128xf32> to vector<32x32xf32>
    %cst_53 = arith.constant dense<0.000000e+00> : vector<16x32xf32>
    %206 = tpu.matmul %4, %205, %cst_53 {dimension_numbers = #tpu.dot_dimension_numbers<[1], [0], [0], [1], [0, 0, 1, 1], [], []>} : vector<16x32xf32>, vector<32x32xf32>, vector<16x32xf32> -> vector<16x32xf32>
    %207 = vector.extract_strided_slice %198 {offsets = [0, 96], sizes = [32, 32], strides = [1, 1]} : vector<32x128xf32> to vector<32x32xf32>
    %208 = vector.extract_strided_slice %202 {offsets = [0, 0], sizes = [8, 32], strides = [1, 1]} : vector<16x32xf32> to vector<8x32xf32>
    %209 = vector.extract_strided_slice %204 {offsets = [0, 0], sizes = [8, 32], strides = [1, 1]} : vector<16x32xf32> to vector<8x32xf32>
    %210 = vector.extract_strided_slice %206 {offsets = [0, 0], sizes = [8, 32], strides = [1, 1]} : vector<16x32xf32> to vector<8x32xf32>
    %211 = vector.extract_strided_slice %208 {offsets = [0, 0], sizes = [8, 8], strides = [1, 1]} : vector<8x32xf32> to vector<8x8xf32>
    %212 = vector.extract_strided_slice %209 {offsets = [0, 0], sizes = [8, 8], strides = [1, 1]} : vector<8x32xf32> to vector<8x8xf32>
    %cst_54 = arith.constant dense<0.000000e+00> : vector<8x8xf32>
    %213 = tpu.matmul %211, %212, %cst_54 {dimension_numbers = #tpu.dot_dimension_numbers<[1], [1], [0], [0], [0, 0, 1, 0], [], []>} : vector<8x8xf32>, vector<8x8xf32>, vector<8x8xf32> -> vector<8x8xf32>
    %214 = arith.addf %213, %13 : vector<8x8xf32>
    %cst_55 = arith.constant dense<0xFF800000> : vector<8xf32>
    %215 = vector.multi_reduction <maximumf>, %214, %cst_55 [1] : vector<8x8xf32> to vector<8xf32>
    %216 = vector.shape_cast %215 : vector<8xf32> to vector<8x1xf32>
    %217 = vector.broadcast %216 : vector<8x1xf32> to vector<8x8xf32>
    %218 = arith.subf %214, %217 : vector<8x8xf32>
    %219 = math.exp %218 : vector<8x8xf32>
    %cst_56 = arith.constant dense<0.000000e+00> : vector<8xf32>
    %220 = vector.multi_reduction <add>, %219, %cst_56 [1] : vector<8x8xf32> to vector<8xf32>
    %221 = vector.shape_cast %220 : vector<8xf32> to vector<8x1xf32>
    %222 = tpu.reciprocal %221 {approx = true} : vector<8x1xf32> -> vector<8x1xf32>
    %223 = vector.broadcast %222 : vector<8x1xf32> to vector<8x8xf32>
    %224 = arith.mulf %219, %223 : vector<8x8xf32>
    %225 = vector.extract_strided_slice %210 {offsets = [0, 0], sizes = [8, 8], strides = [1, 1]} : vector<8x32xf32> to vector<8x8xf32>
    %cst_57 = arith.constant dense<0.000000e+00> : vector<8x8xf32>
    %226 = tpu.matmul %224, %225, %cst_57 {dimension_numbers = #tpu.dot_dimension_numbers<[1], [0], [0], [1], [0, 0, 1, 1], [], []>} : vector<8x8xf32>, vector<8x8xf32>, vector<8x8xf32> -> vector<8x8xf32>
    %227 = vector.extract_strided_slice %208 {offsets = [0, 8], sizes = [8, 8], strides = [1, 1]} : vector<8x32xf32> to vector<8x8xf32>
    %228 = vector.extract_strided_slice %209 {offsets = [0, 8], sizes = [8, 8], strides = [1, 1]} : vector<8x32xf32> to vector<8x8xf32>
    %cst_58 = arith.constant dense<0.000000e+00> : vector<8x8xf32>
    %229 = tpu.matmul %227, %228, %cst_58 {dimension_numbers = #tpu.dot_dimension_numbers<[1], [1], [0], [0], [0, 0, 1, 0], [], []>} : vector<8x8xf32>, vector<8x8xf32>, vector<8x8xf32> -> vector<8x8xf32>
    %230 = arith.addf %229, %13 : vector<8x8xf32>
    %cst_59 = arith.constant dense<0xFF800000> : vector<8xf32>
    %231 = vector.multi_reduction <maximumf>, %230, %cst_59 [1] : vector<8x8xf32> to vector<8xf32>
    %232 = vector.shape_cast %231 : vector<8xf32> to vector<8x1xf32>
    %233 = vector.broadcast %232 : vector<8x1xf32> to vector<8x8xf32>
    %234 = arith.subf %230, %233 : vector<8x8xf32>
    %235 = math.exp %234 : vector<8x8xf32>
    %cst_60 = arith.constant dense<0.000000e+00> : vector<8xf32>
    %236 = vector.multi_reduction <add>, %235, %cst_60 [1] : vector<8x8xf32> to vector<8xf32>
    %237 = vector.shape_cast %236 : vector<8xf32> to vector<8x1xf32>
    %238 = tpu.reciprocal %237 {approx = true} : vector<8x1xf32> -> vector<8x1xf32>
    %239 = vector.broadcast %238 : vector<8x1xf32> to vector<8x8xf32>
    %240 = arith.mulf %235, %239 : vector<8x8xf32>
    %241 = vector.extract_strided_slice %210 {offsets = [0, 8], sizes = [8, 8], strides = [1, 1]} : vector<8x32xf32> to vector<8x8xf32>
    %cst_61 = arith.constant dense<0.000000e+00> : vector<8x8xf32>
    %242 = tpu.matmul %240, %241, %cst_61 {dimension_numbers = #tpu.dot_dimension_numbers<[1], [0], [0], [1], [0, 0, 1, 1], [], []>} : vector<8x8xf32>, vector<8x8xf32>, vector<8x8xf32> -> vector<8x8xf32>
    %243 = vector.extract_strided_slice %208 {offsets = [0, 16], sizes = [8, 8], strides = [1, 1]} : vector<8x32xf32> to vector<8x8xf32>
    %244 = vector.extract_strided_slice %209 {offsets = [0, 16], sizes = [8, 8], strides = [1, 1]} : vector<8x32xf32> to vector<8x8xf32>
    %cst_62 = arith.constant dense<0.000000e+00> : vector<8x8xf32>
    %245 = tpu.matmul %243, %244, %cst_62 {dimension_numbers = #tpu.dot_dimension_numbers<[1], [1], [0], [0], [0, 0, 1, 0], [], []>} : vector<8x8xf32>, vector<8x8xf32>, vector<8x8xf32> -> vector<8x8xf32>
    %246 = arith.addf %245, %13 : vector<8x8xf32>
    %cst_63 = arith.constant dense<0xFF800000> : vector<8xf32>
    %247 = vector.multi_reduction <maximumf>, %246, %cst_63 [1] : vector<8x8xf32> to vector<8xf32>
    %248 = vector.shape_cast %247 : vector<8xf32> to vector<8x1xf32>
    %249 = vector.broadcast %248 : vector<8x1xf32> to vector<8x8xf32>
    %250 = arith.subf %246, %249 : vector<8x8xf32>
    %251 = math.exp %250 : vector<8x8xf32>
    %cst_64 = arith.constant dense<0.000000e+00> : vector<8xf32>
    %252 = vector.multi_reduction <add>, %251, %cst_64 [1] : vector<8x8xf32> to vector<8xf32>
    %253 = vector.shape_cast %252 : vector<8xf32> to vector<8x1xf32>
    %254 = tpu.reciprocal %253 {approx = true} : vector<8x1xf32> -> vector<8x1xf32>
    %255 = vector.broadcast %254 : vector<8x1xf32> to vector<8x8xf32>
    %256 = arith.mulf %251, %255 : vector<8x8xf32>
    %257 = vector.extract_strided_slice %210 {offsets = [0, 16], sizes = [8, 8], strides = [1, 1]} : vector<8x32xf32> to vector<8x8xf32>
    %cst_65 = arith.constant dense<0.000000e+00> : vector<8x8xf32>
    %258 = tpu.matmul %256, %257, %cst_65 {dimension_numbers = #tpu.dot_dimension_numbers<[1], [0], [0], [1], [0, 0, 1, 1], [], []>} : vector<8x8xf32>, vector<8x8xf32>, vector<8x8xf32> -> vector<8x8xf32>
    %259 = vector.extract_strided_slice %208 {offsets = [0, 24], sizes = [8, 8], strides = [1, 1]} : vector<8x32xf32> to vector<8x8xf32>
    %260 = vector.extract_strided_slice %209 {offsets = [0, 24], sizes = [8, 8], strides = [1, 1]} : vector<8x32xf32> to vector<8x8xf32>
    %cst_66 = arith.constant dense<0.000000e+00> : vector<8x8xf32>
    %261 = tpu.matmul %259, %260, %cst_66 {dimension_numbers = #tpu.dot_dimension_numbers<[1], [1], [0], [0], [0, 0, 1, 0], [], []>} : vector<8x8xf32>, vector<8x8xf32>, vector<8x8xf32> -> vector<8x8xf32>
    %262 = arith.addf %261, %13 : vector<8x8xf32>
    %cst_67 = arith.constant dense<0xFF800000> : vector<8xf32>
    %263 = vector.multi_reduction <maximumf>, %262, %cst_67 [1] : vector<8x8xf32> to vector<8xf32>
    %264 = vector.shape_cast %263 : vector<8xf32> to vector<8x1xf32>
    %265 = vector.broadcast %264 : vector<8x1xf32> to vector<8x8xf32>
    %266 = arith.subf %262, %265 : vector<8x8xf32>
    %267 = math.exp %266 : vector<8x8xf32>
    %cst_68 = arith.constant dense<0.000000e+00> : vector<8xf32>
    %268 = vector.multi_reduction <add>, %267, %cst_68 [1] : vector<8x8xf32> to vector<8xf32>
    %269 = vector.shape_cast %268 : vector<8xf32> to vector<8x1xf32>
    %270 = tpu.reciprocal %269 {approx = true} : vector<8x1xf32> -> vector<8x1xf32>
    %271 = vector.broadcast %270 : vector<8x1xf32> to vector<8x8xf32>
    %272 = arith.mulf %267, %271 : vector<8x8xf32>
    %273 = vector.extract_strided_slice %210 {offsets = [0, 24], sizes = [8, 8], strides = [1, 1]} : vector<8x32xf32> to vector<8x8xf32>
    %cst_69 = arith.constant dense<0.000000e+00> : vector<8x8xf32>
    %274 = tpu.matmul %272, %273, %cst_69 {dimension_numbers = #tpu.dot_dimension_numbers<[1], [0], [0], [1], [0, 0, 1, 1], [], []>} : vector<8x8xf32>, vector<8x8xf32>, vector<8x8xf32> -> vector<8x8xf32>
    %275 = tpu.concatenate %226, %242, %258, %274 in 1 : vector<8x8xf32>, vector<8x8xf32>, vector<8x8xf32>, vector<8x8xf32> -> vector<8x32xf32>
    %276 = vector.extract_strided_slice %202 {offsets = [8, 0], sizes = [8, 32], strides = [1, 1]} : vector<16x32xf32> to vector<8x32xf32>
    %277 = vector.extract_strided_slice %204 {offsets = [8, 0], sizes = [8, 32], strides = [1, 1]} : vector<16x32xf32> to vector<8x32xf32>
    %278 = vector.extract_strided_slice %206 {offsets = [8, 0], sizes = [8, 32], strides = [1, 1]} : vector<16x32xf32> to vector<8x32xf32>
    %279 = vector.extract_strided_slice %276 {offsets = [0, 0], sizes = [8, 8], strides = [1, 1]} : vector<8x32xf32> to vector<8x8xf32>
    %280 = vector.extract_strided_slice %277 {offsets = [0, 0], sizes = [8, 8], strides = [1, 1]} : vector<8x32xf32> to vector<8x8xf32>
    %cst_70 = arith.constant dense<0.000000e+00> : vector<8x8xf32>
    %281 = tpu.matmul %279, %280, %cst_70 {dimension_numbers = #tpu.dot_dimension_numbers<[1], [1], [0], [0], [0, 0, 1, 0], [], []>} : vector<8x8xf32>, vector<8x8xf32>, vector<8x8xf32> -> vector<8x8xf32>
    %282 = arith.addf %281, %15 : vector<8x8xf32>
    %cst_71 = arith.constant dense<0xFF800000> : vector<8xf32>
    %283 = vector.multi_reduction <maximumf>, %282, %cst_71 [1] : vector<8x8xf32> to vector<8xf32>
    %284 = vector.shape_cast %283 : vector<8xf32> to vector<8x1xf32>
    %285 = vector.broadcast %284 : vector<8x1xf32> to vector<8x8xf32>
    %286 = arith.subf %282, %285 : vector<8x8xf32>
    %287 = math.exp %286 : vector<8x8xf32>
    %cst_72 = arith.constant dense<0.000000e+00> : vector<8xf32>
    %288 = vector.multi_reduction <add>, %287, %cst_72 [1] : vector<8x8xf32> to vector<8xf32>
    %289 = vector.shape_cast %288 : vector<8xf32> to vector<8x1xf32>
    %290 = tpu.reciprocal %289 {approx = true} : vector<8x1xf32> -> vector<8x1xf32>
    %291 = vector.broadcast %290 : vector<8x1xf32> to vector<8x8xf32>
    %292 = arith.mulf %287, %291 : vector<8x8xf32>
    %293 = vector.extract_strided_slice %278 {offsets = [0, 0], sizes = [8, 8], strides = [1, 1]} : vector<8x32xf32> to vector<8x8xf32>
    %cst_73 = arith.constant dense<0.000000e+00> : vector<8x8xf32>
    %294 = tpu.matmul %292, %293, %cst_73 {dimension_numbers = #tpu.dot_dimension_numbers<[1], [0], [0], [1], [0, 0, 1, 1], [], []>} : vector<8x8xf32>, vector<8x8xf32>, vector<8x8xf32> -> vector<8x8xf32>
    %295 = vector.extract_strided_slice %276 {offsets = [0, 8], sizes = [8, 8], strides = [1, 1]} : vector<8x32xf32> to vector<8x8xf32>
    %296 = vector.extract_strided_slice %277 {offsets = [0, 8], sizes = [8, 8], strides = [1, 1]} : vector<8x32xf32> to vector<8x8xf32>
    %cst_74 = arith.constant dense<0.000000e+00> : vector<8x8xf32>
    %297 = tpu.matmul %295, %296, %cst_74 {dimension_numbers = #tpu.dot_dimension_numbers<[1], [1], [0], [0], [0, 0, 1, 0], [], []>} : vector<8x8xf32>, vector<8x8xf32>, vector<8x8xf32> -> vector<8x8xf32>
    %298 = arith.addf %297, %15 : vector<8x8xf32>
    %cst_75 = arith.constant dense<0xFF800000> : vector<8xf32>
    %299 = vector.multi_reduction <maximumf>, %298, %cst_75 [1] : vector<8x8xf32> to vector<8xf32>
    %300 = vector.shape_cast %299 : vector<8xf32> to vector<8x1xf32>
    %301 = vector.broadcast %300 : vector<8x1xf32> to vector<8x8xf32>
    %302 = arith.subf %298, %301 : vector<8x8xf32>
    %303 = math.exp %302 : vector<8x8xf32>
    %cst_76 = arith.constant dense<0.000000e+00> : vector<8xf32>
    %304 = vector.multi_reduction <add>, %303, %cst_76 [1] : vector<8x8xf32> to vector<8xf32>
    %305 = vector.shape_cast %304 : vector<8xf32> to vector<8x1xf32>
    %306 = tpu.reciprocal %305 {approx = true} : vector<8x1xf32> -> vector<8x1xf32>
    %307 = vector.broadcast %306 : vector<8x1xf32> to vector<8x8xf32>
    %308 = arith.mulf %303, %307 : vector<8x8xf32>
    %309 = vector.extract_strided_slice %278 {offsets = [0, 8], sizes = [8, 8], strides = [1, 1]} : vector<8x32xf32> to vector<8x8xf32>
    %cst_77 = arith.constant dense<0.000000e+00> : vector<8x8xf32>
    %310 = tpu.matmul %308, %309, %cst_77 {dimension_numbers = #tpu.dot_dimension_numbers<[1], [0], [0], [1], [0, 0, 1, 1], [], []>} : vector<8x8xf32>, vector<8x8xf32>, vector<8x8xf32> -> vector<8x8xf32>
    %311 = vector.extract_strided_slice %276 {offsets = [0, 16], sizes = [8, 8], strides = [1, 1]} : vector<8x32xf32> to vector<8x8xf32>
    %312 = vector.extract_strided_slice %277 {offsets = [0, 16], sizes = [8, 8], strides = [1, 1]} : vector<8x32xf32> to vector<8x8xf32>
    %cst_78 = arith.constant dense<0.000000e+00> : vector<8x8xf32>
    %313 = tpu.matmul %311, %312, %cst_78 {dimension_numbers = #tpu.dot_dimension_numbers<[1], [1], [0], [0], [0, 0, 1, 0], [], []>} : vector<8x8xf32>, vector<8x8xf32>, vector<8x8xf32> -> vector<8x8xf32>
    %314 = arith.addf %313, %15 : vector<8x8xf32>
    %cst_79 = arith.constant dense<0xFF800000> : vector<8xf32>
    %315 = vector.multi_reduction <maximumf>, %314, %cst_79 [1] : vector<8x8xf32> to vector<8xf32>
    %316 = vector.shape_cast %315 : vector<8xf32> to vector<8x1xf32>
    %317 = vector.broadcast %316 : vector<8x1xf32> to vector<8x8xf32>
    %318 = arith.subf %314, %317 : vector<8x8xf32>
    %319 = math.exp %318 : vector<8x8xf32>
    %cst_80 = arith.constant dense<0.000000e+00> : vector<8xf32>
    %320 = vector.multi_reduction <add>, %319, %cst_80 [1] : vector<8x8xf32> to vector<8xf32>
    %321 = vector.shape_cast %320 : vector<8xf32> to vector<8x1xf32>
    %322 = tpu.reciprocal %321 {approx = true} : vector<8x1xf32> -> vector<8x1xf32>
    %323 = vector.broadcast %322 : vector<8x1xf32> to vector<8x8xf32>
    %324 = arith.mulf %319, %323 : vector<8x8xf32>
    %325 = vector.extract_strided_slice %278 {offsets = [0, 16], sizes = [8, 8], strides = [1, 1]} : vector<8x32xf32> to vector<8x8xf32>
    %cst_81 = arith.constant dense<0.000000e+00> : vector<8x8xf32>
    %326 = tpu.matmul %324, %325, %cst_81 {dimension_numbers = #tpu.dot_dimension_numbers<[1], [0], [0], [1], [0, 0, 1, 1], [], []>} : vector<8x8xf32>, vector<8x8xf32>, vector<8x8xf32> -> vector<8x8xf32>
    %327 = vector.extract_strided_slice %276 {offsets = [0, 24], sizes = [8, 8], strides = [1, 1]} : vector<8x32xf32> to vector<8x8xf32>
    %328 = vector.extract_strided_slice %277 {offsets = [0, 24], sizes = [8, 8], strides = [1, 1]} : vector<8x32xf32> to vector<8x8xf32>
    %cst_82 = arith.constant dense<0.000000e+00> : vector<8x8xf32>
    %329 = tpu.matmul %327, %328, %cst_82 {dimension_numbers = #tpu.dot_dimension_numbers<[1], [1], [0], [0], [0, 0, 1, 0], [], []>} : vector<8x8xf32>, vector<8x8xf32>, vector<8x8xf32> -> vector<8x8xf32>
    %330 = arith.addf %329, %15 : vector<8x8xf32>
    %cst_83 = arith.constant dense<0xFF800000> : vector<8xf32>
    %331 = vector.multi_reduction <maximumf>, %330, %cst_83 [1] : vector<8x8xf32> to vector<8xf32>
    %332 = vector.shape_cast %331 : vector<8xf32> to vector<8x1xf32>
    %333 = vector.broadcast %332 : vector<8x1xf32> to vector<8x8xf32>
    %334 = arith.subf %330, %333 : vector<8x8xf32>
    %335 = math.exp %334 : vector<8x8xf32>
    %cst_84 = arith.constant dense<0.000000e+00> : vector<8xf32>
    %336 = vector.multi_reduction <add>, %335, %cst_84 [1] : vector<8x8xf32> to vector<8xf32>
    %337 = vector.shape_cast %336 : vector<8xf32> to vector<8x1xf32>
    %338 = tpu.reciprocal %337 {approx = true} : vector<8x1xf32> -> vector<8x1xf32>
    %339 = vector.broadcast %338 : vector<8x1xf32> to vector<8x8xf32>
    %340 = arith.mulf %335, %339 : vector<8x8xf32>
    %341 = vector.extract_strided_slice %278 {offsets = [0, 24], sizes = [8, 8], strides = [1, 1]} : vector<8x32xf32> to vector<8x8xf32>
    %cst_85 = arith.constant dense<0.000000e+00> : vector<8x8xf32>
    %342 = tpu.matmul %340, %341, %cst_85 {dimension_numbers = #tpu.dot_dimension_numbers<[1], [0], [0], [1], [0, 0, 1, 1], [], []>} : vector<8x8xf32>, vector<8x8xf32>, vector<8x8xf32> -> vector<8x8xf32>
    %343 = tpu.concatenate %294, %310, %326, %342 in 1 : vector<8x8xf32>, vector<8x8xf32>, vector<8x8xf32>, vector<8x8xf32> -> vector<8x32xf32>
    %344 = tpu.concatenate %275, %343 in 0 : vector<8x32xf32>, vector<8x32xf32> -> vector<16x32xf32>
    %cst_86 = arith.constant dense<0.000000e+00> : vector<16x32xf32>
    %345 = tpu.matmul %344, %207, %cst_86 {dimension_numbers = #tpu.dot_dimension_numbers<[1], [0], [0], [1], [0, 0, 1, 1], [], []>} : vector<16x32xf32>, vector<32x32xf32>, vector<16x32xf32> -> vector<16x32xf32>
    %346 = vector.broadcast %20 : vector<1x32xf32> to vector<16x32xf32>
    %347 = arith.addf %345, %346 : vector<16x32xf32>
    %348 = arith.addf %347, %197 : vector<16x32xf32>
    %cst_87 = arith.constant dense<0.000000e+00> : vector<16xf32>
    %349 = vector.multi_reduction <add>, %348, %cst_87 [1] : vector<16x32xf32> to vector<16xf32>
    %350 = vector.shape_cast %349 : vector<16xf32> to vector<16x1xf32>
    %cst_88 = arith.constant 3.200000e+01 : f32
    %351 = vector.broadcast %cst_88 : f32 to vector<16x1xf32>
    %352 = arith.divf %350, %351 : vector<16x1xf32>
    %353 = vector.broadcast %352 : vector<16x1xf32> to vector<16x32xf32>
    %354 = arith.subf %348, %353 : vector<16x32xf32>
    %355 = arith.mulf %354, %354 : vector<16x32xf32>
    %cst_89 = arith.constant dense<0.000000e+00> : vector<16xf32>
    %356 = vector.multi_reduction <add>, %355, %cst_89 [1] : vector<16x32xf32> to vector<16xf32>
    %357 = vector.shape_cast %356 : vector<16xf32> to vector<16x1xf32>
    %cst_90 = arith.constant 3.200000e+01 : f32
    %358 = vector.broadcast %cst_90 : f32 to vector<16x1xf32>
    %359 = arith.divf %357, %358 : vector<16x1xf32>
    %360 = vector.broadcast %352 : vector<16x1xf32> to vector<16x32xf32>
    %361 = arith.subf %348, %360 : vector<16x32xf32>
    %cst_91 = arith.constant 9.99999974E-6 : f32
    %362 = vector.broadcast %cst_91 : f32 to vector<16x1xf32>
    %363 = arith.addf %359, %362 : vector<16x1xf32>
    %364 = math.rsqrt %363 : vector<16x1xf32>
    %365 = vector.broadcast %364 : vector<16x1xf32> to vector<16x32xf32>
    %366 = arith.mulf %361, %365 : vector<16x32xf32>
    %367 = vector.broadcast %21 : vector<1x32xf32> to vector<16x32xf32>
    %368 = arith.mulf %366, %367 : vector<16x32xf32>
    %369 = vector.broadcast %22 : vector<1x32xf32> to vector<16x32xf32>
    %370 = arith.addf %368, %369 : vector<16x32xf32>
    %c0_92 = arith.constant 0 : index
    %c0_93 = arith.constant 0 : index
    %371 = vector.load %arg5[%c0_92, %c0_93] : memref<32x128xf32, #tpu.memory_space<vmem>>, vector<32x128xf32>
    %cst_94 = arith.constant dense<0.000000e+00> : vector<16x128xf32>
    %372 = tpu.matmul %370, %371, %cst_94 {dimension_numbers = #tpu.dot_dimension_numbers<[1], [0], [0], [1], [0, 0, 1, 1], [], []>} : vector<16x32xf32>, vector<32x128xf32>, vector<16x128xf32> -> vector<16x128xf32>
    %c0_95 = arith.constant 0 : index
    %c0_96 = arith.constant 0 : index
    %373 = vector.load %arg6[%c0_95, %c0_96] : memref<1x128xf32, #tpu.memory_space<vmem>>, vector<1x128xf32>
    %374 = vector.broadcast %373 : vector<1x128xf32> to vector<16x128xf32>
    %375 = arith.addf %372, %374 : vector<16x128xf32>
    %cst_97 = arith.constant 0.000000e+00 : f32
    %376 = vector.broadcast %cst_97 : f32 to vector<16x128xf32>
    %377 = arith.maximumf %375, %376 : vector<16x128xf32>
    %c0_98 = arith.constant 0 : index
    %c0_99 = arith.constant 0 : index
    %378 = vector.load %arg7[%c0_98, %c0_99] : memref<128x32xf32, #tpu.memory_space<vmem>>, vector<128x32xf32>
    %cst_100 = arith.constant dense<0.000000e+00> : vector<16x32xf32>
    %379 = tpu.matmul %377, %378, %cst_100 {dimension_numbers = #tpu.dot_dimension_numbers<[1], [0], [0], [1], [0, 0, 1, 1], [], []>} : vector<16x128xf32>, vector<128x32xf32>, vector<16x32xf32> -> vector<16x32xf32>
    %380 = vector.broadcast %23 : vector<1x32xf32> to vector<16x32xf32>
    %381 = arith.addf %379, %380 : vector<16x32xf32>
    %382 = arith.addf %381, %370 : vector<16x32xf32>
    %cst_101 = arith.constant dense<0.000000e+00> : vector<16xf32>
    %383 = vector.multi_reduction <add>, %382, %cst_101 [1] : vector<16x32xf32> to vector<16xf32>
    %384 = vector.shape_cast %383 : vector<16xf32> to vector<16x1xf32>
    %cst_102 = arith.constant 3.200000e+01 : f32
    %385 = vector.broadcast %cst_102 : f32 to vector<16x1xf32>
    %386 = arith.divf %384, %385 : vector<16x1xf32>
    %387 = vector.broadcast %386 : vector<16x1xf32> to vector<16x32xf32>
    %388 = arith.subf %382, %387 : vector<16x32xf32>
    %389 = arith.mulf %388, %388 : vector<16x32xf32>
    %cst_103 = arith.constant dense<0.000000e+00> : vector<16xf32>
    %390 = vector.multi_reduction <add>, %389, %cst_103 [1] : vector<16x32xf32> to vector<16xf32>
    %391 = vector.shape_cast %390 : vector<16xf32> to vector<16x1xf32>
    %cst_104 = arith.constant 3.200000e+01 : f32
    %392 = vector.broadcast %cst_104 : f32 to vector<16x1xf32>
    %393 = arith.divf %391, %392 : vector<16x1xf32>
    %394 = vector.broadcast %386 : vector<16x1xf32> to vector<16x32xf32>
    %395 = arith.subf %382, %394 : vector<16x32xf32>
    %cst_105 = arith.constant 9.99999974E-6 : f32
    %396 = vector.broadcast %cst_105 : f32 to vector<16x1xf32>
    %397 = arith.addf %393, %396 : vector<16x1xf32>
    %398 = math.rsqrt %397 : vector<16x1xf32>
    %399 = vector.broadcast %398 : vector<16x1xf32> to vector<16x32xf32>
    %400 = arith.mulf %395, %399 : vector<16x32xf32>
    %401 = vector.broadcast %24 : vector<1x32xf32> to vector<16x32xf32>
    %402 = arith.mulf %400, %401 : vector<16x32xf32>
    %403 = vector.broadcast %25 : vector<1x32xf32> to vector<16x32xf32>
    %404 = arith.addf %402, %403 : vector<16x32xf32>
    %405 = vector.shape_cast %404 : vector<16x32xf32> to vector<2x8x32xf32>
    %c0_106 = arith.constant 0 : index
    %c0_107 = arith.constant 0 : index
    %c0_108 = arith.constant 0 : index
    %406 = vector.load %arg9[%c0_106, %c0_107, %c0_108] : memref<2x8x32xf32, #tpu.memory_space<vmem>>, vector<2x8x32xf32>
    tpu.vector_store %arg9[%c0_106, %c0_107, %c0_108], %405 {strides = array<i32>} : memref<2x8x32xf32, #tpu.memory_space<vmem>>, vector<2x8x32xf32>,
    return
  }
  func.func @transform_0(%arg0: i32) -> (i32, i32, i32) {
    %c0_i32 = arith.constant 0 : i32
    %c0_i32_0 = arith.constant 0 : i32
    %c0_i32_1 = arith.constant 0 : i32
    return %arg0, %c0_i32, %c0_i32_0 : i32, i32, i32
  }
  func.func @transform_1(%arg0: i32) -> (i32, i32, i32) {
    %c0_i32 = arith.constant 0 : i32
    %c0_i32_0 = arith.constant 0 : i32
    %c0_i32_1 = arith.constant 0 : i32
    return %arg0, %c0_i32, %c0_i32_0 : i32, i32, i32
  }
  func.func @transform_2(%arg0: i32) -> (i32, i32) {
    %c0_i32 = arith.constant 0 : i32
    %c0_i32_0 = arith.constant 0 : i32
    %c0_i32_1 = arith.constant 0 : i32
    return %c0_i32, %c0_i32_0 : i32, i32
  }
  func.func @transform_3(%arg0: i32) -> (i32, i32) {
    %c0_i32 = arith.constant 0 : i32
    %c0_i32_0 = arith.constant 0 : i32
    %c0_i32_1 = arith.constant 0 : i32
    return %c0_i32, %c0_i32_0 : i32, i32
  }
  func.func @transform_4(%arg0: i32) -> (i32, i32) {
    %c0_i32 = arith.constant 0 : i32
    %c0_i32_0 = arith.constant 0 : i32
    %c0_i32_1 = arith.constant 0 : i32
    return %c0_i32, %c0_i32_0 : i32, i32
  }
  func.func @transform_5(%arg0: i32) -> (i32, i32) {
    %c0_i32 = arith.constant 0 : i32
    %c0_i32_0 = arith.constant 0 : i32
    %c0_i32_1 = arith.constant 0 : i32
    return %c0_i32, %c0_i32_0 : i32, i32
  }
  func.func @transform_6(%arg0: i32) -> (i32, i32) {
    %c0_i32 = arith.constant 0 : i32
    %c0_i32_0 = arith.constant 0 : i32
    %c0_i32_1 = arith.constant 0 : i32
    return %c0_i32, %c0_i32_0 : i32, i32
  }
  func.func @transform_7(%arg0: i32) -> (i32, i32) {
    %c0_i32 = arith.constant 0 : i32
    %c0_i32_0 = arith.constant 0 : i32
    %c0_i32_1 = arith.constant 0 : i32
    return %c0_i32, %c0_i32_0 : i32, i32
  }
  func.func @transform_8(%arg0: i32) -> (i32, i32, i32) {
    %c0_i32 = arith.constant 0 : i32
    %c0_i32_0 = arith.constant 0 : i32
    %c0_i32_1 = arith.constant 0 : i32
    return %arg0, %c0_i32, %c0_i32_0 : i32, i32, i32
  }
}

</mosaic_0001>

<llo_original>
// kernel: tpu_custom_call.1
$region0: #{tpu_custom_call.1}
  #allocation0 [shape = 'u32[]', space=smem, size = 0x4, offset = 0x4, fixed_abs, tag = 'smem constant byte address 0x4 - core index']
  #allocation1 [shape = 'u32[144,128]{1,0:T(1,128)}', space=vmem, size = 0x12000, scoped, tag = 'internal scratch']
  %s0 = inlined_call_operand.vmem [shape: f32[2,24,32], index: 0, kind: input, shape index: {}]
  %s1 = inlined_call_operand.vmem [shape: f32[2,16,8], index: 1, kind: input, shape index: {}]
  %s2 = inlined_call_operand.vmem [shape: f32[32,128], index: 2, kind: input, shape index: {}]
  %s3 = inlined_call_operand.vmem [shape: f32[32,128], index: 3, kind: input, shape index: {}]
  %s4 = inlined_call_operand.vmem [shape: f32[32,128], index: 4, kind: input, shape index: {}]
  %s5 = inlined_call_operand.vmem [shape: f32[1,128], index: 5, kind: input, shape index: {}]
  %s6 = inlined_call_operand.vmem [shape: f32[128,32], index: 6, kind: input, shape index: {}]
  %s7 = inlined_call_operand.vmem [shape: f32[9,32], index: 7, kind: input, shape index: {}]
  %s8 = inlined_call_operand.hbm [shape: f32[2,8,32], index: 8, kind: output, shape index: {}]
  %s9 = sld [smem:[#allocation0]]
  $region42: #{tpu_custom_call.1} parent=0
    _
  %s11 = ssub.s32 1, %s9
  %s12 = scalar_select 0, %s11, %s9
  $region1: #{tpu_custom_call.1} parent=0
    #allocation2 [shape = 'u8[8192]{0}', space=vmem, size = 0x2000, scoped, tag = 'output window, operand 0, single buffered']
    #allocation3 [shape = 's32[1]{0}', space=sflag, size = 0x4, scoped, tag = 'scoped memory for tpu_custom_call.1']
    %13 = vsyncpa [#allocation3], 0
    // Predicated region
    $region2: #{tpu_custom_call.1} parent=1 // pred_check
      _
    $region3: #{tpu_custom_call.1} parent=1 // pred_check_branch
      %15 = sbr.rel (0) target = $region5
    $region4: #{tpu_custom_call.1} parent=1 // pred_region
      _
    $region5: #{tpu_custom_call.1} parent=1 // pred_fallthru
      _
    // Predicated region
    $region6: #{tpu_custom_call.1} parent=1 // pred_check
      _
    $region7: #{tpu_custom_call.1} parent=1 // pred_check_branch
      %17 = sbr.rel (0) target = $region9
    $region8: #{tpu_custom_call.1} parent=1 // pred_region
      _
    $region9: #{tpu_custom_call.1} parent=1 // pred_fallthru
      _
    // Predicated region
    $region10: #{tpu_custom_call.1} parent=1 // pred_check
      _
    $region11: #{tpu_custom_call.1} parent=1 // pred_check_branch
      %19 = sbr.rel (0) target = $region13
    $region12: #{tpu_custom_call.1} parent=1 // pred_region
      _
    $region13: #{tpu_custom_call.1} parent=1 // pred_fallthru
      _
    // Predicated region
    $region14: #{tpu_custom_call.1} parent=1 // pred_check
      _
    $region15: #{tpu_custom_call.1} parent=1 // pred_check_branch
      %21 = sbr.rel (0) target = $region17
    $region16: #{tpu_custom_call.1} parent=1 // pred_region
      _
    $region17: #{tpu_custom_call.1} parent=1 // pred_fallthru
      _
    // Predicated region
    $region18: #{tpu_custom_call.1} parent=1 // pred_check
      _
    $region19: #{tpu_custom_call.1} parent=1 // pred_check_branch
      %23 = sbr.rel (0) target = $region21
    $region20: #{tpu_custom_call.1} parent=1 // pred_region
      _
    $region21: #{tpu_custom_call.1} parent=1 // pred_fallthru
      _
    // Predicated region
    $region22: #{tpu_custom_call.1} parent=1 // pred_check
      _
    $region23: #{tpu_custom_call.1} parent=1 // pred_check_branch
      %25 = sbr.rel (0) target = $region25
    $region24: #{tpu_custom_call.1} parent=1 // pred_region
      _
    $region25: #{tpu_custom_call.1} parent=1 // pred_fallthru
      _
    // Predicated region
    $region26: #{tpu_custom_call.1} parent=1 // pred_check
      _
    $region27: #{tpu_custom_call.1} parent=1 // pred_check_branch
      %27 = sbr.rel (0) target = $region29
    $region28: #{tpu_custom_call.1} parent=1 // pred_region
      _
    $region29: #{tpu_custom_call.1} parent=1 // pred_fallthru
      _
    // Predicated region
    $region30: #{tpu_custom_call.1} parent=1 // pred_check
      _
    $region31: #{tpu_custom_call.1} parent=1 // pred_check_branch
      %29 = sbr.rel (0) target = $region33
    $region32: #{tpu_custom_call.1} parent=1 // pred_region
      _
    $region33: #{tpu_custom_call.1} parent=1 // pred_fallthru
      _
    %v30 = vld [vmem:[%s0] sm:$0xff]
    %v31 = vld [vmem:[%s0 + $0x8] sm:$0xff]
    %v32 = vld [vmem:[%s0 + $0x10] sm:$0xff]
    %v33 = vld [vmem:[%s0 + $0x18] sm:$0xff]
    %v34 = vld [vmem:[%s0 + $0x20] sm:$0xff]
    %v35 = vld [vmem:[%s0 + $0x28] sm:$0xff]
    %v36 = vld [vmem:[%s1] sm:$0xff]
    %v37 = vld [vmem:[%s1 + $0x8] sm:$0xff]
    %v38 = vld [vmem:[%s1 + $0x10] sm:$0xff]
    %v39 = vld [vmem:[%s1 + $0x18] sm:$0xff]
    %v40 = vld [vmem:[%s7] sm:$0xff]
    %v41 = vld [vmem:[%s7 + $0x8] sm:$0x1]
    %v42 = vld [vmem:[%s2] sm:$0xff]
    %v43 = vld [vmem:[%s2 + $0x8] sm:$0xff]
    %v44 = vld [vmem:[%s2 + $0x10] sm:$0xff]
    %v45 = vld [vmem:[%s2 + $0x18] sm:$0xff]
    %vm46 = vcmask 261120
    %v48 = vsel %vm46, %v30, 0
    %v51 = vsel %vm46, %v33, 0
    %53 = vmatprep.subr.mxu0 0.0
    %54 = vmatpush1.msra.mxu0 %v42
    %55 = vmatprep.subr.mxu0 0.0
    %56 = vmatpush1.msra.mxu0 %v43
    %57 = vmatprep.subr.mxu0 0.0
    %58 = vmatpush1.msra.mxu0 %v44
    %59 = vmatprep.subr.mxu0 0.0
    %60 = vmatpush1.msra.mxu0 %v45
    %61 = vmatprep.subr.mxu0 0.0
    %62 = vmatpush1.msra.mxu0 0.0
    %63 = vmatprep.subr.mxu0 0.0
    %64 = vmatpush1.msra.mxu0 0.0
    %65 = vmatprep.subr.mxu0 0.0
    %66 = vmatpush1.msra.mxu0 0.0
    %67 = vmatprep.subr.mxu0 0.0
    %68 = vmatpush1.msra.mxu0 0.0
    %69 = vmatprep.subr.mxu0 0.0
    %70 = vmatpush1.msra.mxu0 0.0
    %71 = vmatprep.subr.mxu0 0.0
    %72 = vmatpush1.msra.mxu0 0.0
    %73 = vmatprep.subr.mxu0 0.0
    %74 = vmatpush1.msra.mxu0 0.0
    %75 = vmatprep.subr.mxu0 0.0
    %76 = vmatpush1.msra.mxu0 0.0
    %77 = vmatprep.subr.mxu0 0.0
    %78 = vmatpush1.msra.mxu0 0.0
    %79 = vmatprep.subr.mxu0 0.0
    %80 = vmatpush1.msra.mxu0 0.0
    %81 = vmatprep.subr.mxu0 0.0
    %82 = vmatpush1.msra.mxu0 0.0
    %83 = vmatprep.subr.mxu0 0.0
    %84 = vmatpush1.msra.mxu0 0.0
    %85 = vmatprep.subr.mxu0 0.0
    %86 = vmatpush1.msra.mxu0 0.0
    %87 = vmatprep.subr.mxu0 0.0
    %88 = vmatpush1.msra.mxu0 0.0
    %89 = vmatprep.subr.mxu0 0.0
    %90 = vmatpush1.msra.mxu0 0.0
    %91 = vmatprep.subr.mxu0 0.0
    %92 = vmatpush1.msra.mxu0 0.0
    %93 = vmatprep.subr.mxu0 0.0
    %94 = vmatpush1.msra.mxu0 0.0
    %95 = vmatprep.subr.mxu0 0.0
    %96 = vmatpush1.msra.mxu0 0.0
    %97 = vmatprep.subr.mxu0 0.0
    %98 = vmatpush1.msra.mxu0 0.0
    %99 = vmatprep.subr.mxu0 0.0
    %100 = vmatpush1.msra.mxu0 0.0
    %101 = vmatprep.subr.mxu0 0.0
    %102 = vmatpush1.msra.mxu0 0.0
    %103 = vmatprep.subr.mxu0 0.0
    %104 = vmatpush1.msra.mxu0 0.0
    %105 = vmatprep.subr.mxu0 0.0
    %106 = vmatpush1.msra.mxu0 0.0
    %107 = vmatprep.subr.mxu0 0.0
    %108 = vmatpush1.msra.mxu0 0.0
    %109 = vmatprep.subr.mxu0 0.0
    %110 = vmatpush1.msra.mxu0 0.0
    %111 = vmatprep.subr.mxu0 0.0
    %112 = vmatpush1.msra.mxu0 0.0
    %113 = vmatprep.subr.mxu0 0.0
    %114 = vmatpush1.msra.mxu0 0.0
    %115 = vmatprep.subr.mxu0 0.0
    %116 = vmatpush1.msra.mxu0 0.0
    %117 = vmatprep.mubr.f32.mxu0 0.0
    %118 = vmatmul.mubr.f32.gmra.mrb[0].mxu0 %v48
    %v119 = vpop.f32.mrb[0].mxu0
    %v120 = vadd.f32 0.0, %v119
    %v121 = vpop.f32.mrb[0].mxu0
    %122 = vmatprep.mubr.f32.mxu0 0.0
    %123 = vmatmul.mubr.f32.gmra.mrb[0].mxu0 %v51
    %v124 = vpop.f32.mrb[0].mxu0
    %v125 = vadd.f32 0.0, %v124
    %v126 = vpop.f32.mrb[0].mxu0
    %127 = vdwg.mxu0
    %v128 = vmul.f32 %v120, 0.35355338
    %v129 = vmul.f32 %v125, 0.35355338
    %131 = vrot.lane.b32.xlu0 %v120, 96
    %v132 = vpop.permute.xlu0 %131
    %vm133 = vcmask 64512
    %v135 = vsel %vm133, %v128, 0
    %v137 = vsel %vm133, %v132, 0
    %139 = vmatprep.subr.mxu0 0.0
    %140 = vmatpush1.xpose.msra.mxu0 %v137
    %141 = vmatprep.subr.mxu0 0.0
    %142 = vmatpush1.xpose.msra.mxu0 0.0
    %143 = vmatprep.subr.mxu0 0.0
    %144 = vmatpush1.xpose.msra.mxu0 0.0
    %145 = vmatprep.subr.mxu0 0.0
    %146 = vmatpush1.xpose.msra.mxu0 0.0
    %147 = vmatprep.subr.mxu0 0.0
    %148 = vmatpush1.xpose.msra.mxu0 0.0
    %149 = vmatprep.subr.mxu0 0.0
    %150 = vmatpush1.xpose.msra.mxu0 0.0
    %151 = vmatprep.subr.mxu0 0.0
    %152 = vmatpush1.xpose.msra.mxu0 0.0
    %153 = vmatprep.subr.mxu0 0.0
    %154 = vmatpush1.xpose.msra.mxu0 0.0
    %155 = vmatprep.subr.mxu0 0.0
    %156 = vmatpush1.xpose.msra.mxu0 0.0
    %157 = vmatprep.subr.mxu0 0.0
    %158 = vmatpush1.xpose.msra.mxu0 0.0
    %159 = vmatprep.subr.mxu0 0.0
    %160 = vmatpush1.xpose.msra.mxu0 0.0
    %161 = vmatprep.subr.mxu0 0.0
    %162 = vmatpush1.xpose.msra.mxu0 0.0
    %163 = vmatprep.subr.mxu0 0.0
    %164 = vmatpush1.xpose.msra.mxu0 0.0
    %165 = vmatprep.subr.mxu0 0.0
    %166 = vmatpush1.xpose.msra.mxu0 0.0
    %167 = vmatprep.subr.mxu0 0.0
    %168 = vmatpush1.xpose.msra.mxu0 0.0
    %169 = vmatprep.subr.mxu0 0.0
    %170 = vmatpush1.xpose.msra.mxu0 0.0
    %171 = vmatprep.subr.mxu0 0.0
    %172 = vmatpush1.xpose.msra.mxu0 0.0
    %173 = vmatprep.subr.mxu0 0.0
    %174 = vmatpush1.xpose.msra.mxu0 0.0
    %175 = vmatprep.subr.mxu0 0.0
    %176 = vmatpush1.xpose.msra.mxu0 0.0
    %177 = vmatprep.subr.mxu0 0.0
    %178 = vmatpush1.xpose.msra.mxu0 0.0
    %179 = vmatprep.subr.mxu0 0.0
    %180 = vmatpush1.xpose.msra.mxu0 0.0
    %181 = vmatprep.subr.mxu0 0.0
    %182 = vmatpush1.xpose.msra.mxu0 0.0
    %183 = vmatprep.subr.mxu0 0.0
    %184 = vmatpush1.xpose.msra.mxu0 0.0
    %185 = vmatprep.subr.mxu0 0.0
    %186 = vmatpush1.xpose.msra.mxu0 0.0
    %187 = vmatprep.subr.mxu0 0.0
    %188 = vmatpush1.xpose.msra.mxu0 0.0
    %189 = vmatprep.subr.mxu0 0.0
    %190 = vmatpush1.xpose.msra.mxu0 0.0
    %191 = vmatprep.subr.mxu0 0.0
    %192 = vmatpush1.xpose.msra.mxu0 0.0
    %193 = vmatprep.subr.mxu0 0.0
    %194 = vmatpush1.xpose.msra.mxu0 0.0
    %195 = vmatprep.subr.mxu0 0.0
    %196 = vmatpush1.xpose.msra.mxu0 0.0
    %197 = vmatprep.subr.mxu0 0.0
    %198 = vmatpush1.xpose.msra.mxu0 0.0
    %199 = vmatprep.subr.mxu0 0.0
    %200 = vmatpush1.xpose.msra.mxu0 0.0
    %201 = vmatprep.subr.mxu0 0.0
    %202 = vmatpush1.xpose.msra.mxu0 0.0
    %203 = vmatprep.mubr.f32.mxu0 0.0
    %204 = vmatmul.mubr.f32.gmra.mrb[0].mxu0 %v135
    %v205 = vpop.f32.mrb[0].mxu0
    %v206 = vadd.f32 %v36, %v205
    %v207 = vpop.f32.mrb[0].mxu0
    %208 = vdwg.mxu0
    %v209 = vsel %vm133, %v206, -inf
    %210 = vmax.xlane.f32.xlu0 %v209
    %v211 = vpop.xlane.xlu0 %210
    %v212 = vsub.f32 %v206, %v211
    %v213 = vmul.f32 %v212, 1.442695
    %v214 = vpow.pop %v213
    %v215 = vsel %vm133, %v214, 0.0
    %216 = vadd.xlane.f32.xlu0 %v215
    %v217 = vpop.xlane.xlu0 %216
    %v218 = vrcp.pop %v217
    %v219 = vmul.f32 %v214, %v218
    %220 = vrot.lane.b32.xlu0 %v120, 64
    %v221 = vpop.permute.xlu0 %220
    %v224 = vsel %vm133, %v219, 0
    %226 = vmatprep.subr.mxu0 0.0
    %227 = vmatpush1.msra.mxu0 %v221
    %228 = vmatprep.subr.mxu0 0.0
    %229 = vmatpush1.msra.mxu0 0.0
    %230 = vmatprep.subr.mxu0 0.0
    %231 = vmatpush1.msra.mxu0 0.0
    %232 = vmatprep.subr.mxu0 0.0
    %233 = vmatpush1.msra.mxu0 0.0
    %234 = vmatprep.subr.mxu0 0.0
    %235 = vmatpush1.msra.mxu0 0.0
    %236 = vmatprep.subr.mxu0 0.0
    %237 = vmatpush1.msra.mxu0 0.0
    %238 = vmatprep.subr.mxu0 0.0
    %239 = vmatpush1.msra.mxu0 0.0
    %240 = vmatprep.subr.mxu0 0.0
    %241 = vmatpush1.msra.mxu0 0.0
    %242 = vmatprep.subr.mxu0 0.0
    %243 = vmatpush1.msra.mxu0 0.0
    %244 = vmatprep.subr.mxu0 0.0
    %245 = vmatpush1.msra.mxu0 0.0
    %246 = vmatprep.subr.mxu0 0.0
    %247 = vmatpush1.msra.mxu0 0.0
    %248 = vmatprep.subr.mxu0 0.0
    %249 = vmatpush1.msra.mxu0 0.0
    %250 = vmatprep.subr.mxu0 0.0
    %251 = vmatpush1.msra.mxu0 0.0
    %252 = vmatprep.subr.mxu0 0.0
    %253 = vmatpush1.msra.mxu0 0.0
    %254 = vmatprep.subr.mxu0 0.0
    %255 = vmatpush1.msra.mxu0 0.0
    %256 = vmatprep.subr.mxu0 0.0
    %257 = vmatpush1.msra.mxu0 0.0
    %258 = vmatprep.subr.mxu0 0.0
    %259 = vmatpush1.msra.mxu0 0.0
    %260 = vmatprep.subr.mxu0 0.0
    %261 = vmatpush1.msra.mxu0 0.0
    %262 = vmatprep.subr.mxu0 0.0
    %263 = vmatpush1.msra.mxu0 0.0
    %264 = vmatprep.subr.mxu0 0.0
    %265 = vmatpush1.msra.mxu0 0.0
    %266 = vmatprep.subr.mxu0 0.0
    %267 = vmatpush1.msra.mxu0 0.0
    %268 = vmatprep.subr.mxu0 0.0
    %269 = vmatpush1.msra.mxu0 0.0
    %270 = vmatprep.subr.mxu0 0.0
    %271 = vmatpush1.msra.mxu0 0.0
    %272 = vmatprep.subr.mxu0 0.0
    %273 = vmatpush1.msra.mxu0 0.0
    %274 = vmatprep.subr.mxu0 0.0
    %275 = vmatpush1.msra.mxu0 0.0
    %276 = vmatprep.subr.mxu0 0.0
    %277 = vmatpush1.msra.mxu0 0.0
    %278 = vmatprep.subr.mxu0 0.0
    %279 = vmatpush1.msra.mxu0 0.0
    %280 = vmatprep.subr.mxu0 0.0
    %281 = vmatpush1.msra.mxu0 0.0
    %282 = vmatprep.subr.mxu0 0.0
    %283 = vmatpush1.msra.mxu0 0.0
    %284 = vmatprep.subr.mxu0 0.0
    %285 = vmatpush1.msra.mxu0 0.0
    %286 = vmatprep.subr.mxu0 0.0
    %287 = vmatpush1.msra.mxu0 0.0
    %288 = vmatprep.subr.mxu0 0.0
    %289 = vmatpush1.msra.mxu0 0.0
    %290 = vmatprep.mubr.f32.mxu0 0.0
    %291 = vmatmul.mubr.f32.gmra.mrb[0].mxu0 %v224
    %v292 = vpop.f32.mrb[0].mxu0
    %v293 = vadd.f32 0.0, %v292
    %v294 = vpop.f32.mrb[0].mxu0
    %295 = vdwg.mxu0
    %296 = vrot.lane.b32.xlu0 %v128, 120
    %v297 = vpop.permute.xlu0 %296
    %298 = vrot.lane.b32.xlu0 %v120, 88
    %v299 = vpop.permute.xlu0 %298
    %v300 = vsel %vm133, %v297, 0
    %v302 = vsel %vm133, %v299, 0
    %304 = vmatprep.subr.mxu0 0.0
    %305 = vmatpush1.xpose.msra.mxu0 %v302
    %306 = vmatprep.subr.mxu0 0.0
    %307 = vmatpush1.xpose.msra.mxu0 0.0
    %308 = vmatprep.subr.mxu0 0.0
    %309 = vmatpush1.xpose.msra.mxu0 0.0
    %310 = vmatprep.subr.mxu0 0.0
    %311 = vmatpush1.xpose.msra.mxu0 0.0
    %312 = vmatprep.subr.mxu0 0.0
    %313 = vmatpush1.xpose.msra.mxu0 0.0
    %314 = vmatprep.subr.mxu0 0.0
    %315 = vmatpush1.xpose.msra.mxu0 0.0
    %316 = vmatprep.subr.mxu0 0.0
    %317 = vmatpush1.xpose.msra.mxu0 0.0
    %318 = vmatprep.subr.mxu0 0.0
    %319 = vmatpush1.xpose.msra.mxu0 0.0
    %320 = vmatprep.subr.mxu0 0.0
    %321 = vmatpush1.xpose.msra.mxu0 0.0
    %322 = vmatprep.subr.mxu0 0.0
    %323 = vmatpush1.xpose.msra.mxu0 0.0
    %324 = vmatprep.subr.mxu0 0.0
    %325 = vmatpush1.xpose.msra.mxu0 0.0
    %326 = vmatprep.subr.mxu0 0.0
    %327 = vmatpush1.xpose.msra.mxu0 0.0
    %328 = vmatprep.subr.mxu0 0.0
    %329 = vmatpush1.xpose.msra.mxu0 0.0
    %330 = vmatprep.subr.mxu0 0.0
    %331 = vmatpush1.xpose.msra.mxu0 0.0
    %332 = vmatprep.subr.mxu0 0.0
    %333 = vmatpush1.xpose.msra.mxu0 0.0
    %334 = vmatprep.subr.mxu0 0.0
    %335 = vmatpush1.xpose.msra.mxu0 0.0
    %336 = vmatprep.subr.mxu0 0.0
    %337 = vmatpush1.xpose.msra.mxu0 0.0
    %338 = vmatprep.subr.mxu0 0.0
    %339 = vmatpush1.xpose.msra.mxu0 0.0
    %340 = vmatprep.subr.mxu0 0.0
    %341 = vmatpush1.xpose.msra.mxu0 0.0
    %342 = vmatprep.subr.mxu0 0.0
    %343 = vmatpush1.xpose.msra.mxu0 0.0
    %344 = vmatprep.subr.mxu0 0.0
    %345 = vmatpush1.xpose.msra.mxu0 0.0
    %346 = vmatprep.subr.mxu0 0.0
    %347 = vmatpush1.xpose.msra.mxu0 0.0
    %348 = vmatprep.subr.mxu0 0.0
    %349 = vmatpush1.xpose.msra.mxu0 0.0
    %350 = vmatprep.subr.mxu0 0.0
    %351 = vmatpush1.xpose.msra.mxu0 0.0
    %352 = vmatprep.subr.mxu0 0.0
    %353 = vmatpush1.xpose.msra.mxu0 0.0
    %354 = vmatprep.subr.mxu0 0.0
    %355 = vmatpush1.xpose.msra.mxu0 0.0
    %356 = vmatprep.subr.mxu0 0.0
    %357 = vmatpush1.xpose.msra.mxu0 0.0
    %358 = vmatprep.subr.mxu0 0.0
    %359 = vmatpush1.xpose.msra.mxu0 0.0
    %360 = vmatprep.subr.mxu0 0.0
    %361 = vmatpush1.xpose.msra.mxu0 0.0
    %362 = vmatprep.subr.mxu0 0.0
    %363 = vmatpush1.xpose.msra.mxu0 0.0
    %364 = vmatprep.subr.mxu0 0.0
    %365 = vmatpush1.xpose.msra.mxu0 0.0
    %366 = vmatprep.subr.mxu0 0.0
    %367 = vmatpush1.xpose.msra.mxu0 0.0
    %368 = vmatprep.mubr.f32.mxu0 0.0
    %369 = vmatmul.mubr.f32.gmra.mrb[0].mxu0 %v300
    %v370 = vpop.f32.mrb[0].mxu0
    %v371 = vadd.f32 %v36, %v370
    %v372 = vpop.f32.mrb[0].mxu0
    %373 = vdwg.mxu0
    %v374 = vsel %vm133, %v371, -inf
    %375 = vmax.xlane.f32.xlu0 %v374
    %v376 = vpop.xlane.xlu0 %375
    %v377 = vsub.f32 %v371, %v376
    %v378 = vmul.f32 %v377, 1.442695
    %v379 = vpow.pop %v378
    %v380 = vsel %vm133, %v379, 0.0
    %381 = vadd.xlane.f32.xlu0 %v380
    %v382 = vpop.xlane.xlu0 %381
    %v383 = vrcp.pop %v382
    %v384 = vmul.f32 %v379, %v383
    %385 = vrot.lane.b32.xlu0 %v120, 56
    %v386 = vpop.permute.xlu0 %385
    %v389 = vsel %vm133, %v384, 0
    %391 = vmatprep.subr.mxu0 0.0
    %392 = vmatpush1.msra.mxu0 %v386
    %393 = vmatprep.subr.mxu0 0.0
    %394 = vmatpush1.msra.mxu0 0.0
    %395 = vmatprep.subr.mxu0 0.0
    %396 = vmatpush1.msra.mxu0 0.0
    %397 = vmatprep.subr.mxu0 0.0
    %398 = vmatpush1.msra.mxu0 0.0
    %399 = vmatprep.subr.mxu0 0.0
    %400 = vmatpush1.msra.mxu0 0.0
    %401 = vmatprep.subr.mxu0 0.0
    %402 = vmatpush1.msra.mxu0 0.0
    %403 = vmatprep.subr.mxu0 0.0
    %404 = vmatpush1.msra.mxu0 0.0
    %405 = vmatprep.subr.mxu0 0.0
    %406 = vmatpush1.msra.mxu0 0.0
    %407 = vmatprep.subr.mxu0 0.0
    %408 = vmatpush1.msra.mxu0 0.0
    %409 = vmatprep.subr.mxu0 0.0
    %410 = vmatpush1.msra.mxu0 0.0
    %411 = vmatprep.subr.mxu0 0.0
    %412 = vmatpush1.msra.mxu0 0.0
    %413 = vmatprep.subr.mxu0 0.0
    %414 = vmatpush1.msra.mxu0 0.0
    %415 = vmatprep.subr.mxu0 0.0
    %416 = vmatpush1.msra.mxu0 0.0
    %417 = vmatprep.subr.mxu0 0.0
    %418 = vmatpush1.msra.mxu0 0.0
    %419 = vmatprep.subr.mxu0 0.0
    %420 = vmatpush1.msra.mxu0 0.0
    %421 = vmatprep.subr.mxu0 0.0
    %422 = vmatpush1.msra.mxu0 0.0
    %423 = vmatprep.subr.mxu0 0.0
    %424 = vmatpush1.msra.mxu0 0.0
    %425 = vmatprep.subr.mxu0 0.0
    %426 = vmatpush1.msra.mxu0 0.0
    %427 = vmatprep.subr.mxu0 0.0
    %428 = vmatpush1.msra.mxu0 0.0
    %429 = vmatprep.subr.mxu0 0.0
    %430 = vmatpush1.msra.mxu0 0.0
    %431 = vmatprep.subr.mxu0 0.0
    %432 = vmatpush1.msra.mxu0 0.0
    %433 = vmatprep.subr.mxu0 0.0
    %434 = vmatpush1.msra.mxu0 0.0
    %435 = vmatprep.subr.mxu0 0.0
    %436 = vmatpush1.msra.mxu0 0.0
    %437 = vmatprep.subr.mxu0 0.0
    %438 = vmatpush1.msra.mxu0 0.0
    %439 = vmatprep.subr.mxu0 0.0
    %440 = vmatpush1.msra.mxu0 0.0
    %441 = vmatprep.subr.mxu0 0.0
    %442 = vmatpush1.msra.mxu0 0.0
    %443 = vmatprep.subr.mxu0 0.0
    %444 = vmatpush1.msra.mxu0 0.0
    %445 = vmatprep.subr.mxu0 0.0
    %446 = vmatpush1.msra.mxu0 0.0
    %447 = vmatprep.subr.mxu0 0.0
    %448 = vmatpush1.msra.mxu0 0.0
    %449 = vmatprep.subr.mxu0 0.0
    %450 = vmatpush1.msra.mxu0 0.0
    %451 = vmatprep.subr.mxu0 0.0
    %452 = vmatpush1.msra.mxu0 0.0
    %453 = vmatprep.subr.mxu0 0.0
    %454 = vmatpush1.msra.mxu0 0.0
    %455 = vmatprep.mubr.f32.mxu0 0.0
    %456 = vmatmul.mubr.f32.gmra.mrb[0].mxu0 %v389
    %v457 = vpop.f32.mrb[0].mxu0
    %v458 = vadd.f32 0.0, %v457
    %v459 = vpop.f32.mrb[0].mxu0
    %460 = vdwg.mxu0
    %461 = vrot.lane.b32.xlu0 %v128, 112
    %v462 = vpop.permute.xlu0 %461
    %463 = vrot.lane.b32.xlu0 %v120, 80
    %v464 = vpop.permute.xlu0 %463
    %v465 = vsel %vm133, %v462, 0
    %v467 = vsel %vm133, %v464, 0
    %469 = vmatprep.subr.mxu0 0.0
    %470 = vmatpush1.xpose.msra.mxu0 %v467
    %471 = vmatprep.subr.mxu0 0.0
    %472 = vmatpush1.xpose.msra.mxu0 0.0
    %473 = vmatprep.subr.mxu0 0.0
    %474 = vmatpush1.xpose.msra.mxu0 0.0
    %475 = vmatprep.subr.mxu0 0.0
    %476 = vmatpush1.xpose.msra.mxu0 0.0
    %477 = vmatprep.subr.mxu0 0.0
    %478 = vmatpush1.xpose.msra.mxu0 0.0
    %479 = vmatprep.subr.mxu0 0.0
    %480 = vmatpush1.xpose.msra.mxu0 0.0
    %481 = vmatprep.subr.mxu0 0.0
    %482 = vmatpush1.xpose.msra.mxu0 0.0
    %483 = vmatprep.subr.mxu0 0.0
    %484 = vmatpush1.xpose.msra.mxu0 0.0
    %485 = vmatprep.subr.mxu0 0.0
    %486 = vmatpush1.xpose.msra.mxu0 0.0
    %487 = vmatprep.subr.mxu0 0.0
    %488 = vmatpush1.xpose.msra.mxu0 0.0
    %489 = vmatprep.subr.mxu0 0.0
    %490 = vmatpush1.xpose.msra.mxu0 0.0
    %491 = vmatprep.subr.mxu0 0.0
    %492 = vmatpush1.xpose.msra.mxu0 0.0
    %493 = vmatprep.subr.mxu0 0.0
    %494 = vmatpush1.xpose.msra.mxu0 0.0
    %495 = vmatprep.subr.mxu0 0.0
    %496 = vmatpush1.xpose.msra.mxu0 0.0
    %497 = vmatprep.subr.mxu0 0.0
    %498 = vmatpush1.xpose.msra.mxu0 0.0
    %499 = vmatprep.subr.mxu0 0.0
    %500 = vmatpush1.xpose.msra.mxu0 0.0
    %501 = vmatprep.subr.mxu0 0.0
    %502 = vmatpush1.xpose.msra.mxu0 0.0
    %503 = vmatprep.subr.mxu0 0.0
    %504 = vmatpush1.xpose.msra.mxu0 0.0
    %505 = vmatprep.subr.mxu0 0.0
    %506 = vmatpush1.xpose.msra.mxu0 0.0
    %507 = vmatprep.subr.mxu0 0.0
    %508 = vmatpush1.xpose.msra.mxu0 0.0
    %509 = vmatprep.subr.mxu0 0.0
    %510 = vmatpush1.xpose.msra.mxu0 0.0
    %511 = vmatprep.subr.mxu0 0.0
    %512 = vmatpush1.xpose.msra.mxu0 0.0
    %513 = vmatprep.subr.mxu0 0.0
    %514 = vmatpush1.xpose.msra.mxu0 0.0
    %515 = vmatprep.subr.mxu0 0.0
    %516 = vmatpush1.xpose.msra.mxu0 0.0
    %517 = vmatprep.subr.mxu0 0.0
    %518 = vmatpush1.xpose.msra.mxu0 0.0
    %519 = vmatprep.subr.mxu0 0.0
    %520 = vmatpush1.xpose.msra.mxu0 0.0
    %521 = vmatprep.subr.mxu0 0.0
    %522 = vmatpush1.xpose.msra.mxu0 0.0
    %523 = vmatprep.subr.mxu0 0.0
    %524 = vmatpush1.xpose.msra.mxu0 0.0
    %525 = vmatprep.subr.mxu0 0.0
    %526 = vmatpush1.xpose.msra.mxu0 0.0
    %527 = vmatprep.subr.mxu0 0.0
    %528 = vmatpush1.xpose.msra.mxu0 0.0
    %529 = vmatprep.subr.mxu0 0.0
    %530 = vmatpush1.xpose.msra.mxu0 0.0
    %531 = vmatprep.subr.mxu0 0.0
    %532 = vmatpush1.xpose.msra.mxu0 0.0
    %533 = vmatprep.mubr.f32.mxu0 0.0
    %534 = vmatmul.mubr.f32.gmra.mrb[0].mxu0 %v465
    %v535 = vpop.f32.mrb[0].mxu0
    %v536 = vadd.f32 %v36, %v535
    %v537 = vpop.f32.mrb[0].mxu0
    %538 = vdwg.mxu0
    %v539 = vsel %vm133, %v536, -inf
    %540 = vmax.xlane.f32.xlu0 %v539
    %v541 = vpop.xlane.xlu0 %540
    %v542 = vsub.f32 %v536, %v541
    %v543 = vmul.f32 %v542, 1.442695
    %v544 = vpow.pop %v543
    %v545 = vsel %vm133, %v544, 0.0
    %546 = vadd.xlane.f32.xlu0 %v545
    %v547 = vpop.xlane.xlu0 %546
    %v548 = vrcp.pop %v547
    %v549 = vmul.f32 %v544, %v548
    %550 = vrot.lane.b32.xlu0 %v120, 48
    %v551 = vpop.permute.xlu0 %550
    %v554 = vsel %vm133, %v549, 0
    %556 = vmatprep.subr.mxu0 0.0
    %557 = vmatpush1.msra.mxu0 %v551
    %558 = vmatprep.subr.mxu0 0.0
    %559 = vmatpush1.msra.mxu0 0.0
    %560 = vmatprep.subr.mxu0 0.0
    %561 = vmatpush1.msra.mxu0 0.0
    %562 = vmatprep.subr.mxu0 0.0
    %563 = vmatpush1.msra.mxu0 0.0
    %564 = vmatprep.subr.mxu0 0.0
    %565 = vmatpush1.msra.mxu0 0.0
    %566 = vmatprep.subr.mxu0 0.0
    %567 = vmatpush1.msra.mxu0 0.0
    %568 = vmatprep.subr.mxu0 0.0
    %569 = vmatpush1.msra.mxu0 0.0
    %570 = vmatprep.subr.mxu0 0.0
    %571 = vmatpush1.msra.mxu0 0.0
    %572 = vmatprep.subr.mxu0 0.0
    %573 = vmatpush1.msra.mxu0 0.0
    %574 = vmatprep.subr.mxu0 0.0
    %575 = vmatpush1.msra.mxu0 0.0
    %576 = vmatprep.subr.mxu0 0.0
    %577 = vmatpush1.msra.mxu0 0.0
    %578 = vmatprep.subr.mxu0 0.0
    %579 = vmatpush1.msra.mxu0 0.0
    %580 = vmatprep.subr.mxu0 0.0
    %581 = vmatpush1.msra.mxu0 0.0
    %582 = vmatprep.subr.mxu0 0.0
    %583 = vmatpush1.msra.mxu0 0.0
    %584 = vmatprep.subr.mxu0 0.0
    %585 = vmatpush1.msra.mxu0 0.0
    %586 = vmatprep.subr.mxu0 0.0
    %587 = vmatpush1.msra.mxu0 0.0
    %588 = vmatprep.subr.mxu0 0.0
    %589 = vmatpush1.msra.mxu0 0.0
    %590 = vmatprep.subr.mxu0 0.0
    %591 = vmatpush1.msra.mxu0 0.0
    %592 = vmatprep.subr.mxu0 0.0
    %593 = vmatpush1.msra.mxu0 0.0
    %594 = vmatprep.subr.mxu0 0.0
    %595 = vmatpush1.msra.mxu0 0.0
    %596 = vmatprep.subr.mxu0 0.0
    %597 = vmatpush1.msra.mxu0 0.0
    %598 = vmatprep.subr.mxu0 0.0
    %599 = vmatpush1.msra.mxu0 0.0
    %600 = vmatprep.subr.mxu0 0.0
    %601 = vmatpush1.msra.mxu0 0.0
    %602 = vmatprep.subr.mxu0 0.0
    %603 = vmatpush1.msra.mxu0 0.0
    %604 = vmatprep.subr.mxu0 0.0
    %605 = vmatpush1.msra.mxu0 0.0
    %606 = vmatprep.subr.mxu0 0.0
    %607 = vmatpush1.msra.mxu0 0.0
    %608 = vmatprep.subr.mxu0 0.0
    %609 = vmatpush1.msra.mxu0 0.0
    %610 = vmatprep.subr.mxu0 0.0
    %611 = vmatpush1.msra.mxu0 0.0
    %612 = vmatprep.subr.mxu0 0.0
    %613 = vmatpush1.msra.mxu0 0.0
    %614 = vmatprep.subr.mxu0 0.0
    %615 = vmatpush1.msra.mxu0 0.0
    %616 = vmatprep.subr.mxu0 0.0
    %617 = vmatpush1.msra.mxu0 0.0
    %618 = vmatprep.subr.mxu0 0.0
    %619 = vmatpush1.msra.mxu0 0.0
    %620 = vmatprep.mubr.f32.mxu0 0.0
    %621 = vmatmul.mubr.f32.gmra.mrb[0].mxu0 %v554
    %v622 = vpop.f32.mrb[0].mxu0
    %v623 = vadd.f32 0.0, %v622
    %v624 = vpop.f32.mrb[0].mxu0
    %625 = vdwg.mxu0
    %626 = vrot.lane.b32.xlu0 %v128, 104
    %v627 = vpop.permute.xlu0 %626
    %628 = vrot.lane.b32.xlu0 %v120, 72
    %v629 = vpop.permute.xlu0 %628
    %v630 = vsel %vm133, %v627, 0
    %v632 = vsel %vm133, %v629, 0
    %634 = vmatprep.subr.mxu0 0.0
    %635 = vmatpush1.xpose.msra.mxu0 %v632
    %636 = vmatprep.subr.mxu0 0.0
    %637 = vmatpush1.xpose.msra.mxu0 0.0
    %638 = vmatprep.subr.mxu0 0.0
    %639 = vmatpush1.xpose.msra.mxu0 0.0
    %640 = vmatprep.subr.mxu0 0.0
    %641 = vmatpush1.xpose.msra.mxu0 0.0
    %642 = vmatprep.subr.mxu0 0.0
    %643 = vmatpush1.xpose.msra.mxu0 0.0
    %644 = vmatprep.subr.mxu0 0.0
    %645 = vmatpush1.xpose.msra.mxu0 0.0
    %646 = vmatprep.subr.mxu0 0.0
    %647 = vmatpush1.xpose.msra.mxu0 0.0
    %648 = vmatprep.subr.mxu0 0.0
    %649 = vmatpush1.xpose.msra.mxu0 0.0
    %650 = vmatprep.subr.mxu0 0.0
    %651 = vmatpush1.xpose.msra.mxu0 0.0
    %652 = vmatprep.subr.mxu0 0.0
    %653 = vmatpush1.xpose.msra.mxu0 0.0
    %654 = vmatprep.subr.mxu0 0.0
    %655 = vmatpush1.xpose.msra.mxu0 0.0
    %656 = vmatprep.subr.mxu0 0.0
    %657 = vmatpush1.xpose.msra.mxu0 0.0
    %658 = vmatprep.subr.mxu0 0.0
    %659 = vmatpush1.xpose.msra.mxu0 0.0
    %660 = vmatprep.subr.mxu0 0.0
    %661 = vmatpush1.xpose.msra.mxu0 0.0
    %662 = vmatprep.subr.mxu0 0.0
    %663 = vmatpush1.xpose.msra.mxu0 0.0
    %664 = vmatprep.subr.mxu0 0.0
    %665 = vmatpush1.xpose.msra.mxu0 0.0
    %666 = vmatprep.subr.mxu0 0.0
    %667 = vmatpush1.xpose.msra.mxu0 0.0
    %668 = vmatprep.subr.mxu0 0.0
    %669 = vmatpush1.xpose.msra.mxu0 0.0
    %670 = vmatprep.subr.mxu0 0.0
    %671 = vmatpush1.xpose.msra.mxu0 0.0
    %672 = vmatprep.subr.mxu0 0.0
    %673 = vmatpush1.xpose.msra.mxu0 0.0
    %674 = vmatprep.subr.mxu0 0.0
    %675 = vmatpush1.xpose.msra.mxu0 0.0
    %676 = vmatprep.subr.mxu0 0.0
    %677 = vmatpush1.xpose.msra.mxu0 0.0
    %678 = vmatprep.subr.mxu0 0.0
    %679 = vmatpush1.xpose.msra.mxu0 0.0
    %680 = vmatprep.subr.mxu0 0.0
    %681 = vmatpush1.xpose.msra.mxu0 0.0
    %682 = vmatprep.subr.mxu0 0.0
    %683 = vmatpush1.xpose.msra.mxu0 0.0
    %684 = vmatprep.subr.mxu0 0.0
    %685 = vmatpush1.xpose.msra.mxu0 0.0
    %686 = vmatprep.subr.mxu0 0.0
    %687 = vmatpush1.xpose.msra.mxu0 0.0
    %688 = vmatprep.subr.mxu0 0.0
    %689 = vmatpush1.xpose.msra.mxu0 0.0
    %690 = vmatprep.subr.mxu0 0.0
    %691 = vmatpush1.xpose.msra.mxu0 0.0
    %692 = vmatprep.subr.mxu0 0.0
    %693 = vmatpush1.xpose.msra.mxu0 0.0
    %694 = vmatprep.subr.mxu0 0.0
    %695 = vmatpush1.xpose.msra.mxu0 0.0
    %696 = vmatprep.subr.mxu0 0.0
    %697 = vmatpush1.xpose.msra.mxu0 0.0
    %698 = vmatprep.mubr.f32.mxu0 0.0
    %699 = vmatmul.mubr.f32.gmra.mrb[0].mxu0 %v630
    %v700 = vpop.f32.mrb[0].mxu0
    %v701 = vadd.f32 %v36, %v700
    %v702 = vpop.f32.mrb[0].mxu0
    %703 = vdwg.mxu0
    %v704 = vsel %vm133, %v701, -inf
    %705 = vmax.xlane.f32.xlu0 %v704
    %v706 = vpop.xlane.xlu0 %705
    %v707 = vsub.f32 %v701, %v706
    %v708 = vmul.f32 %v707, 1.442695
    %v709 = vpow.pop %v708
    %v710 = vsel %vm133, %v709, 0.0
    %711 = vadd.xlane.f32.xlu0 %v710
    %v712 = vpop.xlane.xlu0 %711
    %v713 = vrcp.pop %v712
    %v714 = vmul.f32 %v709, %v713
    %715 = vrot.lane.b32.xlu0 %v120, 40
    %v716 = vpop.permute.xlu0 %715
    %v719 = vsel %vm133, %v714, 0
    %721 = vmatprep.subr.mxu0 0.0
    %722 = vmatpush1.msra.mxu0 %v716
    %723 = vmatprep.subr.mxu0 0.0
    %724 = vmatpush1.msra.mxu0 0.0
    %725 = vmatprep.subr.mxu0 0.0
    %726 = vmatpush1.msra.mxu0 0.0
    %727 = vmatprep.subr.mxu0 0.0
    %728 = vmatpush1.msra.mxu0 0.0
    %729 = vmatprep.subr.mxu0 0.0
    %730 = vmatpush1.msra.mxu0 0.0
    %731 = vmatprep.subr.mxu0 0.0
    %732 = vmatpush1.msra.mxu0 0.0
    %733 = vmatprep.subr.mxu0 0.0
    %734 = vmatpush1.msra.mxu0 0.0
    %735 = vmatprep.subr.mxu0 0.0
    %736 = vmatpush1.msra.mxu0 0.0
    %737 = vmatprep.subr.mxu0 0.0
    %738 = vmatpush1.msra.mxu0 0.0
    %739 = vmatprep.subr.mxu0 0.0
    %740 = vmatpush1.msra.mxu0 0.0
    %741 = vmatprep.subr.mxu0 0.0
    %742 = vmatpush1.msra.mxu0 0.0
    %743 = vmatprep.subr.mxu0 0.0
    %744 = vmatpush1.msra.mxu0 0.0
    %745 = vmatprep.subr.mxu0 0.0
    %746 = vmatpush1.msra.mxu0 0.0
    %747 = vmatprep.subr.mxu0 0.0
    %748 = vmatpush1.msra.mxu0 0.0
    %749 = vmatprep.subr.mxu0 0.0
    %750 = vmatpush1.msra.mxu0 0.0
    %751 = vmatprep.subr.mxu0 0.0
    %752 = vmatpush1.msra.mxu0 0.0
    %753 = vmatprep.subr.mxu0 0.0
    %754 = vmatpush1.msra.mxu0 0.0
    %755 = vmatprep.subr.mxu0 0.0
    %756 = vmatpush1.msra.mxu0 0.0
    %757 = vmatprep.subr.mxu0 0.0
    %758 = vmatpush1.msra.mxu0 0.0
    %759 = vmatprep.subr.mxu0 0.0
    %760 = vmatpush1.msra.mxu0 0.0
    %761 = vmatprep.subr.mxu0 0.0
    %762 = vmatpush1.msra.mxu0 0.0
    %763 = vmatprep.subr.mxu0 0.0
    %764 = vmatpush1.msra.mxu0 0.0
    %765 = vmatprep.subr.mxu0 0.0
    %766 = vmatpush1.msra.mxu0 0.0
    %767 = vmatprep.subr.mxu0 0.0
    %768 = vmatpush1.msra.mxu0 0.0
    %769 = vmatprep.subr.mxu0 0.0
    %770 = vmatpush1.msra.mxu0 0.0
    %771 = vmatprep.subr.mxu0 0.0
    %772 = vmatpush1.msra.mxu0 0.0
    %773 = vmatprep.subr.mxu0 0.0
    %774 = vmatpush1.msra.mxu0 0.0
    %775 = vmatprep.subr.mxu0 0.0
    %776 = vmatpush1.msra.mxu0 0.0
    %777 = vmatprep.subr.mxu0 0.0
    %778 = vmatpush1.msra.mxu0 0.0
    %779 = vmatprep.subr.mxu0 0.0
    %780 = vmatpush1.msra.mxu0 0.0
    %781 = vmatprep.subr.mxu0 0.0
    %782 = vmatpush1.msra.mxu0 0.0
    %783 = vmatprep.subr.mxu0 0.0
    %784 = vmatpush1.msra.mxu0 0.0
    %785 = vmatprep.mubr.f32.mxu0 0.0
    %786 = vmatmul.mubr.f32.gmra.mrb[0].mxu0 %v719
    %v787 = vpop.f32.mrb[0].mxu0
    %v788 = vadd.f32 0.0, %v787
    %v789 = vpop.f32.mrb[0].mxu0
    %790 = vdwg.mxu0
    %792 = vrot.lane.b32.xlu0 %v458, 8
    %v793 = vpop.permute.xlu0 %792
    %796 = vrot.lane.b32.xlu0 %v623, 16
    %v797 = vpop.permute.xlu0 %796
    %800 = vrot.lane.b32.xlu0 %v788, 24
    %v801 = vpop.permute.xlu0 %800
    %v803 = vsel %vm133, %v293, %v793
    %vm804 = vcmask 130048
    %v805 = vsel %vm804, %v803, %v797
    %vm806 = vcmask 195584
    %v807 = vsel %vm806, %v805, %v801
    %809 = vrot.lane.b32.xlu0 %v125, 96
    %v810 = vpop.permute.xlu0 %809
    %v812 = vsel %vm133, %v129, 0
    %v814 = vsel %vm133, %v810, 0
    %816 = vmatprep.subr.mxu0 0.0
    %817 = vmatpush1.xpose.msra.mxu0 %v814
    %818 = vmatprep.subr.mxu0 0.0
    %819 = vmatpush1.xpose.msra.mxu0 0.0
    %820 = vmatprep.subr.mxu0 0.0
    %821 = vmatpush1.xpose.msra.mxu0 0.0
    %822 = vmatprep.subr.mxu0 0.0
    %823 = vmatpush1.xpose.msra.mxu0 0.0
    %824 = vmatprep.subr.mxu0 0.0
    %825 = vmatpush1.xpose.msra.mxu0 0.0
    %826 = vmatprep.subr.mxu0 0.0
    %827 = vmatpush1.xpose.msra.mxu0 0.0
    %828 = vmatprep.subr.mxu0 0.0
    %829 = vmatpush1.xpose.msra.mxu0 0.0
    %830 = vmatprep.subr.mxu0 0.0
    %831 = vmatpush1.xpose.msra.mxu0 0.0
    %832 = vmatprep.subr.mxu0 0.0
    %833 = vmatpush1.xpose.msra.mxu0 0.0
    %834 = vmatprep.subr.mxu0 0.0
    %835 = vmatpush1.xpose.msra.mxu0 0.0
    %836 = vmatprep.subr.mxu0 0.0
    %837 = vmatpush1.xpose.msra.mxu0 0.0
    %838 = vmatprep.subr.mxu0 0.0
    %839 = vmatpush1.xpose.msra.mxu0 0.0
    %840 = vmatprep.subr.mxu0 0.0
    %841 = vmatpush1.xpose.msra.mxu0 0.0
    %842 = vmatprep.subr.mxu0 0.0
    %843 = vmatpush1.xpose.msra.mxu0 0.0
    %844 = vmatprep.subr.mxu0 0.0
    %845 = vmatpush1.xpose.msra.mxu0 0.0
    %846 = vmatprep.subr.mxu0 0.0
    %847 = vmatpush1.xpose.msra.mxu0 0.0
    %848 = vmatprep.subr.mxu0 0.0
    %849 = vmatpush1.xpose.msra.mxu0 0.0
    %850 = vmatprep.subr.mxu0 0.0
    %851 = vmatpush1.xpose.msra.mxu0 0.0
    %852 = vmatprep.subr.mxu0 0.0
    %853 = vmatpush1.xpose.msra.mxu0 0.0
    %854 = vmatprep.subr.mxu0 0.0
    %855 = vmatpush1.xpose.msra.mxu0 0.0
    %856 = vmatprep.subr.mxu0 0.0
    %857 = vmatpush1.xpose.msra.mxu0 0.0
    %858 = vmatprep.subr.mxu0 0.0
    %859 = vmatpush1.xpose.msra.mxu0 0.0
    %860 = vmatprep.subr.mxu0 0.0
    %861 = vmatpush1.xpose.msra.mxu0 0.0
    %862 = vmatprep.subr.mxu0 0.0
    %863 = vmatpush1.xpose.msra.mxu0 0.0
    %864 = vmatprep.subr.mxu0 0.0
    %865 = vmatpush1.xpose.msra.mxu0 0.0
    %866 = vmatprep.subr.mxu0 0.0
    %867 = vmatpush1.xpose.msra.mxu0 0.0
    %868 = vmatprep.subr.mxu0 0.0
    %869 = vmatpush1.xpose.msra.mxu0 0.0
    %870 = vmatprep.subr.mxu0 0.0
    %871 = vmatpush1.xpose.msra.mxu0 0.0
    %872 = vmatprep.subr.mxu0 0.0
    %873 = vmatpush1.xpose.msra.mxu0 0.0
    %874 = vmatprep.subr.mxu0 0.0
    %875 = vmatpush1.xpose.msra.mxu0 0.0
    %876 = vmatprep.subr.mxu0 0.0
    %877 = vmatpush1.xpose.msra.mxu0 0.0
    %878 = vmatprep.subr.mxu0 0.0
    %879 = vmatpush1.xpose.msra.mxu0 0.0
    %880 = vmatprep.mubr.f32.mxu0 0.0
    %881 = vmatmul.mubr.f32.gmra.mrb[0].mxu0 %v812
    %v882 = vpop.f32.mrb[0].mxu0
    %v883 = vadd.f32 %v38, %v882
    %v884 = vpop.f32.mrb[0].mxu0
    %885 = vdwg.mxu0
    %v886 = vsel %vm133, %v883, -inf
    %887 = vmax.xlane.f32.xlu0 %v886
    %v888 = vpop.xlane.xlu0 %887
    %v889 = vsub.f32 %v883, %v888
    %v890 = vmul.f32 %v889, 1.442695
    %v891 = vpow.pop %v890
    %v892 = vsel %vm133, %v891, 0.0
    %893 = vadd.xlane.f32.xlu0 %v892
    %v894 = vpop.xlane.xlu0 %893
    %v895 = vrcp.pop %v894
    %v896 = vmul.f32 %v891, %v895
    %897 = vrot.lane.b32.xlu0 %v125, 64
    %v898 = vpop.permute.xlu0 %897
    %v901 = vsel %vm133, %v896, 0
    %903 = vmatprep.subr.mxu0 0.0
    %904 = vmatpush1.msra.mxu0 %v898
    %905 = vmatprep.subr.mxu0 0.0
    %906 = vmatpush1.msra.mxu0 0.0
    %907 = vmatprep.subr.mxu0 0.0
    %908 = vmatpush1.msra.mxu0 0.0
    %909 = vmatprep.subr.mxu0 0.0
    %910 = vmatpush1.msra.mxu0 0.0
    %911 = vmatprep.subr.mxu0 0.0
    %912 = vmatpush1.msra.mxu0 0.0
    %913 = vmatprep.subr.mxu0 0.0
    %914 = vmatpush1.msra.mxu0 0.0
    %915 = vmatprep.subr.mxu0 0.0
    %916 = vmatpush1.msra.mxu0 0.0
    %917 = vmatprep.subr.mxu0 0.0
    %918 = vmatpush1.msra.mxu0 0.0
    %919 = vmatprep.subr.mxu0 0.0
    %920 = vmatpush1.msra.mxu0 0.0
    %921 = vmatprep.subr.mxu0 0.0
    %922 = vmatpush1.msra.mxu0 0.0
    %923 = vmatprep.subr.mxu0 0.0
    %924 = vmatpush1.msra.mxu0 0.0
    %925 = vmatprep.subr.mxu0 0.0
    %926 = vmatpush1.msra.mxu0 0.0
    %927 = vmatprep.subr.mxu0 0.0
    %928 = vmatpush1.msra.mxu0 0.0
    %929 = vmatprep.subr.mxu0 0.0
    %930 = vmatpush1.msra.mxu0 0.0
    %931 = vmatprep.subr.mxu0 0.0
    %932 = vmatpush1.msra.mxu0 0.0
    %933 = vmatprep.subr.mxu0 0.0
    %934 = vmatpush1.msra.mxu0 0.0
    %935 = vmatprep.subr.mxu0 0.0
    %936 = vmatpush1.msra.mxu0 0.0
    %937 = vmatprep.subr.mxu0 0.0
    %938 = vmatpush1.msra.mxu0 0.0
    %939 = vmatprep.subr.mxu0 0.0
    %940 = vmatpush1.msra.mxu0 0.0
    %941 = vmatprep.subr.mxu0 0.0
    %942 = vmatpush1.msra.mxu0 0.0
    %943 = vmatprep.subr.mxu0 0.0
    %944 = vmatpush1.msra.mxu0 0.0
    %945 = vmatprep.subr.mxu0 0.0
    %946 = vmatpush1.msra.mxu0 0.0
    %947 = vmatprep.subr.mxu0 0.0
    %948 = vmatpush1.msra.mxu0 0.0
    %949 = vmatprep.subr.mxu0 0.0
    %950 = vmatpush1.msra.mxu0 0.0
    %951 = vmatprep.subr.mxu0 0.0
    %952 = vmatpush1.msra.mxu0 0.0
    %953 = vmatprep.subr.mxu0 0.0
    %954 = vmatpush1.msra.mxu0 0.0
    %955 = vmatprep.subr.mxu0 0.0
    %956 = vmatpush1.msra.mxu0 0.0
    %957 = vmatprep.subr.mxu0 0.0
    %958 = vmatpush1.msra.mxu0 0.0
    %959 = vmatprep.subr.mxu0 0.0
    %960 = vmatpush1.msra.mxu0 0.0
    %961 = vmatprep.subr.mxu0 0.0
    %962 = vmatpush1.msra.mxu0 0.0
    %963 = vmatprep.subr.mxu0 0.0
    %964 = vmatpush1.msra.mxu0 0.0
    %965 = vmatprep.subr.mxu0 0.0
    %966 = vmatpush1.msra.mxu0 0.0
    %967 = vmatprep.mubr.f32.mxu0 0.0
    %968 = vmatmul.mubr.f32.gmra.mrb[0].mxu0 %v901
    %v969 = vpop.f32.mrb[0].mxu0
    %v970 = vadd.f32 0.0, %v969
    %v971 = vpop.f32.mrb[0].mxu0
    %972 = vdwg.mxu0
    %973 = vrot.lane.b32.xlu0 %v129, 120
    %v974 = vpop.permute.xlu0 %973
    %975 = vrot.lane.b32.xlu0 %v125, 88
    %v976 = vpop.permute.xlu0 %975
    %v977 = vsel %vm133, %v974, 0
    %v979 = vsel %vm133, %v976, 0
    %981 = vmatprep.subr.mxu0 0.0
    %982 = vmatpush1.xpose.msra.mxu0 %v979
    %983 = vmatprep.subr.mxu0 0.0
    %984 = vmatpush1.xpose.msra.mxu0 0.0
    %985 = vmatprep.subr.mxu0 0.0
    %986 = vmatpush1.xpose.msra.mxu0 0.0
    %987 = vmatprep.subr.mxu0 0.0
    %988 = vmatpush1.xpose.msra.mxu0 0.0
    %989 = vmatprep.subr.mxu0 0.0
    %990 = vmatpush1.xpose.msra.mxu0 0.0
    %991 = vmatprep.subr.mxu0 0.0
    %992 = vmatpush1.xpose.msra.mxu0 0.0
    %993 = vmatprep.subr.mxu0 0.0
    %994 = vmatpush1.xpose.msra.mxu0 0.0
    %995 = vmatprep.subr.mxu0 0.0
    %996 = vmatpush1.xpose.msra.mxu0 0.0
    %997 = vmatprep.subr.mxu0 0.0
    %998 = vmatpush1.xpose.msra.mxu0 0.0
    %999 = vmatprep.subr.mxu0 0.0
    %1000 = vmatpush1.xpose.msra.mxu0 0.0
    %1001 = vmatprep.subr.mxu0 0.0
    %1002 = vmatpush1.xpose.msra.mxu0 0.0
    %1003 = vmatprep.subr.mxu0 0.0
    %1004 = vmatpush1.xpose.msra.mxu0 0.0
    %1005 = vmatprep.subr.mxu0 0.0
    %1006 = vmatpush1.xpose.msra.mxu0 0.0
    %1007 = vmatprep.subr.mxu0 0.0
    %1008 = vmatpush1.xpose.msra.mxu0 0.0
    %1009 = vmatprep.subr.mxu0 0.0
    %1010 = vmatpush1.xpose.msra.mxu0 0.0
    %1011 = vmatprep.subr.mxu0 0.0
    %1012 = vmatpush1.xpose.msra.mxu0 0.0
    %1013 = vmatprep.subr.mxu0 0.0
    %1014 = vmatpush1.xpose.msra.mxu0 0.0
    %1015 = vmatprep.subr.mxu0 0.0
    %1016 = vmatpush1.xpose.msra.mxu0 0.0
    %1017 = vmatprep.subr.mxu0 0.0
    %1018 = vmatpush1.xpose.msra.mxu0 0.0
    %1019 = vmatprep.subr.mxu0 0.0
    %1020 = vmatpush1.xpose.msra.mxu0 0.0
    %1021 = vmatprep.subr.mxu0 0.0
    %1022 = vmatpush1.xpose.msra.mxu0 0.0
    %1023 = vmatprep.subr.mxu0 0.0
    %1024 = vmatpush1.xpose.msra.mxu0 0.0
    %1025 = vmatprep.subr.mxu0 0.0
    %1026 = vmatpush1.xpose.msra.mxu0 0.0
    %1027 = vmatprep.subr.mxu0 0.0
    %1028 = vmatpush1.xpose.msra.mxu0 0.0
    %1029 = vmatprep.subr.mxu0 0.0
    %1030 = vmatpush1.xpose.msra.mxu0 0.0
    %1031 = vmatprep.subr.mxu0 0.0
    %1032 = vmatpush1.xpose.msra.mxu0 0.0
    %1033 = vmatprep.subr.mxu0 0.0
    %1034 = vmatpush1.xpose.msra.mxu0 0.0
    %1035 = vmatprep.subr.mxu0 0.0
    %1036 = vmatpush1.xpose.msra.mxu0 0.0
    %1037 = vmatprep.subr.mxu0 0.0
    %1038 = vmatpush1.xpose.msra.mxu0 0.0
    %1039 = vmatprep.subr.mxu0 0.0
    %1040 = vmatpush1.xpose.msra.mxu0 0.0
    %1041 = vmatprep.subr.mxu0 0.0
    %1042 = vmatpush1.xpose.msra.mxu0 0.0
    %1043 = vmatprep.subr.mxu0 0.0
    %1044 = vmatpush1.xpose.msra.mxu0 0.0
    %1045 = vmatprep.mubr.f32.mxu0 0.0
    %1046 = vmatmul.mubr.f32.gmra.mrb[0].mxu0 %v977
    %v1047 = vpop.f32.mrb[0].mxu0
    %v1048 = vadd.f32 %v38, %v1047
    %v1049 = vpop.f32.mrb[0].mxu0
    %1050 = vdwg.mxu0
    %v1051 = vsel %vm133, %v1048, -inf
    %1052 = vmax.xlane.f32.xlu0 %v1051
    %v1053 = vpop.xlane.xlu0 %1052
    %v1054 = vsub.f32 %v1048, %v1053
    %v1055 = vmul.f32 %v1054, 1.442695
    %v1056 = vpow.pop %v1055
    %v1057 = vsel %vm133, %v1056, 0.0
    %1058 = vadd.xlane.f32.xlu0 %v1057
    %v1059 = vpop.xlane.xlu0 %1058
    %v1060 = vrcp.pop %v1059
    %v1061 = vmul.f32 %v1056, %v1060
    %1062 = vrot.lane.b32.xlu0 %v125, 56
    %v1063 = vpop.permute.xlu0 %1062
    %v1066 = vsel %vm133, %v1061, 0
    %1068 = vmatprep.subr.mxu0 0.0
    %1069 = vmatpush1.msra.mxu0 %v1063
    %1070 = vmatprep.subr.mxu0 0.0
    %1071 = vmatpush1.msra.mxu0 0.0
    %1072 = vmatprep.subr.mxu0 0.0
    %1073 = vmatpush1.msra.mxu0 0.0
    %1074 = vmatprep.subr.mxu0 0.0
    %1075 = vmatpush1.msra.mxu0 0.0
    %1076 = vmatprep.subr.mxu0 0.0
    %1077 = vmatpush1.msra.mxu0 0.0
    %1078 = vmatprep.subr.mxu0 0.0
    %1079 = vmatpush1.msra.mxu0 0.0
    %1080 = vmatprep.subr.mxu0 0.0
    %1081 = vmatpush1.msra.mxu0 0.0
    %1082 = vmatprep.subr.mxu0 0.0
    %1083 = vmatpush1.msra.mxu0 0.0
    %1084 = vmatprep.subr.mxu0 0.0
    %1085 = vmatpush1.msra.mxu0 0.0
    %1086 = vmatprep.subr.mxu0 0.0
    %1087 = vmatpush1.msra.mxu0 0.0
    %1088 = vmatprep.subr.mxu0 0.0
    %1089 = vmatpush1.msra.mxu0 0.0
    %1090 = vmatprep.subr.mxu0 0.0
    %1091 = vmatpush1.msra.mxu0 0.0
    %1092 = vmatprep.subr.mxu0 0.0
    %1093 = vmatpush1.msra.mxu0 0.0
    %1094 = vmatprep.subr.mxu0 0.0
    %1095 = vmatpush1.msra.mxu0 0.0
    %1096 = vmatprep.subr.mxu0 0.0
    %1097 = vmatpush1.msra.mxu0 0.0
    %1098 = vmatprep.subr.mxu0 0.0
    %1099 = vmatpush1.msra.mxu0 0.0
    %1100 = vmatprep.subr.mxu0 0.0
    %1101 = vmatpush1.msra.mxu0 0.0
    %1102 = vmatprep.subr.mxu0 0.0
    %1103 = vmatpush1.msra.mxu0 0.0
    %1104 = vmatprep.subr.mxu0 0.0
    %1105 = vmatpush1.msra.mxu0 0.0
    %1106 = vmatprep.subr.mxu0 0.0
    %1107 = vmatpush1.msra.mxu0 0.0
    %1108 = vmatprep.subr.mxu0 0.0
    %1109 = vmatpush1.msra.mxu0 0.0
    %1110 = vmatprep.subr.mxu0 0.0
    %1111 = vmatpush1.msra.mxu0 0.0
    %1112 = vmatprep.subr.mxu0 0.0
    %1113 = vmatpush1.msra.mxu0 0.0
    %1114 = vmatprep.subr.mxu0 0.0
    %1115 = vmatpush1.msra.mxu0 0.0
    %1116 = vmatprep.subr.mxu0 0.0
    %1117 = vmatpush1.msra.mxu0 0.0
    %1118 = vmatprep.subr.mxu0 0.0
    %1119 = vmatpush1.msra.mxu0 0.0
    %1120 = vmatprep.subr.mxu0 0.0
    %1121 = vmatpush1.msra.mxu0 0.0
    %1122 = vmatprep.subr.mxu0 0.0
    %1123 = vmatpush1.msra.mxu0 0.0
    %1124 = vmatprep.subr.mxu0 0.0
    %1125 = vmatpush1.msra.mxu0 0.0
    %1126 = vmatprep.subr.mxu0 0.0
    %1127 = vmatpush1.msra.mxu0 0.0
    %1128 = vmatprep.subr.mxu0 0.0
    %1129 = vmatpush1.msra.mxu0 0.0
    %1130 = vmatprep.subr.mxu0 0.0
    %1131 = vmatpush1.msra.mxu0 0.0
    %1132 = vmatprep.mubr.f32.mxu0 0.0
    %1133 = vmatmul.mubr.f32.gmra.mrb[0].mxu0 %v1066
    %v1134 = vpop.f32.mrb[0].mxu0
    %v1135 = vadd.f32 0.0, %v1134
    %v1136 = vpop.f32.mrb[0].mxu0
    %1137 = vdwg.mxu0
    %1138 = vrot.lane.b32.xlu0 %v129, 112
    %v1139 = vpop.permute.xlu0 %1138
    %1140 = vrot.lane.b32.xlu0 %v125, 80
    %v1141 = vpop.permute.xlu0 %1140
    %v1142 = vsel %vm133, %v1139, 0
    %v1144 = vsel %vm133, %v1141, 0
    %1146 = vmatprep.subr.mxu0 0.0
    %1147 = vmatpush1.xpose.msra.mxu0 %v1144
    %1148 = vmatprep.subr.mxu0 0.0
    %1149 = vmatpush1.xpose.msra.mxu0 0.0
    %1150 = vmatprep.subr.mxu0 0.0
    %1151 = vmatpush1.xpose.msra.mxu0 0.0
    %1152 = vmatprep.subr.mxu0 0.0
    %1153 = vmatpush1.xpose.msra.mxu0 0.0
    %1154 = vmatprep.subr.mxu0 0.0
    %1155 = vmatpush1.xpose.msra.mxu0 0.0
    %1156 = vmatprep.subr.mxu0 0.0
    %1157 = vmatpush1.xpose.msra.mxu0 0.0
    %1158 = vmatprep.subr.mxu0 0.0
    %1159 = vmatpush1.xpose.msra.mxu0 0.0
    %1160 = vmatprep.subr.mxu0 0.0
    %1161 = vmatpush1.xpose.msra.mxu0 0.0
    %1162 = vmatprep.subr.mxu0 0.0
    %1163 = vmatpush1.xpose.msra.mxu0 0.0
    %1164 = vmatprep.subr.mxu0 0.0
    %1165 = vmatpush1.xpose.msra.mxu0 0.0
    %1166 = vmatprep.subr.mxu0 0.0
    %1167 = vmatpush1.xpose.msra.mxu0 0.0
    %1168 = vmatprep.subr.mxu0 0.0
    %1169 = vmatpush1.xpose.msra.mxu0 0.0
    %1170 = vmatprep.subr.mxu0 0.0
    %1171 = vmatpush1.xpose.msra.mxu0 0.0
    %1172 = vmatprep.subr.mxu0 0.0
    %1173 = vmatpush1.xpose.msra.mxu0 0.0
    %1174 = vmatprep.subr.mxu0 0.0
    %1175 = vmatpush1.xpose.msra.mxu0 0.0
    %1176 = vmatprep.subr.mxu0 0.0
    %1177 = vmatpush1.xpose.msra.mxu0 0.0
    %1178 = vmatprep.subr.mxu0 0.0
    %1179 = vmatpush1.xpose.msra.mxu0 0.0
    %1180 = vmatprep.subr.mxu0 0.0
    %1181 = vmatpush1.xpose.msra.mxu0 0.0
    %1182 = vmatprep.subr.mxu0 0.0
    %1183 = vmatpush1.xpose.msra.mxu0 0.0
    %1184 = vmatprep.subr.mxu0 0.0
    %1185 = vmatpush1.xpose.msra.mxu0 0.0
    %1186 = vmatprep.subr.mxu0 0.0
    %1187 = vmatpush1.xpose.msra.mxu0 0.0
    %1188 = vmatprep.subr.mxu0 0.0
    %1189 = vmatpush1.xpose.msra.mxu0 0.0
    %1190 = vmatprep.subr.mxu0 0.0
    %1191 = vmatpush1.xpose.msra.mxu0 0.0
    %1192 = vmatprep.subr.mxu0 0.0
    %1193 = vmatpush1.xpose.msra.mxu0 0.0
    %1194 = vmatprep.subr.mxu0 0.0
    %1195 = vmatpush1.xpose.msra.mxu0 0.0
    %1196 = vmatprep.subr.mxu0 0.0
    %1197 = vmatpush1.xpose.msra.mxu0 0.0
    %1198 = vmatprep.subr.mxu0 0.0
    %1199 = vmatpush1.xpose.msra.mxu0 0.0
    %1200 = vmatprep.subr.mxu0 0.0
    %1201 = vmatpush1.xpose.msra.mxu0 0.0
    %1202 = vmatprep.subr.mxu0 0.0
    %1203 = vmatpush1.xpose.msra.mxu0 0.0
    %1204 = vmatprep.subr.mxu0 0.0
    %1205 = vmatpush1.xpose.msra.mxu0 0.0
    %1206 = vmatprep.subr.mxu0 0.0
    %1207 = vmatpush1.xpose.msra.mxu0 0.0
    %1208 = vmatprep.subr.mxu0 0.0
    %1209 = vmatpush1.xpose.msra.mxu0 0.0
    %1210 = vmatprep.mubr.f32.mxu0 0.0
    %1211 = vmatmul.mubr.f32.gmra.mrb[0].mxu0 %v1142
    %v1212 = vpop.f32.mrb[0].mxu0
    %v1213 = vadd.f32 %v38, %v1212
    %v1214 = vpop.f32.mrb[0].mxu0
    %1215 = vdwg.mxu0
    %v1216 = vsel %vm133, %v1213, -inf
    %1217 = vmax.xlane.f32.xlu0 %v1216
    %v1218 = vpop.xlane.xlu0 %1217
    %v1219 = vsub.f32 %v1213, %v1218
    %v1220 = vmul.f32 %v1219, 1.442695
    %v1221 = vpow.pop %v1220
    %v1222 = vsel %vm133, %v1221, 0.0
    %1223 = vadd.xlane.f32.xlu0 %v1222
    %v1224 = vpop.xlane.xlu0 %1223
    %v1225 = vrcp.pop %v1224
    %v1226 = vmul.f32 %v1221, %v1225
    %1227 = vrot.lane.b32.xlu0 %v125, 48
    %v1228 = vpop.permute.xlu0 %1227
    %v1231 = vsel %vm133, %v1226, 0
    %1233 = vmatprep.subr.mxu0 0.0
    %1234 = vmatpush1.msra.mxu0 %v1228
    %1235 = vmatprep.subr.mxu0 0.0
    %1236 = vmatpush1.msra.mxu0 0.0
    %1237 = vmatprep.subr.mxu0 0.0
    %1238 = vmatpush1.msra.mxu0 0.0
    %1239 = vmatprep.subr.mxu0 0.0
    %1240 = vmatpush1.msra.mxu0 0.0
    %1241 = vmatprep.subr.mxu0 0.0
    %1242 = vmatpush1.msra.mxu0 0.0
    %1243 = vmatprep.subr.mxu0 0.0
    %1244 = vmatpush1.msra.mxu0 0.0
    %1245 = vmatprep.subr.mxu0 0.0
    %1246 = vmatpush1.msra.mxu0 0.0
    %1247 = vmatprep.subr.mxu0 0.0
    %1248 = vmatpush1.msra.mxu0 0.0
    %1249 = vmatprep.subr.mxu0 0.0
    %1250 = vmatpush1.msra.mxu0 0.0
    %1251 = vmatprep.subr.mxu0 0.0
    %1252 = vmatpush1.msra.mxu0 0.0
    %1253 = vmatprep.subr.mxu0 0.0
    %1254 = vmatpush1.msra.mxu0 0.0
    %1255 = vmatprep.subr.mxu0 0.0
    %1256 = vmatpush1.msra.mxu0 0.0
    %1257 = vmatprep.subr.mxu0 0.0
    %1258 = vmatpush1.msra.mxu0 0.0
    %1259 = vmatprep.subr.mxu0 0.0
    %1260 = vmatpush1.msra.mxu0 0.0
    %1261 = vmatprep.subr.mxu0 0.0
    %1262 = vmatpush1.msra.mxu0 0.0
    %1263 = vmatprep.subr.mxu0 0.0
    %1264 = vmatpush1.msra.mxu0 0.0
    %1265 = vmatprep.subr.mxu0 0.0
    %1266 = vmatpush1.msra.mxu0 0.0
    %1267 = vmatprep.subr.mxu0 0.0
    %1268 = vmatpush1.msra.mxu0 0.0
    %1269 = vmatprep.subr.mxu0 0.0
    %1270 = vmatpush1.msra.mxu0 0.0
    %1271 = vmatprep.subr.mxu0 0.0
    %1272 = vmatpush1.msra.mxu0 0.0
    %1273 = vmatprep.subr.mxu0 0.0
    %1274 = vmatpush1.msra.mxu0 0.0
    %1275 = vmatprep.subr.mxu0 0.0
    %1276 = vmatpush1.msra.mxu0 0.0
    %1277 = vmatprep.subr.mxu0 0.0
    %1278 = vmatpush1.msra.mxu0 0.0
    %1279 = vmatprep.subr.mxu0 0.0
    %1280 = vmatpush1.msra.mxu0 0.0
    %1281 = vmatprep.subr.mxu0 0.0
    %1282 = vmatpush1.msra.mxu0 0.0
    %1283 = vmatprep.subr.mxu0 0.0
    %1284 = vmatpush1.msra.mxu0 0.0
    %1285 = vmatprep.subr.mxu0 0.0
    %1286 = vmatpush1.msra.mxu0 0.0
    %1287 = vmatprep.subr.mxu0 0.0
    %1288 = vmatpush1.msra.mxu0 0.0
    %1289 = vmatprep.subr.mxu0 0.0
    %1290 = vmatpush1.msra.mxu0 0.0
    %1291 = vmatprep.subr.mxu0 0.0
    %1292 = vmatpush1.msra.mxu0 0.0
    %1293 = vmatprep.subr.mxu0 0.0
    %1294 = vmatpush1.msra.mxu0 0.0
    %1295 = vmatprep.subr.mxu0 0.0
    %1296 = vmatpush1.msra.mxu0 0.0
    %1297 = vmatprep.mubr.f32.mxu0 0.0
    %1298 = vmatmul.mubr.f32.gmra.mrb[0].mxu0 %v1231
    %v1299 = vpop.f32.mrb[0].mxu0
    %v1300 = vadd.f32 0.0, %v1299
    %v1301 = vpop.f32.mrb[0].mxu0
    %1302 = vdwg.mxu0
    %1303 = vrot.lane.b32.xlu0 %v129, 104
    %v1304 = vpop.permute.xlu0 %1303
    %1305 = vrot.lane.b32.xlu0 %v125, 72
    %v1306 = vpop.permute.xlu0 %1305
    %v1307 = vsel %vm133, %v1304, 0
    %v1309 = vsel %vm133, %v1306, 0
    %1311 = vmatprep.subr.mxu0 0.0
    %1312 = vmatpush1.xpose.msra.mxu0 %v1309
    %1313 = vmatprep.subr.mxu0 0.0
    %1314 = vmatpush1.xpose.msra.mxu0 0.0
    %1315 = vmatprep.subr.mxu0 0.0
    %1316 = vmatpush1.xpose.msra.mxu0 0.0
    %1317 = vmatprep.subr.mxu0 0.0
    %1318 = vmatpush1.xpose.msra.mxu0 0.0
    %1319 = vmatprep.subr.mxu0 0.0
    %1320 = vmatpush1.xpose.msra.mxu0 0.0
    %1321 = vmatprep.subr.mxu0 0.0
    %1322 = vmatpush1.xpose.msra.mxu0 0.0
    %1323 = vmatprep.subr.mxu0 0.0
    %1324 = vmatpush1.xpose.msra.mxu0 0.0
    %1325 = vmatprep.subr.mxu0 0.0
    %1326 = vmatpush1.xpose.msra.mxu0 0.0
    %1327 = vmatprep.subr.mxu0 0.0
    %1328 = vmatpush1.xpose.msra.mxu0 0.0
    %1329 = vmatprep.subr.mxu0 0.0
    %1330 = vmatpush1.xpose.msra.mxu0 0.0
    %1331 = vmatprep.subr.mxu0 0.0
    %1332 = vmatpush1.xpose.msra.mxu0 0.0
    %1333 = vmatprep.subr.mxu0 0.0
    %1334 = vmatpush1.xpose.msra.mxu0 0.0
    %1335 = vmatprep.subr.mxu0 0.0
    %1336 = vmatpush1.xpose.msra.mxu0 0.0
    %1337 = vmatprep.subr.mxu0 0.0
    %1338 = vmatpush1.xpose.msra.mxu0 0.0
    %1339 = vmatprep.subr.mxu0 0.0
    %1340 = vmatpush1.xpose.msra.mxu0 0.0
    %1341 = vmatprep.subr.mxu0 0.0
    %1342 = vmatpush1.xpose.msra.mxu0 0.0
    %1343 = vmatprep.subr.mxu0 0.0
    %1344 = vmatpush1.xpose.msra.mxu0 0.0
    %1345 = vmatprep.subr.mxu0 0.0
    %1346 = vmatpush1.xpose.msra.mxu0 0.0
    %1347 = vmatprep.subr.mxu0 0.0
    %1348 = vmatpush1.xpose.msra.mxu0 0.0
    %1349 = vmatprep.subr.mxu0 0.0
    %1350 = vmatpush1.xpose.msra.mxu0 0.0
    %1351 = vmatprep.subr.mxu0 0.0
    %1352 = vmatpush1.xpose.msra.mxu0 0.0
    %1353 = vmatprep.subr.mxu0 0.0
    %1354 = vmatpush1.xpose.msra.mxu0 0.0
    %1355 = vmatprep.subr.mxu0 0.0
    %1356 = vmatpush1.xpose.msra.mxu0 0.0
    %1357 = vmatprep.subr.mxu0 0.0
    %1358 = vmatpush1.xpose.msra.mxu0 0.0
    %1359 = vmatprep.subr.mxu0 0.0
    %1360 = vmatpush1.xpose.msra.mxu0 0.0
    %1361 = vmatprep.subr.mxu0 0.0
    %1362 = vmatpush1.xpose.msra.mxu0 0.0
    %1363 = vmatprep.subr.mxu0 0.0
    %1364 = vmatpush1.xpose.msra.mxu0 0.0
    %1365 = vmatprep.subr.mxu0 0.0
    %1366 = vmatpush1.xpose.msra.mxu0 0.0
    %1367 = vmatprep.subr.mxu0 0.0
    %1368 = vmatpush1.xpose.msra.mxu0 0.0
    %1369 = vmatprep.subr.mxu0 0.0
    %1370 = vmatpush1.xpose.msra.mxu0 0.0
    %1371 = vmatprep.subr.mxu0 0.0
    %1372 = vmatpush1.xpose.msra.mxu0 0.0
    %1373 = vmatprep.subr.mxu0 0.0
    %1374 = vmatpush1.xpose.msra.mxu0 0.0
    %1375 = vmatprep.mubr.f32.mxu0 0.0
    %1376 = vmatmul.mubr.f32.gmra.mrb[0].mxu0 %v1307
    %v1377 = vpop.f32.mrb[0].mxu0
    %v1378 = vadd.f32 %v38, %v1377
    %v1379 = vpop.f32.mrb[0].mxu0
    %1380 = vdwg.mxu0
    %v1381 = vsel %vm133, %v1378, -inf
    %1382 = vmax.xlane.f32.xlu0 %v1381
    %v1383 = vpop.xlane.xlu0 %1382
    %v1384 = vsub.f32 %v1378, %v1383
    %v1385 = vmul.f32 %v1384, 1.442695
    %v1386 = vpow.pop %v1385
    %v1387 = vsel %vm133, %v1386, 0.0
    %1388 = vadd.xlane.f32.xlu0 %v1387
    %v1389 = vpop.xlane.xlu0 %1388
    %v1390 = vrcp.pop %v1389
    %v1391 = vmul.f32 %v1386, %v1390
    %1392 = vrot.lane.b32.xlu0 %v125, 40
    %v1393 = vpop.permute.xlu0 %1392
    %v1396 = vsel %vm133, %v1391, 0
    %1398 = vmatprep.subr.mxu0 0.0
    %1399 = vmatpush1.msra.mxu0 %v1393
    %1400 = vmatprep.subr.mxu0 0.0
    %1401 = vmatpush1.msra.mxu0 0.0
    %1402 = vmatprep.subr.mxu0 0.0
    %1403 = vmatpush1.msra.mxu0 0.0
    %1404 = vmatprep.subr.mxu0 0.0
    %1405 = vmatpush1.msra.mxu0 0.0
    %1406 = vmatprep.subr.mxu0 0.0
    %1407 = vmatpush1.msra.mxu0 0.0
    %1408 = vmatprep.subr.mxu0 0.0
    %1409 = vmatpush1.msra.mxu0 0.0
    %1410 = vmatprep.subr.mxu0 0.0
    %1411 = vmatpush1.msra.mxu0 0.0
    %1412 = vmatprep.subr.mxu0 0.0
    %1413 = vmatpush1.msra.mxu0 0.0
    %1414 = vmatprep.subr.mxu0 0.0
    %1415 = vmatpush1.msra.mxu0 0.0
    %1416 = vmatprep.subr.mxu0 0.0
    %1417 = vmatpush1.msra.mxu0 0.0
    %1418 = vmatprep.subr.mxu0 0.0
    %1419 = vmatpush1.msra.mxu0 0.0
    %1420 = vmatprep.subr.mxu0 0.0
    %1421 = vmatpush1.msra.mxu0 0.0
    %1422 = vmatprep.subr.mxu0 0.0
    %1423 = vmatpush1.msra.mxu0 0.0
    %1424 = vmatprep.subr.mxu0 0.0
    %1425 = vmatpush1.msra.mxu0 0.0
    %1426 = vmatprep.subr.mxu0 0.0
    %1427 = vmatpush1.msra.mxu0 0.0
    %1428 = vmatprep.subr.mxu0 0.0
    %1429 = vmatpush1.msra.mxu0 0.0
    %1430 = vmatprep.subr.mxu0 0.0
    %1431 = vmatpush1.msra.mxu0 0.0
    %1432 = vmatprep.subr.mxu0 0.0
    %1433 = vmatpush1.msra.mxu0 0.0
    %1434 = vmatprep.subr.mxu0 0.0
    %1435 = vmatpush1.msra.mxu0 0.0
    %1436 = vmatprep.subr.mxu0 0.0
    %1437 = vmatpush1.msra.mxu0 0.0
    %1438 = vmatprep.subr.mxu0 0.0
    %1439 = vmatpush1.msra.mxu0 0.0
    %1440 = vmatprep.subr.mxu0 0.0
    %1441 = vmatpush1.msra.mxu0 0.0
    %1442 = vmatprep.subr.mxu0 0.0
    %1443 = vmatpush1.msra.mxu0 0.0
    %1444 = vmatprep.subr.mxu0 0.0
    %1445 = vmatpush1.msra.mxu0 0.0
    %1446 = vmatprep.subr.mxu0 0.0
    %1447 = vmatpush1.msra.mxu0 0.0
    %1448 = vmatprep.subr.mxu0 0.0
    %1449 = vmatpush1.msra.mxu0 0.0
    %1450 = vmatprep.subr.mxu0 0.0
    %1451 = vmatpush1.msra.mxu0 0.0
    %1452 = vmatprep.subr.mxu0 0.0
    %1453 = vmatpush1.msra.mxu0 0.0
    %1454 = vmatprep.subr.mxu0 0.0
    %1455 = vmatpush1.msra.mxu0 0.0
    %1456 = vmatprep.subr.mxu0 0.0
    %1457 = vmatpush1.msra.mxu0 0.0
    %1458 = vmatprep.subr.mxu0 0.0
    %1459 = vmatpush1.msra.mxu0 0.0
    %1460 = vmatprep.subr.mxu0 0.0
    %1461 = vmatpush1.msra.mxu0 0.0
    %1462 = vmatprep.mubr.f32.mxu0 0.0
    %1463 = vmatmul.mubr.f32.gmra.mrb[0].mxu0 %v1396
    %v1464 = vpop.f32.mrb[0].mxu0
    %v1465 = vadd.f32 0.0, %v1464
    %v1466 = vpop.f32.mrb[0].mxu0
    %1467 = vdwg.mxu0
    %1469 = vrot.lane.b32.xlu0 %v1135, 8
    %v1470 = vpop.permute.xlu0 %1469
    %1473 = vrot.lane.b32.xlu0 %v1300, 16
    %v1474 = vpop.permute.xlu0 %1473
    %1477 = vrot.lane.b32.xlu0 %v1465, 24
    %v1478 = vpop.permute.xlu0 %1477
    %v1480 = vsel %vm133, %v970, %v1470
    %v1481 = vsel %vm804, %v1480, %v1474
    %v1482 = vsel %vm806, %v1481, %v1478
    %v1483 = vlaneseq
    %v1484 = vshrl.u32 %v1483, 7
    %v1485 = vsub.s32 0, %v1484
    %v1486 = vrot.slane %v40, %v1485
    %1491 = vrot.lane.b32.xlu0 %v42, 32
    %v1492 = vpop.permute.xlu0 %1491
    %1493 = vrot.lane.b32.xlu0 %v43, 32
    %v1494 = vpop.permute.xlu0 %1493
    %1495 = vrot.lane.b32.xlu0 %v44, 32
    %v1496 = vpop.permute.xlu0 %1495
    %1497 = vrot.lane.b32.xlu0 %v45, 32
    %v1498 = vpop.permute.xlu0 %1497
    %v1504 = vsel %vm46, %v807, 0
    %v1507 = vsel %vm46, %v1482, 0
    %1509 = vmatprep.subr.mxu0 0.0
    %1510 = vmatpush1.msra.mxu0 %v1492
    %1511 = vmatprep.subr.mxu0 0.0
    %1512 = vmatpush1.msra.mxu0 %v1494
    %1513 = vmatprep.subr.mxu0 0.0
    %1514 = vmatpush1.msra.mxu0 %v1496
    %1515 = vmatprep.subr.mxu0 0.0
    %1516 = vmatpush1.msra.mxu0 %v1498
    %1517 = vmatprep.subr.mxu0 0.0
    %1518 = vmatpush1.msra.mxu0 0.0
    %1519 = vmatprep.subr.mxu0 0.0
    %1520 = vmatpush1.msra.mxu0 0.0
    %1521 = vmatprep.subr.mxu0 0.0
    %1522 = vmatpush1.msra.mxu0 0.0
    %1523 = vmatprep.subr.mxu0 0.0
    %1524 = vmatpush1.msra.mxu0 0.0
    %1525 = vmatprep.subr.mxu0 0.0
    %1526 = vmatpush1.msra.mxu0 0.0
    %1527 = vmatprep.subr.mxu0 0.0
    %1528 = vmatpush1.msra.mxu0 0.0
    %1529 = vmatprep.subr.mxu0 0.0
    %1530 = vmatpush1.msra.mxu0 0.0
    %1531 = vmatprep.subr.mxu0 0.0
    %1532 = vmatpush1.msra.mxu0 0.0
    %1533 = vmatprep.subr.mxu0 0.0
    %1534 = vmatpush1.msra.mxu0 0.0
    %1535 = vmatprep.subr.mxu0 0.0
    %1536 = vmatpush1.msra.mxu0 0.0
    %1537 = vmatprep.subr.mxu0 0.0
    %1538 = vmatpush1.msra.mxu0 0.0
    %1539 = vmatprep.subr.mxu0 0.0
    %1540 = vmatpush1.msra.mxu0 0.0
    %1541 = vmatprep.subr.mxu0 0.0
    %1542 = vmatpush1.msra.mxu0 0.0
    %1543 = vmatprep.subr.mxu0 0.0
    %1544 = vmatpush1.msra.mxu0 0.0
    %1545 = vmatprep.subr.mxu0 0.0
    %1546 = vmatpush1.msra.mxu0 0.0
    %1547 = vmatprep.subr.mxu0 0.0
    %1548 = vmatpush1.msra.mxu0 0.0
    %1549 = vmatprep.subr.mxu0 0.0
    %1550 = vmatpush1.msra.mxu0 0.0
    %1551 = vmatprep.subr.mxu0 0.0
    %1552 = vmatpush1.msra.mxu0 0.0
    %1553 = vmatprep.subr.mxu0 0.0
    %1554 = vmatpush1.msra.mxu0 0.0
    %1555 = vmatprep.subr.mxu0 0.0
    %1556 = vmatpush1.msra.mxu0 0.0
    %1557 = vmatprep.subr.mxu0 0.0
    %1558 = vmatpush1.msra.mxu0 0.0
    %1559 = vmatprep.subr.mxu0 0.0
    %1560 = vmatpush1.msra.mxu0 0.0
    %1561 = vmatprep.subr.mxu0 0.0
    %1562 = vmatpush1.msra.mxu0 0.0
    %1563 = vmatprep.subr.mxu0 0.0
    %1564 = vmatpush1.msra.mxu0 0.0
    %1565 = vmatprep.subr.mxu0 0.0
    %1566 = vmatpush1.msra.mxu0 0.0
    %1567 = vmatprep.subr.mxu0 0.0
    %1568 = vmatpush1.msra.mxu0 0.0
    %1569 = vmatprep.subr.mxu0 0.0
    %1570 = vmatpush1.msra.mxu0 0.0
    %1571 = vmatprep.subr.mxu0 0.0
    %1572 = vmatpush1.msra.mxu0 0.0
    %1573 = vmatprep.mubr.f32.mxu0 0.0
    %1574 = vmatmul.mubr.f32.gmra.mrb[0].mxu0 %v1504
    %v1575 = vpop.f32.mrb[0].mxu0
    %v1576 = vadd.f32 %v1486, %v1575
    %v1577 = vpop.f32.mrb[0].mxu0
    %1578 = vmatprep.mubr.f32.mxu0 0.0
    %1579 = vmatmul.mubr.f32.gmra.mrb[0].mxu0 %v1507
    %v1580 = vpop.f32.mrb[0].mxu0
    %v1581 = vadd.f32 %v1486, %v1580
    %v1582 = vpop.f32.mrb[0].mxu0
    %1583 = vdwg.mxu0
    %v1584 = vadd.f32 %v1576, %v30
    %v1585 = vadd.f32 %v1581, %v33
    %v1586 = vsel %vm46, %v1584, 0.0
    %1587 = vadd.xlane.f32.xlu0 %v1586
    %v1588 = vpop.xlane.xlu0 %1587
    %v1589 = vsel %vm46, %v1585, 0.0
    %1590 = vadd.xlane.f32.xlu0 %v1589
    %v1591 = vpop.xlane.xlu0 %1590
    %v1592 = vrcp.pop 32.0
    %v1593 = vmul.f32 %v1588, %v1592
    %v1594 = vmul.f32 %v1591, %v1592
    %v1595 = vsub.f32 %v1584, %v1593
    %v1596 = vsub.f32 %v1585, %v1594
    %v1597 = vmul.f32 %v1595, %v1595
    %v1598 = vmul.f32 %v1596, %v1596
    %v1599 = vsel %vm46, %v1597, 0.0
    %1600 = vadd.xlane.f32.xlu0 %v1599
    %v1601 = vpop.xlane.xlu0 %1600
    %v1602 = vsel %vm46, %v1598, 0.0
    %1603 = vadd.xlane.f32.xlu0 %v1602
    %v1604 = vpop.xlane.xlu0 %1603
    %v1605 = vmul.f32 %v1601, %v1592
    %v1606 = vmul.f32 %v1604, %v1592
    %v1607 = vadd.f32 %v1605, 1e-05
    %v1608 = vadd.f32 %v1606, 1e-05
    %v1609 = vrsqrt.pop %v1607
    %v1610 = vrsqrt.pop %v1608
    %v1611 = vmul.f32 %v1595, %v1609
    %v1612 = vmul.f32 %v1596, %v1610
    %v1613 = vlaneseq
    %v1614 = vshrl.u32 %v1613, 7
    %v1615 = vsub.s32 1, %v1614
    %v1616 = vrot.slane %v40, %v1615
    %v1617 = vmul.f32 %v1611, %v1616
    %v1618 = vmul.f32 %v1612, %v1616
    %v1619 = vlaneseq
    %v1620 = vshrl.u32 %v1619, 7
    %v1621 = vsub.s32 2, %v1620
    %v1622 = vrot.slane %v40, %v1621
    %v1623 = vadd.f32 %v1617, %v1622
    %v1624 = vadd.f32 %v1618, %v1622
    %v1625 = vld [vmem:[%s3] sm:$0xff]
    %v1626 = vld [vmem:[%s3 + $0x8] sm:$0xff]
    %v1627 = vld [vmem:[%s3 + $0x10] sm:$0xff]
    %v1628 = vld [vmem:[%s3 + $0x18] sm:$0xff]
    %v1630 = vsel %vm46, %v1623, 0
    %v1633 = vsel %vm46, %v1624, 0
    %1635 = vmatprep.subr.mxu0 0.0
    %1636 = vmatpush1.msra.mxu0 %v1625
    %1637 = vmatprep.subr.mxu0 0.0
    %1638 = vmatpush1.msra.mxu0 %v1626
    %1639 = vmatprep.subr.mxu0 0.0
    %1640 = vmatpush1.msra.mxu0 %v1627
    %1641 = vmatprep.subr.mxu0 0.0
    %1642 = vmatpush1.msra.mxu0 %v1628
    %1643 = vmatprep.subr.mxu0 0.0
    %1644 = vmatpush1.msra.mxu0 0.0
    %1645 = vmatprep.subr.mxu0 0.0
    %1646 = vmatpush1.msra.mxu0 0.0
    %1647 = vmatprep.subr.mxu0 0.0
    %1648 = vmatpush1.msra.mxu0 0.0
    %1649 = vmatprep.subr.mxu0 0.0
    %1650 = vmatpush1.msra.mxu0 0.0
    %1651 = vmatprep.subr.mxu0 0.0
    %1652 = vmatpush1.msra.mxu0 0.0
    %1653 = vmatprep.subr.mxu0 0.0
    %1654 = vmatpush1.msra.mxu0 0.0
    %1655 = vmatprep.subr.mxu0 0.0
    %1656 = vmatpush1.msra.mxu0 0.0
    %1657 = vmatprep.subr.mxu0 0.0
    %1658 = vmatpush1.msra.mxu0 0.0
    %1659 = vmatprep.subr.mxu0 0.0
    %1660 = vmatpush1.msra.mxu0 0.0
    %1661 = vmatprep.subr.mxu0 0.0
    %1662 = vmatpush1.msra.mxu0 0.0
    %1663 = vmatprep.subr.mxu0 0.0
    %1664 = vmatpush1.msra.mxu0 0.0
    %1665 = vmatprep.subr.mxu0 0.0
    %1666 = vmatpush1.msra.mxu0 0.0
    %1667 = vmatprep.subr.mxu0 0.0
    %1668 = vmatpush1.msra.mxu0 0.0
    %1669 = vmatprep.subr.mxu0 0.0
    %1670 = vmatpush1.msra.mxu0 0.0
    %1671 = vmatprep.subr.mxu0 0.0
    %1672 = vmatpush1.msra.mxu0 0.0
    %1673 = vmatprep.subr.mxu0 0.0
    %1674 = vmatpush1.msra.mxu0 0.0
    %1675 = vmatprep.subr.mxu0 0.0
    %1676 = vmatpush1.msra.mxu0 0.0
    %1677 = vmatprep.subr.mxu0 0.0
    %1678 = vmatpush1.msra.mxu0 0.0
    %1679 = vmatprep.subr.mxu0 0.0
    %1680 = vmatpush1.msra.mxu0 0.0
    %1681 = vmatprep.subr.mxu0 0.0
    %1682 = vmatpush1.msra.mxu0 0.0
    %1683 = vmatprep.subr.mxu0 0.0
    %1684 = vmatpush1.msra.mxu0 0.0
    %1685 = vmatprep.subr.mxu0 0.0
    %1686 = vmatpush1.msra.mxu0 0.0
    %1687 = vmatprep.subr.mxu0 0.0
    %1688 = vmatpush1.msra.mxu0 0.0
    %1689 = vmatprep.subr.mxu0 0.0
    %1690 = vmatpush1.msra.mxu0 0.0
    %1691 = vmatprep.subr.mxu0 0.0
    %1692 = vmatpush1.msra.mxu0 0.0
    %1693 = vmatprep.subr.mxu0 0.0
    %1694 = vmatpush1.msra.mxu0 0.0
    %1695 = vmatprep.subr.mxu0 0.0
    %1696 = vmatpush1.msra.mxu0 0.0
    %1697 = vmatprep.subr.mxu0 0.0
    %1698 = vmatpush1.msra.mxu0 0.0
    %1699 = vmatprep.mubr.f32.mxu0 0.0
    %1700 = vmatmul.mubr.f32.gmra.mrb[0].mxu0 %v1630
    %v1701 = vpop.f32.mrb[0].mxu0
    %v1702 = vadd.f32 0.0, %v1701
    %v1703 = vpop.f32.mrb[0].mxu0
    %1704 = vmatprep.mubr.f32.mxu0 0.0
    %1705 = vmatmul.mubr.f32.gmra.mrb[0].mxu0 %v1633
    %v1706 = vpop.f32.mrb[0].mxu0
    %v1707 = vadd.f32 0.0, %v1706
    %v1708 = vpop.f32.mrb[0].mxu0
    %1709 = vdwg.mxu0
    %v1710 = vmul.f32 %v1702, 0.35355338
    %v1711 = vmul.f32 %v1707, 0.35355338
    %1716 = vrot.lane.b32.xlu0 %v1625, 96
    %v1717 = vpop.permute.xlu0 %1716
    %1718 = vrot.lane.b32.xlu0 %v1626, 96
    %v1719 = vpop.permute.xlu0 %1718
    %1720 = vrot.lane.b32.xlu0 %v1627, 96
    %v1721 = vpop.permute.xlu0 %1720
    %1722 = vrot.lane.b32.xlu0 %v1628, 96
    %v1723 = vpop.permute.xlu0 %1722
    %v1729 = vsel %vm46, %v32, 0
    %v1732 = vsel %vm46, %v35, 0
    %1734 = vmatprep.subr.mxu0 0.0
    %1735 = vmatpush1.msra.mxu0 %v1717
    %1736 = vmatprep.subr.mxu0 0.0
    %1737 = vmatpush1.msra.mxu0 %v1719
    %1738 = vmatprep.subr.mxu0 0.0
    %1739 = vmatpush1.msra.mxu0 %v1721
    %1740 = vmatprep.subr.mxu0 0.0
    %1741 = vmatpush1.msra.mxu0 %v1723
    %1742 = vmatprep.subr.mxu0 0.0
    %1743 = vmatpush1.msra.mxu0 0.0
    %1744 = vmatprep.subr.mxu0 0.0
    %1745 = vmatpush1.msra.mxu0 0.0
    %1746 = vmatprep.subr.mxu0 0.0
    %1747 = vmatpush1.msra.mxu0 0.0
    %1748 = vmatprep.subr.mxu0 0.0
    %1749 = vmatpush1.msra.mxu0 0.0
    %1750 = vmatprep.subr.mxu0 0.0
    %1751 = vmatpush1.msra.mxu0 0.0
    %1752 = vmatprep.subr.mxu0 0.0
    %1753 = vmatpush1.msra.mxu0 0.0
    %1754 = vmatprep.subr.mxu0 0.0
    %1755 = vmatpush1.msra.mxu0 0.0
    %1756 = vmatprep.subr.mxu0 0.0
    %1757 = vmatpush1.msra.mxu0 0.0
    %1758 = vmatprep.subr.mxu0 0.0
    %1759 = vmatpush1.msra.mxu0 0.0
    %1760 = vmatprep.subr.mxu0 0.0
    %1761 = vmatpush1.msra.mxu0 0.0
    %1762 = vmatprep.subr.mxu0 0.0
    %1763 = vmatpush1.msra.mxu0 0.0
    %1764 = vmatprep.subr.mxu0 0.0
    %1765 = vmatpush1.msra.mxu0 0.0
    %1766 = vmatprep.subr.mxu0 0.0
    %1767 = vmatpush1.msra.mxu0 0.0
    %1768 = vmatprep.subr.mxu0 0.0
    %1769 = vmatpush1.msra.mxu0 0.0
    %1770 = vmatprep.subr.mxu0 0.0
    %1771 = vmatpush1.msra.mxu0 0.0
    %1772 = vmatprep.subr.mxu0 0.0
    %1773 = vmatpush1.msra.mxu0 0.0
    %1774 = vmatprep.subr.mxu0 0.0
    %1775 = vmatpush1.msra.mxu0 0.0
    %1776 = vmatprep.subr.mxu0 0.0
    %1777 = vmatpush1.msra.mxu0 0.0
    %1778 = vmatprep.subr.mxu0 0.0
    %1779 = vmatpush1.msra.mxu0 0.0
    %1780 = vmatprep.subr.mxu0 0.0
    %1781 = vmatpush1.msra.mxu0 0.0
    %1782 = vmatprep.subr.mxu0 0.0
    %1783 = vmatpush1.msra.mxu0 0.0
    %1784 = vmatprep.subr.mxu0 0.0
    %1785 = vmatpush1.msra.mxu0 0.0
    %1786 = vmatprep.subr.mxu0 0.0
    %1787 = vmatpush1.msra.mxu0 0.0
    %1788 = vmatprep.subr.mxu0 0.0
    %1789 = vmatpush1.msra.mxu0 0.0
    %1790 = vmatprep.subr.mxu0 0.0
    %1791 = vmatpush1.msra.mxu0 0.0
    %1792 = vmatprep.subr.mxu0 0.0
    %1793 = vmatpush1.msra.mxu0 0.0
    %1794 = vmatprep.subr.mxu0 0.0
    %1795 = vmatpush1.msra.mxu0 0.0
    %1796 = vmatprep.subr.mxu0 0.0
    %1797 = vmatpush1.msra.mxu0 0.0
    %1798 = vmatprep.mubr.f32.mxu0 0.0
    %1799 = vmatmul.mubr.f32.gmra.mrb[0].mxu0 %v1729
    %v1800 = vpop.f32.mrb[0].mxu0
    %v1801 = vadd.f32 0.0, %v1800
    %v1802 = vpop.f32.mrb[0].mxu0
    %1803 = vmatprep.mubr.f32.mxu0 0.0
    %1804 = vmatmul.mubr.f32.gmra.mrb[0].mxu0 %v1732
    %v1805 = vpop.f32.mrb[0].mxu0
    %v1806 = vadd.f32 0.0, %v1805
    %v1807 = vpop.f32.mrb[0].mxu0
    %1808 = vdwg.mxu0
    %1809 = vrot.lane.b32.xlu0 %v1625, 64
    %v1810 = vpop.permute.xlu0 %1809
    %1811 = vrot.lane.b32.xlu0 %v1626, 64
    %v1812 = vpop.permute.xlu0 %1811
    %1813 = vrot.lane.b32.xlu0 %v1627, 64
    %v1814 = vpop.permute.xlu0 %1813
    %1815 = vrot.lane.b32.xlu0 %v1628, 64
    %v1816 = vpop.permute.xlu0 %1815
    %v1822 = vsel %vm46, %v31, 0
    %v1825 = vsel %vm46, %v34, 0
    %1827 = vmatprep.subr.mxu0 0.0
    %1828 = vmatpush1.msra.mxu0 %v1810
    %1829 = vmatprep.subr.mxu0 0.0
    %1830 = vmatpush1.msra.mxu0 %v1812
    %1831 = vmatprep.subr.mxu0 0.0
    %1832 = vmatpush1.msra.mxu0 %v1814
    %1833 = vmatprep.subr.mxu0 0.0
    %1834 = vmatpush1.msra.mxu0 %v1816
    %1835 = vmatprep.subr.mxu0 0.0
    %1836 = vmatpush1.msra.mxu0 0.0
    %1837 = vmatprep.subr.mxu0 0.0
    %1838 = vmatpush1.msra.mxu0 0.0
    %1839 = vmatprep.subr.mxu0 0.0
    %1840 = vmatpush1.msra.mxu0 0.0
    %1841 = vmatprep.subr.mxu0 0.0
    %1842 = vmatpush1.msra.mxu0 0.0
    %1843 = vmatprep.subr.mxu0 0.0
    %1844 = vmatpush1.msra.mxu0 0.0
    %1845 = vmatprep.subr.mxu0 0.0
    %1846 = vmatpush1.msra.mxu0 0.0
    %1847 = vmatprep.subr.mxu0 0.0
    %1848 = vmatpush1.msra.mxu0 0.0
    %1849 = vmatprep.subr.mxu0 0.0
    %1850 = vmatpush1.msra.mxu0 0.0
    %1851 = vmatprep.subr.mxu0 0.0
    %1852 = vmatpush1.msra.mxu0 0.0
    %1853 = vmatprep.subr.mxu0 0.0
    %1854 = vmatpush1.msra.mxu0 0.0
    %1855 = vmatprep.subr.mxu0 0.0
    %1856 = vmatpush1.msra.mxu0 0.0
    %1857 = vmatprep.subr.mxu0 0.0
    %1858 = vmatpush1.msra.mxu0 0.0
    %1859 = vmatprep.subr.mxu0 0.0
    %1860 = vmatpush1.msra.mxu0 0.0
    %1861 = vmatprep.subr.mxu0 0.0
    %1862 = vmatpush1.msra.mxu0 0.0
    %1863 = vmatprep.subr.mxu0 0.0
    %1864 = vmatpush1.msra.mxu0 0.0
    %1865 = vmatprep.subr.mxu0 0.0
    %1866 = vmatpush1.msra.mxu0 0.0
    %1867 = vmatprep.subr.mxu0 0.0
    %1868 = vmatpush1.msra.mxu0 0.0
    %1869 = vmatprep.subr.mxu0 0.0
    %1870 = vmatpush1.msra.mxu0 0.0
    %1871 = vmatprep.subr.mxu0 0.0
    %1872 = vmatpush1.msra.mxu0 0.0
    %1873 = vmatprep.subr.mxu0 0.0
    %1874 = vmatpush1.msra.mxu0 0.0
    %1875 = vmatprep.subr.mxu0 0.0
    %1876 = vmatpush1.msra.mxu0 0.0
    %1877 = vmatprep.subr.mxu0 0.0
    %1878 = vmatpush1.msra.mxu0 0.0
    %1879 = vmatprep.subr.mxu0 0.0
    %1880 = vmatpush1.msra.mxu0 0.0
    %1881 = vmatprep.subr.mxu0 0.0
    %1882 = vmatpush1.msra.mxu0 0.0
    %1883 = vmatprep.subr.mxu0 0.0
    %1884 = vmatpush1.msra.mxu0 0.0
    %1885 = vmatprep.subr.mxu0 0.0
    %1886 = vmatpush1.msra.mxu0 0.0
    %1887 = vmatprep.subr.mxu0 0.0
    %1888 = vmatpush1.msra.mxu0 0.0
    %1889 = vmatprep.subr.mxu0 0.0
    %1890 = vmatpush1.msra.mxu0 0.0
    %1891 = vmatprep.mubr.f32.mxu0 0.0
    %1892 = vmatmul.mubr.f32.gmra.mrb[0].mxu0 %v1822
    %v1893 = vpop.f32.mrb[0].mxu0
    %v1894 = vadd.f32 0.0, %v1893
    %v1895 = vpop.f32.mrb[0].mxu0
    %1896 = vmatprep.mubr.f32.mxu0 0.0
    %1897 = vmatmul.mubr.f32.gmra.mrb[0].mxu0 %v1825
    %v1898 = vpop.f32.mrb[0].mxu0
    %v1899 = vadd.f32 0.0, %v1898
    %v1900 = vpop.f32.mrb[0].mxu0
    %1901 = vdwg.mxu0
    %v1903 = vsel %vm133, %v1710, 0
    %v1906 = vsel %vm133, %v1801, 0
    %1908 = vmatprep.subr.mxu0 0.0
    %1909 = vmatpush1.xpose.msra.mxu0 %v1906
    %1910 = vmatprep.subr.mxu0 0.0
    %1911 = vmatpush1.xpose.msra.mxu0 0.0
    %1912 = vmatprep.subr.mxu0 0.0
    %1913 = vmatpush1.xpose.msra.mxu0 0.0
    %1914 = vmatprep.subr.mxu0 0.0
    %1915 = vmatpush1.xpose.msra.mxu0 0.0
    %1916 = vmatprep.subr.mxu0 0.0
    %1917 = vmatpush1.xpose.msra.mxu0 0.0
    %1918 = vmatprep.subr.mxu0 0.0
    %1919 = vmatpush1.xpose.msra.mxu0 0.0
    %1920 = vmatprep.subr.mxu0 0.0
    %1921 = vmatpush1.xpose.msra.mxu0 0.0
    %1922 = vmatprep.subr.mxu0 0.0
    %1923 = vmatpush1.xpose.msra.mxu0 0.0
    %1924 = vmatprep.subr.mxu0 0.0
    %1925 = vmatpush1.xpose.msra.mxu0 0.0
    %1926 = vmatprep.subr.mxu0 0.0
    %1927 = vmatpush1.xpose.msra.mxu0 0.0
    %1928 = vmatprep.subr.mxu0 0.0
    %1929 = vmatpush1.xpose.msra.mxu0 0.0
    %1930 = vmatprep.subr.mxu0 0.0
    %1931 = vmatpush1.xpose.msra.mxu0 0.0
    %1932 = vmatprep.subr.mxu0 0.0
    %1933 = vmatpush1.xpose.msra.mxu0 0.0
    %1934 = vmatprep.subr.mxu0 0.0
    %1935 = vmatpush1.xpose.msra.mxu0 0.0
    %1936 = vmatprep.subr.mxu0 0.0
    %1937 = vmatpush1.xpose.msra.mxu0 0.0
    %1938 = vmatprep.subr.mxu0 0.0
    %1939 = vmatpush1.xpose.msra.mxu0 0.0
    %1940 = vmatprep.subr.mxu0 0.0
    %1941 = vmatpush1.xpose.msra.mxu0 0.0
    %1942 = vmatprep.subr.mxu0 0.0
    %1943 = vmatpush1.xpose.msra.mxu0 0.0
    %1944 = vmatprep.subr.mxu0 0.0
    %1945 = vmatpush1.xpose.msra.mxu0 0.0
    %1946 = vmatprep.subr.mxu0 0.0
    %1947 = vmatpush1.xpose.msra.mxu0 0.0
    %1948 = vmatprep.subr.mxu0 0.0
    %1949 = vmatpush1.xpose.msra.mxu0 0.0
    %1950 = vmatprep.subr.mxu0 0.0
    %1951 = vmatpush1.xpose.msra.mxu0 0.0
    %1952 = vmatprep.subr.mxu0 0.0
    %1953 = vmatpush1.xpose.msra.mxu0 0.0
    %1954 = vmatprep.subr.mxu0 0.0
    %1955 = vmatpush1.xpose.msra.mxu0 0.0
    %1956 = vmatprep.subr.mxu0 0.0
    %1957 = vmatpush1.xpose.msra.mxu0 0.0
    %1958 = vmatprep.subr.mxu0 0.0
    %1959 = vmatpush1.xpose.msra.mxu0 0.0
    %1960 = vmatprep.subr.mxu0 0.0
    %1961 = vmatpush1.xpose.msra.mxu0 0.0
    %1962 = vmatprep.subr.mxu0 0.0
    %1963 = vmatpush1.xpose.msra.mxu0 0.0
    %1964 = vmatprep.subr.mxu0 0.0
    %1965 = vmatpush1.xpose.msra.mxu0 0.0
    %1966 = vmatprep.subr.mxu0 0.0
    %1967 = vmatpush1.xpose.msra.mxu0 0.0
    %1968 = vmatprep.subr.mxu0 0.0
    %1969 = vmatpush1.xpose.msra.mxu0 0.0
    %1970 = vmatprep.subr.mxu0 0.0
    %1971 = vmatpush1.xpose.msra.mxu0 0.0
    %1972 = vmatprep.mubr.f32.mxu0 0.0
    %1973 = vmatmul.mubr.f32.gmra.mrb[0].mxu0 %v1903
    %v1974 = vpop.f32.mrb[0].mxu0
    %v1975 = vadd.f32 %v37, %v1974
    %v1976 = vpop.f32.mrb[0].mxu0
    %1977 = vdwg.mxu0
    %v1978 = vsel %vm133, %v1975, -inf
    %1979 = vmax.xlane.f32.xlu0 %v1978
    %v1980 = vpop.xlane.xlu0 %1979
    %v1981 = vsub.f32 %v1975, %v1980
    %v1982 = vmul.f32 %v1981, 1.442695
    %v1983 = vpow.pop %v1982
    %v1984 = vsel %vm133, %v1983, 0.0
    %1985 = vadd.xlane.f32.xlu0 %v1984
    %v1986 = vpop.xlane.xlu0 %1985
    %v1987 = vrcp.pop %v1986
    %v1988 = vmul.f32 %v1983, %v1987
    %v1990 = vsel %vm133, %v1988, 0
    %1992 = vmatprep.subr.mxu0 0.0
    %1993 = vmatpush1.msra.mxu0 %v1894
    %1994 = vmatprep.subr.mxu0 0.0
    %1995 = vmatpush1.msra.mxu0 0.0
    %1996 = vmatprep.subr.mxu0 0.0
    %1997 = vmatpush1.msra.mxu0 0.0
    %1998 = vmatprep.subr.mxu0 0.0
    %1999 = vmatpush1.msra.mxu0 0.0
    %2000 = vmatprep.subr.mxu0 0.0
    %2001 = vmatpush1.msra.mxu0 0.0
    %2002 = vmatprep.subr.mxu0 0.0
    %2003 = vmatpush1.msra.mxu0 0.0
    %2004 = vmatprep.subr.mxu0 0.0
    %2005 = vmatpush1.msra.mxu0 0.0
    %2006 = vmatprep.subr.mxu0 0.0
    %2007 = vmatpush1.msra.mxu0 0.0
    %2008 = vmatprep.subr.mxu0 0.0
    %2009 = vmatpush1.msra.mxu0 0.0
    %2010 = vmatprep.subr.mxu0 0.0
    %2011 = vmatpush1.msra.mxu0 0.0
    %2012 = vmatprep.subr.mxu0 0.0
    %2013 = vmatpush1.msra.mxu0 0.0
    %2014 = vmatprep.subr.mxu0 0.0
    %2015 = vmatpush1.msra.mxu0 0.0
    %2016 = vmatprep.subr.mxu0 0.0
    %2017 = vmatpush1.msra.mxu0 0.0
    %2018 = vmatprep.subr.mxu0 0.0
    %2019 = vmatpush1.msra.mxu0 0.0
    %2020 = vmatprep.subr.mxu0 0.0
    %2021 = vmatpush1.msra.mxu0 0.0
    %2022 = vmatprep.subr.mxu0 0.0
    %2023 = vmatpush1.msra.mxu0 0.0
    %2024 = vmatprep.subr.mxu0 0.0
    %2025 = vmatpush1.msra.mxu0 0.0
    %2026 = vmatprep.subr.mxu0 0.0
    %2027 = vmatpush1.msra.mxu0 0.0
    %2028 = vmatprep.subr.mxu0 0.0
    %2029 = vmatpush1.msra.mxu0 0.0
    %2030 = vmatprep.subr.mxu0 0.0
    %2031 = vmatpush1.msra.mxu0 0.0
    %2032 = vmatprep.subr.mxu0 0.0
    %2033 = vmatpush1.msra.mxu0 0.0
    %2034 = vmatprep.subr.mxu0 0.0
    %2035 = vmatpush1.msra.mxu0 0.0
    %2036 = vmatprep.subr.mxu0 0.0
    %2037 = vmatpush1.msra.mxu0 0.0
    %2038 = vmatprep.subr.mxu0 0.0
    %2039 = vmatpush1.msra.mxu0 0.0
    %2040 = vmatprep.subr.mxu0 0.0
    %2041 = vmatpush1.msra.mxu0 0.0
    %2042 = vmatprep.subr.mxu0 0.0
    %2043 = vmatpush1.msra.mxu0 0.0
    %2044 = vmatprep.subr.mxu0 0.0
    %2045 = vmatpush1.msra.mxu0 0.0
    %2046 = vmatprep.subr.mxu0 0.0
    %2047 = vmatpush1.msra.mxu0 0.0
    %2048 = vmatprep.subr.mxu0 0.0
    %2049 = vmatpush1.msra.mxu0 0.0
    %2050 = vmatprep.subr.mxu0 0.0
    %2051 = vmatpush1.msra.mxu0 0.0
    %2052 = vmatprep.subr.mxu0 0.0
    %2053 = vmatpush1.msra.mxu0 0.0
    %2054 = vmatprep.subr.mxu0 0.0
    %2055 = vmatpush1.msra.mxu0 0.0
    %2056 = vmatprep.mubr.f32.mxu0 0.0
    %2057 = vmatmul.mubr.f32.gmra.mrb[0].mxu0 %v1990
    %v2058 = vpop.f32.mrb[0].mxu0
    %v2059 = vadd.f32 0.0, %v2058
    %v2060 = vpop.f32.mrb[0].mxu0
    %2061 = vdwg.mxu0
    %2062 = vrot.lane.b32.xlu0 %v1710, 120
    %v2063 = vpop.permute.xlu0 %2062
    %2064 = vrot.lane.b32.xlu0 %v1801, 120
    %v2065 = vpop.permute.xlu0 %2064
    %v2066 = vsel %vm133, %v2063, 0
    %v2068 = vsel %vm133, %v2065, 0
    %2070 = vmatprep.subr.mxu0 0.0
    %2071 = vmatpush1.xpose.msra.mxu0 %v2068
    %2072 = vmatprep.subr.mxu0 0.0
    %2073 = vmatpush1.xpose.msra.mxu0 0.0
    %2074 = vmatprep.subr.mxu0 0.0
    %2075 = vmatpush1.xpose.msra.mxu0 0.0
    %2076 = vmatprep.subr.mxu0 0.0
    %2077 = vmatpush1.xpose.msra.mxu0 0.0
    %2078 = vmatprep.subr.mxu0 0.0
    %2079 = vmatpush1.xpose.msra.mxu0 0.0
    %2080 = vmatprep.subr.mxu0 0.0
    %2081 = vmatpush1.xpose.msra.mxu0 0.0
    %2082 = vmatprep.subr.mxu0 0.0
    %2083 = vmatpush1.xpose.msra.mxu0 0.0
    %2084 = vmatprep.subr.mxu0 0.0
    %2085 = vmatpush1.xpose.msra.mxu0 0.0
    %2086 = vmatprep.subr.mxu0 0.0
    %2087 = vmatpush1.xpose.msra.mxu0 0.0
    %2088 = vmatprep.subr.mxu0 0.0
    %2089 = vmatpush1.xpose.msra.mxu0 0.0
    %2090 = vmatprep.subr.mxu0 0.0
    %2091 = vmatpush1.xpose.msra.mxu0 0.0
    %2092 = vmatprep.subr.mxu0 0.0
    %2093 = vmatpush1.xpose.msra.mxu0 0.0
    %2094 = vmatprep.subr.mxu0 0.0
    %2095 = vmatpush1.xpose.msra.mxu0 0.0
    %2096 = vmatprep.subr.mxu0 0.0
    %2097 = vmatpush1.xpose.msra.mxu0 0.0
    %2098 = vmatprep.subr.mxu0 0.0
    %2099 = vmatpush1.xpose.msra.mxu0 0.0
    %2100 = vmatprep.subr.mxu0 0.0
    %2101 = vmatpush1.xpose.msra.mxu0 0.0
    %2102 = vmatprep.subr.mxu0 0.0
    %2103 = vmatpush1.xpose.msra.mxu0 0.0
    %2104 = vmatprep.subr.mxu0 0.0
    %2105 = vmatpush1.xpose.msra.mxu0 0.0
    %2106 = vmatprep.subr.mxu0 0.0
    %2107 = vmatpush1.xpose.msra.mxu0 0.0
    %2108 = vmatprep.subr.mxu0 0.0
    %2109 = vmatpush1.xpose.msra.mxu0 0.0
    %2110 = vmatprep.subr.mxu0 0.0
    %2111 = vmatpush1.xpose.msra.mxu0 0.0
    %2112 = vmatprep.subr.mxu0 0.0
    %2113 = vmatpush1.xpose.msra.mxu0 0.0
    %2114 = vmatprep.subr.mxu0 0.0
    %2115 = vmatpush1.xpose.msra.mxu0 0.0
    %2116 = vmatprep.subr.mxu0 0.0
    %2117 = vmatpush1.xpose.msra.mxu0 0.0
    %2118 = vmatprep.subr.mxu0 0.0
    %2119 = vmatpush1.xpose.msra.mxu0 0.0
    %2120 = vmatprep.subr.mxu0 0.0
    %2121 = vmatpush1.xpose.msra.mxu0 0.0
    %2122 = vmatprep.subr.mxu0 0.0
    %2123 = vmatpush1.xpose.msra.mxu0 0.0
    %2124 = vmatprep.subr.mxu0 0.0
    %2125 = vmatpush1.xpose.msra.mxu0 0.0
    %2126 = vmatprep.subr.mxu0 0.0
    %2127 = vmatpush1.xpose.msra.mxu0 0.0
    %2128 = vmatprep.subr.mxu0 0.0
    %2129 = vmatpush1.xpose.msra.mxu0 0.0
    %2130 = vmatprep.subr.mxu0 0.0
    %2131 = vmatpush1.xpose.msra.mxu0 0.0
    %2132 = vmatprep.subr.mxu0 0.0
    %2133 = vmatpush1.xpose.msra.mxu0 0.0
    %2134 = vmatprep.mubr.f32.mxu0 0.0
    %2135 = vmatmul.mubr.f32.gmra.mrb[0].mxu0 %v2066
    %v2136 = vpop.f32.mrb[0].mxu0
    %v2137 = vadd.f32 %v37, %v2136
    %v2138 = vpop.f32.mrb[0].mxu0
    %2139 = vdwg.mxu0
    %v2140 = vsel %vm133, %v2137, -inf
    %2141 = vmax.xlane.f32.xlu0 %v2140
    %v2142 = vpop.xlane.xlu0 %2141
    %v2143 = vsub.f32 %v2137, %v2142
    %v2144 = vmul.f32 %v2143, 1.442695
    %v2145 = vpow.pop %v2144
    %v2146 = vsel %vm133, %v2145, 0.0
    %2147 = vadd.xlane.f32.xlu0 %v2146
    %v2148 = vpop.xlane.xlu0 %2147
    %v2149 = vrcp.pop %v2148
    %v2150 = vmul.f32 %v2145, %v2149
    %2152 = vrot.lane.b32.xlu0 %v1894, 120
    %v2153 = vpop.permute.xlu0 %2152
    %v2156 = vsel %vm133, %v2150, 0
    %2158 = vmatprep.subr.mxu0 0.0
    %2159 = vmatpush1.msra.mxu0 %v2153
    %2160 = vmatprep.subr.mxu0 0.0
    %2161 = vmatpush1.msra.mxu0 0.0
    %2162 = vmatprep.subr.mxu0 0.0
    %2163 = vmatpush1.msra.mxu0 0.0
    %2164 = vmatprep.subr.mxu0 0.0
    %2165 = vmatpush1.msra.mxu0 0.0
    %2166 = vmatprep.subr.mxu0 0.0
    %2167 = vmatpush1.msra.mxu0 0.0
    %2168 = vmatprep.subr.mxu0 0.0
    %2169 = vmatpush1.msra.mxu0 0.0
    %2170 = vmatprep.subr.mxu0 0.0
    %2171 = vmatpush1.msra.mxu0 0.0
    %2172 = vmatprep.subr.mxu0 0.0
    %2173 = vmatpush1.msra.mxu0 0.0
    %2174 = vmatprep.subr.mxu0 0.0
    %2175 = vmatpush1.msra.mxu0 0.0
    %2176 = vmatprep.subr.mxu0 0.0
    %2177 = vmatpush1.msra.mxu0 0.0
    %2178 = vmatprep.subr.mxu0 0.0
    %2179 = vmatpush1.msra.mxu0 0.0
    %2180 = vmatprep.subr.mxu0 0.0
    %2181 = vmatpush1.msra.mxu0 0.0
    %2182 = vmatprep.subr.mxu0 0.0
    %2183 = vmatpush1.msra.mxu0 0.0
    %2184 = vmatprep.subr.mxu0 0.0
    %2185 = vmatpush1.msra.mxu0 0.0
    %2186 = vmatprep.subr.mxu0 0.0
    %2187 = vmatpush1.msra.mxu0 0.0
    %2188 = vmatprep.subr.mxu0 0.0
    %2189 = vmatpush1.msra.mxu0 0.0
    %2190 = vmatprep.subr.mxu0 0.0
    %2191 = vmatpush1.msra.mxu0 0.0
    %2192 = vmatprep.subr.mxu0 0.0
    %2193 = vmatpush1.msra.mxu0 0.0
    %2194 = vmatprep.subr.mxu0 0.0
    %2195 = vmatpush1.msra.mxu0 0.0
    %2196 = vmatprep.subr.mxu0 0.0
    %2197 = vmatpush1.msra.mxu0 0.0
    %2198 = vmatprep.subr.mxu0 0.0
    %2199 = vmatpush1.msra.mxu0 0.0
    %2200 = vmatprep.subr.mxu0 0.0
    %2201 = vmatpush1.msra.mxu0 0.0
    %2202 = vmatprep.subr.mxu0 0.0
    %2203 = vmatpush1.msra.mxu0 0.0
    %2204 = vmatprep.subr.mxu0 0.0
    %2205 = vmatpush1.msra.mxu0 0.0
    %2206 = vmatprep.subr.mxu0 0.0
    %2207 = vmatpush1.msra.mxu0 0.0
    %2208 = vmatprep.subr.mxu0 0.0
    %2209 = vmatpush1.msra.mxu0 0.0
    %2210 = vmatprep.subr.mxu0 0.0
    %2211 = vmatpush1.msra.mxu0 0.0
    %2212 = vmatprep.subr.mxu0 0.0
    %2213 = vmatpush1.msra.mxu0 0.0
    %2214 = vmatprep.subr.mxu0 0.0
    %2215 = vmatpush1.msra.mxu0 0.0
    %2216 = vmatprep.subr.mxu0 0.0
    %2217 = vmatpush1.msra.mxu0 0.0
    %2218 = vmatprep.subr.mxu0 0.0
    %2219 = vmatpush1.msra.mxu0 0.0
    %2220 = vmatprep.subr.mxu0 0.0
    %2221 = vmatpush1.msra.mxu0 0.0
    %2222 = vmatprep.mubr.f32.mxu0 0.0
    %2223 = vmatmul.mubr.f32.gmra.mrb[0].mxu0 %v2156
    %v2224 = vpop.f32.mrb[0].mxu0
    %v2225 = vadd.f32 0.0, %v2224
    %v2226 = vpop.f32.mrb[0].mxu0
    %2227 = vdwg.mxu0
    %2228 = vrot.lane.b32.xlu0 %v1710, 112
    %v2229 = vpop.permute.xlu0 %2228
    %2230 = vrot.lane.b32.xlu0 %v1801, 112
    %v2231 = vpop.permute.xlu0 %2230
    %v2232 = vsel %vm133, %v2229, 0
    %v2234 = vsel %vm133, %v2231, 0
    %2236 = vmatprep.subr.mxu0 0.0
    %2237 = vmatpush1.xpose.msra.mxu0 %v2234
    %2238 = vmatprep.subr.mxu0 0.0
    %2239 = vmatpush1.xpose.msra.mxu0 0.0
    %2240 = vmatprep.subr.mxu0 0.0
    %2241 = vmatpush1.xpose.msra.mxu0 0.0
    %2242 = vmatprep.subr.mxu0 0.0
    %2243 = vmatpush1.xpose.msra.mxu0 0.0
    %2244 = vmatprep.subr.mxu0 0.0
    %2245 = vmatpush1.xpose.msra.mxu0 0.0
    %2246 = vmatprep.subr.mxu0 0.0
    %2247 = vmatpush1.xpose.msra.mxu0 0.0
    %2248 = vmatprep.subr.mxu0 0.0
    %2249 = vmatpush1.xpose.msra.mxu0 0.0
    %2250 = vmatprep.subr.mxu0 0.0
    %2251 = vmatpush1.xpose.msra.mxu0 0.0
    %2252 = vmatprep.subr.mxu0 0.0
    %2253 = vmatpush1.xpose.msra.mxu0 0.0
    %2254 = vmatprep.subr.mxu0 0.0
    %2255 = vmatpush1.xpose.msra.mxu0 0.0
    %2256 = vmatprep.subr.mxu0 0.0
    %2257 = vmatpush1.xpose.msra.mxu0 0.0
    %2258 = vmatprep.subr.mxu0 0.0
    %2259 = vmatpush1.xpose.msra.mxu0 0.0
    %2260 = vmatprep.subr.mxu0 0.0
    %2261 = vmatpush1.xpose.msra.mxu0 0.0
    %2262 = vmatprep.subr.mxu0 0.0
    %2263 = vmatpush1.xpose.msra.mxu0 0.0
    %2264 = vmatprep.subr.mxu0 0.0
    %2265 = vmatpush1.xpose.msra.mxu0 0.0
    %2266 = vmatprep.subr.mxu0 0.0
    %2267 = vmatpush1.xpose.msra.mxu0 0.0
    %2268 = vmatprep.subr.mxu0 0.0
    %2269 = vmatpush1.xpose.msra.mxu0 0.0
    %2270 = vmatprep.subr.mxu0 0.0
    %2271 = vmatpush1.xpose.msra.mxu0 0.0
    %2272 = vmatprep.subr.mxu0 0.0
    %2273 = vmatpush1.xpose.msra.mxu0 0.0
    %2274 = vmatprep.subr.mxu0 0.0
    %2275 = vmatpush1.xpose.msra.mxu0 0.0
    %2276 = vmatprep.subr.mxu0 0.0
    %2277 = vmatpush1.xpose.msra.mxu0 0.0
    %2278 = vmatprep.subr.mxu0 0.0
    %2279 = vmatpush1.xpose.msra.mxu0 0.0
    %2280 = vmatprep.subr.mxu0 0.0
    %2281 = vmatpush1.xpose.msra.mxu0 0.0
    %2282 = vmatprep.subr.mxu0 0.0
    %2283 = vmatpush1.xpose.msra.mxu0 0.0
    %2284 = vmatprep.subr.mxu0 0.0
    %2285 = vmatpush1.xpose.msra.mxu0 0.0
    %2286 = vmatprep.subr.mxu0 0.0
    %2287 = vmatpush1.xpose.msra.mxu0 0.0
    %2288 = vmatprep.subr.mxu0 0.0
    %2289 = vmatpush1.xpose.msra.mxu0 0.0
    %2290 = vmatprep.subr.mxu0 0.0
    %2291 = vmatpush1.xpose.msra.mxu0 0.0
    %2292 = vmatprep.subr.mxu0 0.0
    %2293 = vmatpush1.xpose.msra.mxu0 0.0
    %2294 = vmatprep.subr.mxu0 0.0
    %2295 = vmatpush1.xpose.msra.mxu0 0.0
    %2296 = vmatprep.subr.mxu0 0.0
    %2297 = vmatpush1.xpose.msra.mxu0 0.0
    %2298 = vmatprep.subr.mxu0 0.0
    %2299 = vmatpush1.xpose.msra.mxu0 0.0
    %2300 = vmatprep.mubr.f32.mxu0 0.0
    %2301 = vmatmul.mubr.f32.gmra.mrb[0].mxu0 %v2232
    %v2302 = vpop.f32.mrb[0].mxu0
    %v2303 = vadd.f32 %v37, %v2302
    %v2304 = vpop.f32.mrb[0].mxu0
    %2305 = vdwg.mxu0
    %v2306 = vsel %vm133, %v2303, -inf
    %2307 = vmax.xlane.f32.xlu0 %v2306
    %v2308 = vpop.xlane.xlu0 %2307
    %v2309 = vsub.f32 %v2303, %v2308
    %v2310 = vmul.f32 %v2309, 1.442695
    %v2311 = vpow.pop %v2310
    %v2312 = vsel %vm133, %v2311, 0.0
    %2313 = vadd.xlane.f32.xlu0 %v2312
    %v2314 = vpop.xlane.xlu0 %2313
    %v2315 = vrcp.pop %v2314
    %v2316 = vmul.f32 %v2311, %v2315
    %2317 = vrot.lane.b32.xlu0 %v1894, 112
    %v2318 = vpop.permute.xlu0 %2317
    %v2321 = vsel %vm133, %v2316, 0
    %2323 = vmatprep.subr.mxu0 0.0
    %2324 = vmatpush1.msra.mxu0 %v2318
    %2325 = vmatprep.subr.mxu0 0.0
    %2326 = vmatpush1.msra.mxu0 0.0
    %2327 = vmatprep.subr.mxu0 0.0
    %2328 = vmatpush1.msra.mxu0 0.0
    %2329 = vmatprep.subr.mxu0 0.0
    %2330 = vmatpush1.msra.mxu0 0.0
    %2331 = vmatprep.subr.mxu0 0.0
    %2332 = vmatpush1.msra.mxu0 0.0
    %2333 = vmatprep.subr.mxu0 0.0
    %2334 = vmatpush1.msra.mxu0 0.0
    %2335 = vmatprep.subr.mxu0 0.0
    %2336 = vmatpush1.msra.mxu0 0.0
    %2337 = vmatprep.subr.mxu0 0.0
    %2338 = vmatpush1.msra.mxu0 0.0
    %2339 = vmatprep.subr.mxu0 0.0
    %2340 = vmatpush1.msra.mxu0 0.0
    %2341 = vmatprep.subr.mxu0 0.0
    %2342 = vmatpush1.msra.mxu0 0.0
    %2343 = vmatprep.subr.mxu0 0.0
    %2344 = vmatpush1.msra.mxu0 0.0
    %2345 = vmatprep.subr.mxu0 0.0
    %2346 = vmatpush1.msra.mxu0 0.0
    %2347 = vmatprep.subr.mxu0 0.0
    %2348 = vmatpush1.msra.mxu0 0.0
    %2349 = vmatprep.subr.mxu0 0.0
    %2350 = vmatpush1.msra.mxu0 0.0
    %2351 = vmatprep.subr.mxu0 0.0
    %2352 = vmatpush1.msra.mxu0 0.0
    %2353 = vmatprep.subr.mxu0 0.0
    %2354 = vmatpush1.msra.mxu0 0.0
    %2355 = vmatprep.subr.mxu0 0.0
    %2356 = vmatpush1.msra.mxu0 0.0
    %2357 = vmatprep.subr.mxu0 0.0
    %2358 = vmatpush1.msra.mxu0 0.0
    %2359 = vmatprep.subr.mxu0 0.0
    %2360 = vmatpush1.msra.mxu0 0.0
    %2361 = vmatprep.subr.mxu0 0.0
    %2362 = vmatpush1.msra.mxu0 0.0
    %2363 = vmatprep.subr.mxu0 0.0
    %2364 = vmatpush1.msra.mxu0 0.0
    %2365 = vmatprep.subr.mxu0 0.0
    %2366 = vmatpush1.msra.mxu0 0.0
    %2367 = vmatprep.subr.mxu0 0.0
    %2368 = vmatpush1.msra.mxu0 0.0
    %2369 = vmatprep.subr.mxu0 0.0
    %2370 = vmatpush1.msra.mxu0 0.0
    %2371 = vmatprep.subr.mxu0 0.0
    %2372 = vmatpush1.msra.mxu0 0.0
    %2373 = vmatprep.subr.mxu0 0.0
    %2374 = vmatpush1.msra.mxu0 0.0
    %2375 = vmatprep.subr.mxu0 0.0
    %2376 = vmatpush1.msra.mxu0 0.0
    %2377 = vmatprep.subr.mxu0 0.0
    %2378 = vmatpush1.msra.mxu0 0.0
    %2379 = vmatprep.subr.mxu0 0.0
    %2380 = vmatpush1.msra.mxu0 0.0
    %2381 = vmatprep.subr.mxu0 0.0
    %2382 = vmatpush1.msra.mxu0 0.0
    %2383 = vmatprep.subr.mxu0 0.0
    %2384 = vmatpush1.msra.mxu0 0.0
    %2385 = vmatprep.subr.mxu0 0.0
    %2386 = vmatpush1.msra.mxu0 0.0
    %2387 = vmatprep.mubr.f32.mxu0 0.0
    %2388 = vmatmul.mubr.f32.gmra.mrb[0].mxu0 %v2321
    %v2389 = vpop.f32.mrb[0].mxu0
    %v2390 = vadd.f32 0.0, %v2389
    %v2391 = vpop.f32.mrb[0].mxu0
    %2392 = vdwg.mxu0
    %2393 = vrot.lane.b32.xlu0 %v1710, 104
    %v2394 = vpop.permute.xlu0 %2393
    %2395 = vrot.lane.b32.xlu0 %v1801, 104
    %v2396 = vpop.permute.xlu0 %2395
    %v2397 = vsel %vm133, %v2394, 0
    %v2399 = vsel %vm133, %v2396, 0
    %2401 = vmatprep.subr.mxu0 0.0
    %2402 = vmatpush1.xpose.msra.mxu0 %v2399
    %2403 = vmatprep.subr.mxu0 0.0
    %2404 = vmatpush1.xpose.msra.mxu0 0.0
    %2405 = vmatprep.subr.mxu0 0.0
    %2406 = vmatpush1.xpose.msra.mxu0 0.0
    %2407 = vmatprep.subr.mxu0 0.0
    %2408 = vmatpush1.xpose.msra.mxu0 0.0
    %2409 = vmatprep.subr.mxu0 0.0
    %2410 = vmatpush1.xpose.msra.mxu0 0.0
    %2411 = vmatprep.subr.mxu0 0.0
    %2412 = vmatpush1.xpose.msra.mxu0 0.0
    %2413 = vmatprep.subr.mxu0 0.0
    %2414 = vmatpush1.xpose.msra.mxu0 0.0
    %2415 = vmatprep.subr.mxu0 0.0
    %2416 = vmatpush1.xpose.msra.mxu0 0.0
    %2417 = vmatprep.subr.mxu0 0.0
    %2418 = vmatpush1.xpose.msra.mxu0 0.0
    %2419 = vmatprep.subr.mxu0 0.0
    %2420 = vmatpush1.xpose.msra.mxu0 0.0
    %2421 = vmatprep.subr.mxu0 0.0
    %2422 = vmatpush1.xpose.msra.mxu0 0.0
    %2423 = vmatprep.subr.mxu0 0.0
    %2424 = vmatpush1.xpose.msra.mxu0 0.0
    %2425 = vmatprep.subr.mxu0 0.0
    %2426 = vmatpush1.xpose.msra.mxu0 0.0
    %2427 = vmatprep.subr.mxu0 0.0
    %2428 = vmatpush1.xpose.msra.mxu0 0.0
    %2429 = vmatprep.subr.mxu0 0.0
    %2430 = vmatpush1.xpose.msra.mxu0 0.0
    %2431 = vmatprep.subr.mxu0 0.0
    %2432 = vmatpush1.xpose.msra.mxu0 0.0
    %2433 = vmatprep.subr.mxu0 0.0
    %2434 = vmatpush1.xpose.msra.mxu0 0.0
    %2435 = vmatprep.subr.mxu0 0.0
    %2436 = vmatpush1.xpose.msra.mxu0 0.0
    %2437 = vmatprep.subr.mxu0 0.0
    %2438 = vmatpush1.xpose.msra.mxu0 0.0
    %2439 = vmatprep.subr.mxu0 0.0
    %2440 = vmatpush1.xpose.msra.mxu0 0.0
    %2441 = vmatprep.subr.mxu0 0.0
    %2442 = vmatpush1.xpose.msra.mxu0 0.0
    %2443 = vmatprep.subr.mxu0 0.0
    %2444 = vmatpush1.xpose.msra.mxu0 0.0
    %2445 = vmatprep.subr.mxu0 0.0
    %2446 = vmatpush1.xpose.msra.mxu0 0.0
    %2447 = vmatprep.subr.mxu0 0.0
    %2448 = vmatpush1.xpose.msra.mxu0 0.0
    %2449 = vmatprep.subr.mxu0 0.0
    %2450 = vmatpush1.xpose.msra.mxu0 0.0
    %2451 = vmatprep.subr.mxu0 0.0
    %2452 = vmatpush1.xpose.msra.mxu0 0.0
    %2453 = vmatprep.subr.mxu0 0.0
    %2454 = vmatpush1.xpose.msra.mxu0 0.0
    %2455 = vmatprep.subr.mxu0 0.0
    %2456 = vmatpush1.xpose.msra.mxu0 0.0
    %2457 = vmatprep.subr.mxu0 0.0
    %2458 = vmatpush1.xpose.msra.mxu0 0.0
    %2459 = vmatprep.subr.mxu0 0.0
    %2460 = vmatpush1.xpose.msra.mxu0 0.0
    %2461 = vmatprep.subr.mxu0 0.0
    %2462 = vmatpush1.xpose.msra.mxu0 0.0
    %2463 = vmatprep.subr.mxu0 0.0
    %2464 = vmatpush1.xpose.msra.mxu0 0.0
    %2465 = vmatprep.mubr.f32.mxu0 0.0
    %2466 = vmatmul.mubr.f32.gmra.mrb[0].mxu0 %v2397
    %v2467 = vpop.f32.mrb[0].mxu0
    %v2468 = vadd.f32 %v37, %v2467
    %v2469 = vpop.f32.mrb[0].mxu0
    %2470 = vdwg.mxu0
    %v2471 = vsel %vm133, %v2468, -inf
    %2472 = vmax.xlane.f32.xlu0 %v2471
    %v2473 = vpop.xlane.xlu0 %2472
    %v2474 = vsub.f32 %v2468, %v2473
    %v2475 = vmul.f32 %v2474, 1.442695
    %v2476 = vpow.pop %v2475
    %v2477 = vsel %vm133, %v2476, 0.0
    %2478 = vadd.xlane.f32.xlu0 %v2477
    %v2479 = vpop.xlane.xlu0 %2478
    %v2480 = vrcp.pop %v2479
    %v2481 = vmul.f32 %v2476, %v2480
    %2482 = vrot.lane.b32.xlu0 %v1894, 104
    %v2483 = vpop.permute.xlu0 %2482
    %v2486 = vsel %vm133, %v2481, 0
    %2488 = vmatprep.subr.mxu0 0.0
    %2489 = vmatpush1.msra.mxu0 %v2483
    %2490 = vmatprep.subr.mxu0 0.0
    %2491 = vmatpush1.msra.mxu0 0.0
    %2492 = vmatprep.subr.mxu0 0.0
    %2493 = vmatpush1.msra.mxu0 0.0
    %2494 = vmatprep.subr.mxu0 0.0
    %2495 = vmatpush1.msra.mxu0 0.0
    %2496 = vmatprep.subr.mxu0 0.0
    %2497 = vmatpush1.msra.mxu0 0.0
    %2498 = vmatprep.subr.mxu0 0.0
    %2499 = vmatpush1.msra.mxu0 0.0
    %2500 = vmatprep.subr.mxu0 0.0
    %2501 = vmatpush1.msra.mxu0 0.0
    %2502 = vmatprep.subr.mxu0 0.0
    %2503 = vmatpush1.msra.mxu0 0.0
    %2504 = vmatprep.subr.mxu0 0.0
    %2505 = vmatpush1.msra.mxu0 0.0
    %2506 = vmatprep.subr.mxu0 0.0
    %2507 = vmatpush1.msra.mxu0 0.0
    %2508 = vmatprep.subr.mxu0 0.0
    %2509 = vmatpush1.msra.mxu0 0.0
    %2510 = vmatprep.subr.mxu0 0.0
    %2511 = vmatpush1.msra.mxu0 0.0
    %2512 = vmatprep.subr.mxu0 0.0
    %2513 = vmatpush1.msra.mxu0 0.0
    %2514 = vmatprep.subr.mxu0 0.0
    %2515 = vmatpush1.msra.mxu0 0.0
    %2516 = vmatprep.subr.mxu0 0.0
    %2517 = vmatpush1.msra.mxu0 0.0
    %2518 = vmatprep.subr.mxu0 0.0
    %2519 = vmatpush1.msra.mxu0 0.0
    %2520 = vmatprep.subr.mxu0 0.0
    %2521 = vmatpush1.msra.mxu0 0.0
    %2522 = vmatprep.subr.mxu0 0.0
    %2523 = vmatpush1.msra.mxu0 0.0
    %2524 = vmatprep.subr.mxu0 0.0
    %2525 = vmatpush1.msra.mxu0 0.0
    %2526 = vmatprep.subr.mxu0 0.0
    %2527 = vmatpush1.msra.mxu0 0.0
    %2528 = vmatprep.subr.mxu0 0.0
    %2529 = vmatpush1.msra.mxu0 0.0
    %2530 = vmatprep.subr.mxu0 0.0
    %2531 = vmatpush1.msra.mxu0 0.0
    %2532 = vmatprep.subr.mxu0 0.0
    %2533 = vmatpush1.msra.mxu0 0.0
    %2534 = vmatprep.subr.mxu0 0.0
    %2535 = vmatpush1.msra.mxu0 0.0
    %2536 = vmatprep.subr.mxu0 0.0
    %2537 = vmatpush1.msra.mxu0 0.0
    %2538 = vmatprep.subr.mxu0 0.0
    %2539 = vmatpush1.msra.mxu0 0.0
    %2540 = vmatprep.subr.mxu0 0.0
    %2541 = vmatpush1.msra.mxu0 0.0
    %2542 = vmatprep.subr.mxu0 0.0
    %2543 = vmatpush1.msra.mxu0 0.0
    %2544 = vmatprep.subr.mxu0 0.0
    %2545 = vmatpush1.msra.mxu0 0.0
    %2546 = vmatprep.subr.mxu0 0.0
    %2547 = vmatpush1.msra.mxu0 0.0
    %2548 = vmatprep.subr.mxu0 0.0
    %2549 = vmatpush1.msra.mxu0 0.0
    %2550 = vmatprep.subr.mxu0 0.0
    %2551 = vmatpush1.msra.mxu0 0.0
    %2552 = vmatprep.mubr.f32.mxu0 0.0
    %2553 = vmatmul.mubr.f32.gmra.mrb[0].mxu0 %v2486
    %v2554 = vpop.f32.mrb[0].mxu0
    %v2555 = vadd.f32 0.0, %v2554
    %v2556 = vpop.f32.mrb[0].mxu0
    %2557 = vdwg.mxu0
    %2559 = vrot.lane.b32.xlu0 %v2225, 8
    %v2560 = vpop.permute.xlu0 %2559
    %2563 = vrot.lane.b32.xlu0 %v2390, 16
    %v2564 = vpop.permute.xlu0 %2563
    %2567 = vrot.lane.b32.xlu0 %v2555, 24
    %v2568 = vpop.permute.xlu0 %2567
    %v2570 = vsel %vm133, %v2059, %v2560
    %v2571 = vsel %vm804, %v2570, %v2564
    %v2572 = vsel %vm806, %v2571, %v2568
    %v2574 = vsel %vm133, %v1711, 0
    %v2577 = vsel %vm133, %v1806, 0
    %2579 = vmatprep.subr.mxu0 0.0
    %2580 = vmatpush1.xpose.msra.mxu0 %v2577
    %2581 = vmatprep.subr.mxu0 0.0
    %2582 = vmatpush1.xpose.msra.mxu0 0.0
    %2583 = vmatprep.subr.mxu0 0.0
    %2584 = vmatpush1.xpose.msra.mxu0 0.0
    %2585 = vmatprep.subr.mxu0 0.0
    %2586 = vmatpush1.xpose.msra.mxu0 0.0
    %2587 = vmatprep.subr.mxu0 0.0
    %2588 = vmatpush1.xpose.msra.mxu0 0.0
    %2589 = vmatprep.subr.mxu0 0.0
    %2590 = vmatpush1.xpose.msra.mxu0 0.0
    %2591 = vmatprep.subr.mxu0 0.0
    %2592 = vmatpush1.xpose.msra.mxu0 0.0
    %2593 = vmatprep.subr.mxu0 0.0
    %2594 = vmatpush1.xpose.msra.mxu0 0.0
    %2595 = vmatprep.subr.mxu0 0.0
    %2596 = vmatpush1.xpose.msra.mxu0 0.0
    %2597 = vmatprep.subr.mxu0 0.0
    %2598 = vmatpush1.xpose.msra.mxu0 0.0
    %2599 = vmatprep.subr.mxu0 0.0
    %2600 = vmatpush1.xpose.msra.mxu0 0.0
    %2601 = vmatprep.subr.mxu0 0.0
    %2602 = vmatpush1.xpose.msra.mxu0 0.0
    %2603 = vmatprep.subr.mxu0 0.0
    %2604 = vmatpush1.xpose.msra.mxu0 0.0
    %2605 = vmatprep.subr.mxu0 0.0
    %2606 = vmatpush1.xpose.msra.mxu0 0.0
    %2607 = vmatprep.subr.mxu0 0.0
    %2608 = vmatpush1.xpose.msra.mxu0 0.0
    %2609 = vmatprep.subr.mxu0 0.0
    %2610 = vmatpush1.xpose.msra.mxu0 0.0
    %2611 = vmatprep.subr.mxu0 0.0
    %2612 = vmatpush1.xpose.msra.mxu0 0.0
    %2613 = vmatprep.subr.mxu0 0.0
    %2614 = vmatpush1.xpose.msra.mxu0 0.0
    %2615 = vmatprep.subr.mxu0 0.0
    %2616 = vmatpush1.xpose.msra.mxu0 0.0
    %2617 = vmatprep.subr.mxu0 0.0
    %2618 = vmatpush1.xpose.msra.mxu0 0.0
    %2619 = vmatprep.subr.mxu0 0.0
    %2620 = vmatpush1.xpose.msra.mxu0 0.0
    %2621 = vmatprep.subr.mxu0 0.0
    %2622 = vmatpush1.xpose.msra.mxu0 0.0
    %2623 = vmatprep.subr.mxu0 0.0
    %2624 = vmatpush1.xpose.msra.mxu0 0.0
    %2625 = vmatprep.subr.mxu0 0.0
    %2626 = vmatpush1.xpose.msra.mxu0 0.0
    %2627 = vmatprep.subr.mxu0 0.0
    %2628 = vmatpush1.xpose.msra.mxu0 0.0
    %2629 = vmatprep.subr.mxu0 0.0
    %2630 = vmatpush1.xpose.msra.mxu0 0.0
    %2631 = vmatprep.subr.mxu0 0.0
    %2632 = vmatpush1.xpose.msra.mxu0 0.0
    %2633 = vmatprep.subr.mxu0 0.0
    %2634 = vmatpush1.xpose.msra.mxu0 0.0
    %2635 = vmatprep.subr.mxu0 0.0
    %2636 = vmatpush1.xpose.msra.mxu0 0.0
    %2637 = vmatprep.subr.mxu0 0.0
    %2638 = vmatpush1.xpose.msra.mxu0 0.0
    %2639 = vmatprep.subr.mxu0 0.0
    %2640 = vmatpush1.xpose.msra.mxu0 0.0
    %2641 = vmatprep.subr.mxu0 0.0
    %2642 = vmatpush1.xpose.msra.mxu0 0.0
    %2643 = vmatprep.mubr.f32.mxu0 0.0
    %2644 = vmatmul.mubr.f32.gmra.mrb[0].mxu0 %v2574
    %v2645 = vpop.f32.mrb[0].mxu0
    %v2646 = vadd.f32 %v39, %v2645
    %v2647 = vpop.f32.mrb[0].mxu0
    %2648 = vdwg.mxu0
    %v2649 = vsel %vm133, %v2646, -inf
    %2650 = vmax.xlane.f32.xlu0 %v2649
    %v2651 = vpop.xlane.xlu0 %2650
    %v2652 = vsub.f32 %v2646, %v2651
    %v2653 = vmul.f32 %v2652, 1.442695
    %v2654 = vpow.pop %v2653
    %v2655 = vsel %vm133, %v2654, 0.0
    %2656 = vadd.xlane.f32.xlu0 %v2655
    %v2657 = vpop.xlane.xlu0 %2656
    %v2658 = vrcp.pop %v2657
    %v2659 = vmul.f32 %v2654, %v2658
    %v2661 = vsel %vm133, %v2659, 0
    %2663 = vmatprep.subr.mxu0 0.0
    %2664 = vmatpush1.msra.mxu0 %v1899
    %2665 = vmatprep.subr.mxu0 0.0
    %2666 = vmatpush1.msra.mxu0 0.0
    %2667 = vmatprep.subr.mxu0 0.0
    %2668 = vmatpush1.msra.mxu0 0.0
    %2669 = vmatprep.subr.mxu0 0.0
    %2670 = vmatpush1.msra.mxu0 0.0
    %2671 = vmatprep.subr.mxu0 0.0
    %2672 = vmatpush1.msra.mxu0 0.0
    %2673 = vmatprep.subr.mxu0 0.0
    %2674 = vmatpush1.msra.mxu0 0.0
    %2675 = vmatprep.subr.mxu0 0.0
    %2676 = vmatpush1.msra.mxu0 0.0
    %2677 = vmatprep.subr.mxu0 0.0
    %2678 = vmatpush1.msra.mxu0 0.0
    %2679 = vmatprep.subr.mxu0 0.0
    %2680 = vmatpush1.msra.mxu0 0.0
    %2681 = vmatprep.subr.mxu0 0.0
    %2682 = vmatpush1.msra.mxu0 0.0
    %2683 = vmatprep.subr.mxu0 0.0
    %2684 = vmatpush1.msra.mxu0 0.0
    %2685 = vmatprep.subr.mxu0 0.0
    %2686 = vmatpush1.msra.mxu0 0.0
    %2687 = vmatprep.subr.mxu0 0.0
    %2688 = vmatpush1.msra.mxu0 0.0
    %2689 = vmatprep.subr.mxu0 0.0
    %2690 = vmatpush1.msra.mxu0 0.0
    %2691 = vmatprep.subr.mxu0 0.0
    %2692 = vmatpush1.msra.mxu0 0.0
    %2693 = vmatprep.subr.mxu0 0.0
    %2694 = vmatpush1.msra.mxu0 0.0
    %2695 = vmatprep.subr.mxu0 0.0
    %2696 = vmatpush1.msra.mxu0 0.0
    %2697 = vmatprep.subr.mxu0 0.0
    %2698 = vmatpush1.msra.mxu0 0.0
    %2699 = vmatprep.subr.mxu0 0.0
    %2700 = vmatpush1.msra.mxu0 0.0
    %2701 = vmatprep.subr.mxu0 0.0
    %2702 = vmatpush1.msra.mxu0 0.0
    %2703 = vmatprep.subr.mxu0 0.0
    %2704 = vmatpush1.msra.mxu0 0.0
    %2705 = vmatprep.subr.mxu0 0.0
    %2706 = vmatpush1.msra.mxu0 0.0
    %2707 = vmatprep.subr.mxu0 0.0
    %2708 = vmatpush1.msra.mxu0 0.0
    %2709 = vmatprep.subr.mxu0 0.0
    %2710 = vmatpush1.msra.mxu0 0.0
    %2711 = vmatprep.subr.mxu0 0.0
    %2712 = vmatpush1.msra.mxu0 0.0
    %2713 = vmatprep.subr.mxu0 0.0
    %2714 = vmatpush1.msra.mxu0 0.0
    %2715 = vmatprep.subr.mxu0 0.0
    %2716 = vmatpush1.msra.mxu0 0.0
    %2717 = vmatprep.subr.mxu0 0.0
    %2718 = vmatpush1.msra.mxu0 0.0
    %2719 = vmatprep.subr.mxu0 0.0
    %2720 = vmatpush1.msra.mxu0 0.0
    %2721 = vmatprep.subr.mxu0 0.0
    %2722 = vmatpush1.msra.mxu0 0.0
    %2723 = vmatprep.subr.mxu0 0.0
    %2724 = vmatpush1.msra.mxu0 0.0
    %2725 = vmatprep.subr.mxu0 0.0
    %2726 = vmatpush1.msra.mxu0 0.0
    %2727 = vmatprep.mubr.f32.mxu0 0.0
    %2728 = vmatmul.mubr.f32.gmra.mrb[0].mxu0 %v2661
    %v2729 = vpop.f32.mrb[0].mxu0
    %v2730 = vadd.f32 0.0, %v2729
    %v2731 = vpop.f32.mrb[0].mxu0
    %2732 = vdwg.mxu0
    %2733 = vrot.lane.b32.xlu0 %v1711, 120
    %v2734 = vpop.permute.xlu0 %2733
    %2735 = vrot.lane.b32.xlu0 %v1806, 120
    %v2736 = vpop.permute.xlu0 %2735
    %v2737 = vsel %vm133, %v2734, 0
    %v2739 = vsel %vm133, %v2736, 0
    %2741 = vmatprep.subr.mxu0 0.0
    %2742 = vmatpush1.xpose.msra.mxu0 %v2739
    %2743 = vmatprep.subr.mxu0 0.0
    %2744 = vmatpush1.xpose.msra.mxu0 0.0
    %2745 = vmatprep.subr.mxu0 0.0
    %2746 = vmatpush1.xpose.msra.mxu0 0.0
    %2747 = vmatprep.subr.mxu0 0.0
    %2748 = vmatpush1.xpose.msra.mxu0 0.0
    %2749 = vmatprep.subr.mxu0 0.0
    %2750 = vmatpush1.xpose.msra.mxu0 0.0
    %2751 = vmatprep.subr.mxu0 0.0
    %2752 = vmatpush1.xpose.msra.mxu0 0.0
    %2753 = vmatprep.subr.mxu0 0.0
    %2754 = vmatpush1.xpose.msra.mxu0 0.0
    %2755 = vmatprep.subr.mxu0 0.0
    %2756 = vmatpush1.xpose.msra.mxu0 0.0
    %2757 = vmatprep.subr.mxu0 0.0
    %2758 = vmatpush1.xpose.msra.mxu0 0.0
    %2759 = vmatprep.subr.mxu0 0.0
    %2760 = vmatpush1.xpose.msra.mxu0 0.0
    %2761 = vmatprep.subr.mxu0 0.0
    %2762 = vmatpush1.xpose.msra.mxu0 0.0
    %2763 = vmatprep.subr.mxu0 0.0
    %2764 = vmatpush1.xpose.msra.mxu0 0.0
    %2765 = vmatprep.subr.mxu0 0.0
    %2766 = vmatpush1.xpose.msra.mxu0 0.0
    %2767 = vmatprep.subr.mxu0 0.0
    %2768 = vmatpush1.xpose.msra.mxu0 0.0
    %2769 = vmatprep.subr.mxu0 0.0
    %2770 = vmatpush1.xpose.msra.mxu0 0.0
    %2771 = vmatprep.subr.mxu0 0.0
    %2772 = vmatpush1.xpose.msra.mxu0 0.0
    %2773 = vmatprep.subr.mxu0 0.0
    %2774 = vmatpush1.xpose.msra.mxu0 0.0
    %2775 = vmatprep.subr.mxu0 0.0
    %2776 = vmatpush1.xpose.msra.mxu0 0.0
    %2777 = vmatprep.subr.mxu0 0.0
    %2778 = vmatpush1.xpose.msra.mxu0 0.0
    %2779 = vmatprep.subr.mxu0 0.0
    %2780 = vmatpush1.xpose.msra.mxu0 0.0
    %2781 = vmatprep.subr.mxu0 0.0
    %2782 = vmatpush1.xpose.msra.mxu0 0.0
    %2783 = vmatprep.subr.mxu0 0.0
    %2784 = vmatpush1.xpose.msra.mxu0 0.0
    %2785 = vmatprep.subr.mxu0 0.0
    %2786 = vmatpush1.xpose.msra.mxu0 0.0
    %2787 = vmatprep.subr.mxu0 0.0
    %2788 = vmatpush1.xpose.msra.mxu0 0.0
    %2789 = vmatprep.subr.mxu0 0.0
    %2790 = vmatpush1.xpose.msra.mxu0 0.0
    %2791 = vmatprep.subr.mxu0 0.0
    %2792 = vmatpush1.xpose.msra.mxu0 0.0
    %2793 = vmatprep.subr.mxu0 0.0
    %2794 = vmatpush1.xpose.msra.mxu0 0.0
    %2795 = vmatprep.subr.mxu0 0.0
    %2796 = vmatpush1.xpose.msra.mxu0 0.0
    %2797 = vmatprep.subr.mxu0 0.0
    %2798 = vmatpush1.xpose.msra.mxu0 0.0
    %2799 = vmatprep.subr.mxu0 0.0
    %2800 = vmatpush1.xpose.msra.mxu0 0.0
    %2801 = vmatprep.subr.mxu0 0.0
    %2802 = vmatpush1.xpose.msra.mxu0 0.0
    %2803 = vmatprep.subr.mxu0 0.0
    %2804 = vmatpush1.xpose.msra.mxu0 0.0
    %2805 = vmatprep.mubr.f32.mxu0 0.0
    %2806 = vmatmul.mubr.f32.gmra.mrb[0].mxu0 %v2737
    %v2807 = vpop.f32.mrb[0].mxu0
    %v2808 = vadd.f32 %v39, %v2807
    %v2809 = vpop.f32.mrb[0].mxu0
    %2810 = vdwg.mxu0
    %v2811 = vsel %vm133, %v2808, -inf
    %2812 = vmax.xlane.f32.xlu0 %v2811
    %v2813 = vpop.xlane.xlu0 %2812
    %v2814 = vsub.f32 %v2808, %v2813
    %v2815 = vmul.f32 %v2814, 1.442695
    %v2816 = vpow.pop %v2815
    %v2817 = vsel %vm133, %v2816, 0.0
    %2818 = vadd.xlane.f32.xlu0 %v2817
    %v2819 = vpop.xlane.xlu0 %2818
    %v2820 = vrcp.pop %v2819
    %v2821 = vmul.f32 %v2816, %v2820
    %2823 = vrot.lane.b32.xlu0 %v1899, 120
    %v2824 = vpop.permute.xlu0 %2823
    %v2827 = vsel %vm133, %v2821, 0
    %2829 = vmatprep.subr.mxu0 0.0
    %2830 = vmatpush1.msra.mxu0 %v2824
    %2831 = vmatprep.subr.mxu0 0.0
    %2832 = vmatpush1.msra.mxu0 0.0
    %2833 = vmatprep.subr.mxu0 0.0
    %2834 = vmatpush1.msra.mxu0 0.0
    %2835 = vmatprep.subr.mxu0 0.0
    %2836 = vmatpush1.msra.mxu0 0.0
    %2837 = vmatprep.subr.mxu0 0.0
    %2838 = vmatpush1.msra.mxu0 0.0
    %2839 = vmatprep.subr.mxu0 0.0
    %2840 = vmatpush1.msra.mxu0 0.0
    %2841 = vmatprep.subr.mxu0 0.0
    %2842 = vmatpush1.msra.mxu0 0.0
    %2843 = vmatprep.subr.mxu0 0.0
    %2844 = vmatpush1.msra.mxu0 0.0
    %2845 = vmatprep.subr.mxu0 0.0
    %2846 = vmatpush1.msra.mxu0 0.0
    %2847 = vmatprep.subr.mxu0 0.0
    %2848 = vmatpush1.msra.mxu0 0.0
    %2849 = vmatprep.subr.mxu0 0.0
    %2850 = vmatpush1.msra.mxu0 0.0
    %2851 = vmatprep.subr.mxu0 0.0
    %2852 = vmatpush1.msra.mxu0 0.0
    %2853 = vmatprep.subr.mxu0 0.0
    %2854 = vmatpush1.msra.mxu0 0.0
    %2855 = vmatprep.subr.mxu0 0.0
    %2856 = vmatpush1.msra.mxu0 0.0
    %2857 = vmatprep.subr.mxu0 0.0
    %2858 = vmatpush1.msra.mxu0 0.0
    %2859 = vmatprep.subr.mxu0 0.0
    %2860 = vmatpush1.msra.mxu0 0.0
    %2861 = vmatprep.subr.mxu0 0.0
    %2862 = vmatpush1.msra.mxu0 0.0
    %2863 = vmatprep.subr.mxu0 0.0
    %2864 = vmatpush1.msra.mxu0 0.0
    %2865 = vmatprep.subr.mxu0 0.0
    %2866 = vmatpush1.msra.mxu0 0.0
    %2867 = vmatprep.subr.mxu0 0.0
    %2868 = vmatpush1.msra.mxu0 0.0
    %2869 = vmatprep.subr.mxu0 0.0
    %2870 = vmatpush1.msra.mxu0 0.0
    %2871 = vmatprep.subr.mxu0 0.0
    %2872 = vmatpush1.msra.mxu0 0.0
    %2873 = vmatprep.subr.mxu0 0.0
    %2874 = vmatpush1.msra.mxu0 0.0
    %2875 = vmatprep.subr.mxu0 0.0
    %2876 = vmatpush1.msra.mxu0 0.0
    %2877 = vmatprep.subr.mxu0 0.0
    %2878 = vmatpush1.msra.mxu0 0.0
    %2879 = vmatprep.subr.mxu0 0.0
    %2880 = vmatpush1.msra.mxu0 0.0
    %2881 = vmatprep.subr.mxu0 0.0
    %2882 = vmatpush1.msra.mxu0 0.0
    %2883 = vmatprep.subr.mxu0 0.0
    %2884 = vmatpush1.msra.mxu0 0.0
    %2885 = vmatprep.subr.mxu0 0.0
    %2886 = vmatpush1.msra.mxu0 0.0
    %2887 = vmatprep.subr.mxu0 0.0
    %2888 = vmatpush1.msra.mxu0 0.0
    %2889 = vmatprep.subr.mxu0 0.0
    %2890 = vmatpush1.msra.mxu0 0.0
    %2891 = vmatprep.subr.mxu0 0.0
    %2892 = vmatpush1.msra.mxu0 0.0
    %2893 = vmatprep.mubr.f32.mxu0 0.0
    %2894 = vmatmul.mubr.f32.gmra.mrb[0].mxu0 %v2827
    %v2895 = vpop.f32.mrb[0].mxu0
    %v2896 = vadd.f32 0.0, %v2895
    %v2897 = vpop.f32.mrb[0].mxu0
    %2898 = vdwg.mxu0
    %2899 = vrot.lane.b32.xlu0 %v1711, 112
    %v2900 = vpop.permute.xlu0 %2899
    %2901 = vrot.lane.b32.xlu0 %v1806, 112
    %v2902 = vpop.permute.xlu0 %2901
    %v2903 = vsel %vm133, %v2900, 0
    %v2905 = vsel %vm133, %v2902, 0
    %2907 = vmatprep.subr.mxu0 0.0
    %2908 = vmatpush1.xpose.msra.mxu0 %v2905
    %2909 = vmatprep.subr.mxu0 0.0
    %2910 = vmatpush1.xpose.msra.mxu0 0.0
    %2911 = vmatprep.subr.mxu0 0.0
    %2912 = vmatpush1.xpose.msra.mxu0 0.0
    %2913 = vmatprep.subr.mxu0 0.0
    %2914 = vmatpush1.xpose.msra.mxu0 0.0
    %2915 = vmatprep.subr.mxu0 0.0
    %2916 = vmatpush1.xpose.msra.mxu0 0.0
    %2917 = vmatprep.subr.mxu0 0.0
    %2918 = vmatpush1.xpose.msra.mxu0 0.0
    %2919 = vmatprep.subr.mxu0 0.0
    %2920 = vmatpush1.xpose.msra.mxu0 0.0
    %2921 = vmatprep.subr.mxu0 0.0
    %2922 = vmatpush1.xpose.msra.mxu0 0.0
    %2923 = vmatprep.subr.mxu0 0.0
    %2924 = vmatpush1.xpose.msra.mxu0 0.0
    %2925 = vmatprep.subr.mxu0 0.0
    %2926 = vmatpush1.xpose.msra.mxu0 0.0
    %2927 = vmatprep.subr.mxu0 0.0
    %2928 = vmatpush1.xpose.msra.mxu0 0.0
    %2929 = vmatprep.subr.mxu0 0.0
    %2930 = vmatpush1.xpose.msra.mxu0 0.0
    %2931 = vmatprep.subr.mxu0 0.0
    %2932 = vmatpush1.xpose.msra.mxu0 0.0
    %2933 = vmatprep.subr.mxu0 0.0
    %2934 = vmatpush1.xpose.msra.mxu0 0.0
    %2935 = vmatprep.subr.mxu0 0.0
    %2936 = vmatpush1.xpose.msra.mxu0 0.0
    %2937 = vmatprep.subr.mxu0 0.0
    %2938 = vmatpush1.xpose.msra.mxu0 0.0
    %2939 = vmatprep.subr.mxu0 0.0
    %2940 = vmatpush1.xpose.msra.mxu0 0.0
    %2941 = vmatprep.subr.mxu0 0.0
    %2942 = vmatpush1.xpose.msra.mxu0 0.0
    %2943 = vmatprep.subr.mxu0 0.0
    %2944 = vmatpush1.xpose.msra.mxu0 0.0
    %2945 = vmatprep.subr.mxu0 0.0
    %2946 = vmatpush1.xpose.msra.mxu0 0.0
    %2947 = vmatprep.subr.mxu0 0.0
    %2948 = vmatpush1.xpose.msra.mxu0 0.0
    %2949 = vmatprep.subr.mxu0 0.0
    %2950 = vmatpush1.xpose.msra.mxu0 0.0
    %2951 = vmatprep.subr.mxu0 0.0
    %2952 = vmatpush1.xpose.msra.mxu0 0.0
    %2953 = vmatprep.subr.mxu0 0.0
    %2954 = vmatpush1.xpose.msra.mxu0 0.0
    %2955 = vmatprep.subr.mxu0 0.0
    %2956 = vmatpush1.xpose.msra.mxu0 0.0
    %2957 = vmatprep.subr.mxu0 0.0
    %2958 = vmatpush1.xpose.msra.mxu0 0.0
    %2959 = vmatprep.subr.mxu0 0.0
    %2960 = vmatpush1.xpose.msra.mxu0 0.0
    %2961 = vmatprep.subr.mxu0 0.0
    %2962 = vmatpush1.xpose.msra.mxu0 0.0
    %2963 = vmatprep.subr.mxu0 0.0
    %2964 = vmatpush1.xpose.msra.mxu0 0.0
    %2965 = vmatprep.subr.mxu0 0.0
    %2966 = vmatpush1.xpose.msra.mxu0 0.0
    %2967 = vmatprep.subr.mxu0 0.0
    %2968 = vmatpush1.xpose.msra.mxu0 0.0
    %2969 = vmatprep.subr.mxu0 0.0
    %2970 = vmatpush1.xpose.msra.mxu0 0.0
    %2971 = vmatprep.mubr.f32.mxu0 0.0
    %2972 = vmatmul.mubr.f32.gmra.mrb[0].mxu0 %v2903
    %v2973 = vpop.f32.mrb[0].mxu0
    %v2974 = vadd.f32 %v39, %v2973
    %v2975 = vpop.f32.mrb[0].mxu0
    %2976 = vdwg.mxu0
    %v2977 = vsel %vm133, %v2974, -inf
    %2978 = vmax.xlane.f32.xlu0 %v2977
    %v2979 = vpop.xlane.xlu0 %2978
    %v2980 = vsub.f32 %v2974, %v2979
    %v2981 = vmul.f32 %v2980, 1.442695
    %v2982 = vpow.pop %v2981
    %v2983 = vsel %vm133, %v2982, 0.0
    %2984 = vadd.xlane.f32.xlu0 %v2983
    %v2985 = vpop.xlane.xlu0 %2984
    %v2986 = vrcp.pop %v2985
    %v2987 = vmul.f32 %v2982, %v2986
    %2988 = vrot.lane.b32.xlu0 %v1899, 112
    %v2989 = vpop.permute.xlu0 %2988
    %v2992 = vsel %vm133, %v2987, 0
    %2994 = vmatprep.subr.mxu0 0.0
    %2995 = vmatpush1.msra.mxu0 %v2989
    %2996 = vmatprep.subr.mxu0 0.0
    %2997 = vmatpush1.msra.mxu0 0.0
    %2998 = vmatprep.subr.mxu0 0.0
    %2999 = vmatpush1.msra.mxu0 0.0
    %3000 = vmatprep.subr.mxu0 0.0
    %3001 = vmatpush1.msra.mxu0 0.0
    %3002 = vmatprep.subr.mxu0 0.0
    %3003 = vmatpush1.msra.mxu0 0.0
    %3004 = vmatprep.subr.mxu0 0.0
    %3005 = vmatpush1.msra.mxu0 0.0
    %3006 = vmatprep.subr.mxu0 0.0
    %3007 = vmatpush1.msra.mxu0 0.0
    %3008 = vmatprep.subr.mxu0 0.0
    %3009 = vmatpush1.msra.mxu0 0.0
    %3010 = vmatprep.subr.mxu0 0.0
    %3011 = vmatpush1.msra.mxu0 0.0
    %3012 = vmatprep.subr.mxu0 0.0
    %3013 = vmatpush1.msra.mxu0 0.0
    %3014 = vmatprep.subr.mxu0 0.0
    %3015 = vmatpush1.msra.mxu0 0.0
    %3016 = vmatprep.subr.mxu0 0.0
    %3017 = vmatpush1.msra.mxu0 0.0
    %3018 = vmatprep.subr.mxu0 0.0
    %3019 = vmatpush1.msra.mxu0 0.0
    %3020 = vmatprep.subr.mxu0 0.0
    %3021 = vmatpush1.msra.mxu0 0.0
    %3022 = vmatprep.subr.mxu0 0.0
    %3023 = vmatpush1.msra.mxu0 0.0
    %3024 = vmatprep.subr.mxu0 0.0
    %3025 = vmatpush1.msra.mxu0 0.0
    %3026 = vmatprep.subr.mxu0 0.0
    %3027 = vmatpush1.msra.mxu0 0.0
    %3028 = vmatprep.subr.mxu0 0.0
    %3029 = vmatpush1.msra.mxu0 0.0
    %3030 = vmatprep.subr.mxu0 0.0
    %3031 = vmatpush1.msra.mxu0 0.0
    %3032 = vmatprep.subr.mxu0 0.0
    %3033 = vmatpush1.msra.mxu0 0.0
    %3034 = vmatprep.subr.mxu0 0.0
    %3035 = vmatpush1.msra.mxu0 0.0
    %3036 = vmatprep.subr.mxu0 0.0
    %3037 = vmatpush1.msra.mxu0 0.0
    %3038 = vmatprep.subr.mxu0 0.0
    %3039 = vmatpush1.msra.mxu0 0.0
    %3040 = vmatprep.subr.mxu0 0.0
    %3041 = vmatpush1.msra.mxu0 0.0
    %3042 = vmatprep.subr.mxu0 0.0
    %3043 = vmatpush1.msra.mxu0 0.0
    %3044 = vmatprep.subr.mxu0 0.0
    %3045 = vmatpush1.msra.mxu0 0.0
    %3046 = vmatprep.subr.mxu0 0.0
    %3047 = vmatpush1.msra.mxu0 0.0
    %3048 = vmatprep.subr.mxu0 0.0
    %3049 = vmatpush1.msra.mxu0 0.0
    %3050 = vmatprep.subr.mxu0 0.0
    %3051 = vmatpush1.msra.mxu0 0.0
    %3052 = vmatprep.subr.mxu0 0.0
    %3053 = vmatpush1.msra.mxu0 0.0
    %3054 = vmatprep.subr.mxu0 0.0
    %3055 = vmatpush1.msra.mxu0 0.0
    %3056 = vmatprep.subr.mxu0 0.0
    %3057 = vmatpush1.msra.mxu0 0.0
    %3058 = vmatprep.mubr.f32.mxu0 0.0
    %3059 = vmatmul.mubr.f32.gmra.mrb[0].mxu0 %v2992
    %v3060 = vpop.f32.mrb[0].mxu0
    %v3061 = vadd.f32 0.0, %v3060
    %v3062 = vpop.f32.mrb[0].mxu0
    %3063 = vdwg.mxu0
    %3064 = vrot.lane.b32.xlu0 %v1711, 104
    %v3065 = vpop.permute.xlu0 %3064
    %3066 = vrot.lane.b32.xlu0 %v1806, 104
    %v3067 = vpop.permute.xlu0 %3066
    %v3068 = vsel %vm133, %v3065, 0
    %v3070 = vsel %vm133, %v3067, 0
    %3072 = vmatprep.subr.mxu0 0.0
    %3073 = vmatpush1.xpose.msra.mxu0 %v3070
    %3074 = vmatprep.subr.mxu0 0.0
    %3075 = vmatpush1.xpose.msra.mxu0 0.0
    %3076 = vmatprep.subr.mxu0 0.0
    %3077 = vmatpush1.xpose.msra.mxu0 0.0
    %3078 = vmatprep.subr.mxu0 0.0
    %3079 = vmatpush1.xpose.msra.mxu0 0.0
    %3080 = vmatprep.subr.mxu0 0.0
    %3081 = vmatpush1.xpose.msra.mxu0 0.0
    %3082 = vmatprep.subr.mxu0 0.0
    %3083 = vmatpush1.xpose.msra.mxu0 0.0
    %3084 = vmatprep.subr.mxu0 0.0
    %3085 = vmatpush1.xpose.msra.mxu0 0.0
    %3086 = vmatprep.subr.mxu0 0.0
    %3087 = vmatpush1.xpose.msra.mxu0 0.0
    %3088 = vmatprep.subr.mxu0 0.0
    %3089 = vmatpush1.xpose.msra.mxu0 0.0
    %3090 = vmatprep.subr.mxu0 0.0
    %3091 = vmatpush1.xpose.msra.mxu0 0.0
    %3092 = vmatprep.subr.mxu0 0.0
    %3093 = vmatpush1.xpose.msra.mxu0 0.0
    %3094 = vmatprep.subr.mxu0 0.0
    %3095 = vmatpush1.xpose.msra.mxu0 0.0
    %3096 = vmatprep.subr.mxu0 0.0
    %3097 = vmatpush1.xpose.msra.mxu0 0.0
    %3098 = vmatprep.subr.mxu0 0.0
    %3099 = vmatpush1.xpose.msra.mxu0 0.0
    %3100 = vmatprep.subr.mxu0 0.0
    %3101 = vmatpush1.xpose.msra.mxu0 0.0
    %3102 = vmatprep.subr.mxu0 0.0
    %3103 = vmatpush1.xpose.msra.mxu0 0.0
    %3104 = vmatprep.subr.mxu0 0.0
    %3105 = vmatpush1.xpose.msra.mxu0 0.0
    %3106 = vmatprep.subr.mxu0 0.0
    %3107 = vmatpush1.xpose.msra.mxu0 0.0
    %3108 = vmatprep.subr.mxu0 0.0
    %3109 = vmatpush1.xpose.msra.mxu0 0.0
    %3110 = vmatprep.subr.mxu0 0.0
    %3111 = vmatpush1.xpose.msra.mxu0 0.0
    %3112 = vmatprep.subr.mxu0 0.0
    %3113 = vmatpush1.xpose.msra.mxu0 0.0
    %3114 = vmatprep.subr.mxu0 0.0
    %3115 = vmatpush1.xpose.msra.mxu0 0.0
    %3116 = vmatprep.subr.mxu0 0.0
    %3117 = vmatpush1.xpose.msra.mxu0 0.0
    %3118 = vmatprep.subr.mxu0 0.0
    %3119 = vmatpush1.xpose.msra.mxu0 0.0
    %3120 = vmatprep.subr.mxu0 0.0
    %3121 = vmatpush1.xpose.msra.mxu0 0.0
    %3122 = vmatprep.subr.mxu0 0.0
    %3123 = vmatpush1.xpose.msra.mxu0 0.0
    %3124 = vmatprep.subr.mxu0 0.0
    %3125 = vmatpush1.xpose.msra.mxu0 0.0
    %3126 = vmatprep.subr.mxu0 0.0
    %3127 = vmatpush1.xpose.msra.mxu0 0.0
    %3128 = vmatprep.subr.mxu0 0.0
    %3129 = vmatpush1.xpose.msra.mxu0 0.0
    %3130 = vmatprep.subr.mxu0 0.0
    %3131 = vmatpush1.xpose.msra.mxu0 0.0
    %3132 = vmatprep.subr.mxu0 0.0
    %3133 = vmatpush1.xpose.msra.mxu0 0.0
    %3134 = vmatprep.subr.mxu0 0.0
    %3135 = vmatpush1.xpose.msra.mxu0 0.0
    %3136 = vmatprep.mubr.f32.mxu0 0.0
    %3137 = vmatmul.mubr.f32.gmra.mrb[0].mxu0 %v3068
    %v3138 = vpop.f32.mrb[0].mxu0
    %v3139 = vadd.f32 %v39, %v3138
    %v3140 = vpop.f32.mrb[0].mxu0
    %3141 = vdwg.mxu0
    %v3142 = vsel %vm133, %v3139, -inf
    %3143 = vmax.xlane.f32.xlu0 %v3142
    %v3144 = vpop.xlane.xlu0 %3143
    %v3145 = vsub.f32 %v3139, %v3144
    %v3146 = vmul.f32 %v3145, 1.442695
    %v3147 = vpow.pop %v3146
    %v3148 = vsel %vm133, %v3147, 0.0
    %3149 = vadd.xlane.f32.xlu0 %v3148
    %v3150 = vpop.xlane.xlu0 %3149
    %v3151 = vrcp.pop %v3150
    %v3152 = vmul.f32 %v3147, %v3151
    %3153 = vrot.lane.b32.xlu0 %v1899, 104
    %v3154 = vpop.permute.xlu0 %3153
    %v3157 = vsel %vm133, %v3152, 0
    %3159 = vmatprep.subr.mxu0 0.0
    %3160 = vmatpush1.msra.mxu0 %v3154
    %3161 = vmatprep.subr.mxu0 0.0
    %3162 = vmatpush1.msra.mxu0 0.0
    %3163 = vmatprep.subr.mxu0 0.0
    %3164 = vmatpush1.msra.mxu0 0.0
    %3165 = vmatprep.subr.mxu0 0.0
    %3166 = vmatpush1.msra.mxu0 0.0
    %3167 = vmatprep.subr.mxu0 0.0
    %3168 = vmatpush1.msra.mxu0 0.0
    %3169 = vmatprep.subr.mxu0 0.0
    %3170 = vmatpush1.msra.mxu0 0.0
    %3171 = vmatprep.subr.mxu0 0.0
    %3172 = vmatpush1.msra.mxu0 0.0
    %3173 = vmatprep.subr.mxu0 0.0
    %3174 = vmatpush1.msra.mxu0 0.0
    %3175 = vmatprep.subr.mxu0 0.0
    %3176 = vmatpush1.msra.mxu0 0.0
    %3177 = vmatprep.subr.mxu0 0.0
    %3178 = vmatpush1.msra.mxu0 0.0
    %3179 = vmatprep.subr.mxu0 0.0
    %3180 = vmatpush1.msra.mxu0 0.0
    %3181 = vmatprep.subr.mxu0 0.0
    %3182 = vmatpush1.msra.mxu0 0.0
    %3183 = vmatprep.subr.mxu0 0.0
    %3184 = vmatpush1.msra.mxu0 0.0
    %3185 = vmatprep.subr.mxu0 0.0
    %3186 = vmatpush1.msra.mxu0 0.0
    %3187 = vmatprep.subr.mxu0 0.0
    %3188 = vmatpush1.msra.mxu0 0.0
    %3189 = vmatprep.subr.mxu0 0.0
    %3190 = vmatpush1.msra.mxu0 0.0
    %3191 = vmatprep.subr.mxu0 0.0
    %3192 = vmatpush1.msra.mxu0 0.0
    %3193 = vmatprep.subr.mxu0 0.0
    %3194 = vmatpush1.msra.mxu0 0.0
    %3195 = vmatprep.subr.mxu0 0.0
    %3196 = vmatpush1.msra.mxu0 0.0
    %3197 = vmatprep.subr.mxu0 0.0
    %3198 = vmatpush1.msra.mxu0 0.0
    %3199 = vmatprep.subr.mxu0 0.0
    %3200 = vmatpush1.msra.mxu0 0.0
    %3201 = vmatprep.subr.mxu0 0.0
    %3202 = vmatpush1.msra.mxu0 0.0
    %3203 = vmatprep.subr.mxu0 0.0
    %3204 = vmatpush1.msra.mxu0 0.0
    %3205 = vmatprep.subr.mxu0 0.0
    %3206 = vmatpush1.msra.mxu0 0.0
    %3207 = vmatprep.subr.mxu0 0.0
    %3208 = vmatpush1.msra.mxu0 0.0
    %3209 = vmatprep.subr.mxu0 0.0
    %3210 = vmatpush1.msra.mxu0 0.0
    %3211 = vmatprep.subr.mxu0 0.0
    %3212 = vmatpush1.msra.mxu0 0.0
    %3213 = vmatprep.subr.mxu0 0.0
    %3214 = vmatpush1.msra.mxu0 0.0
    %3215 = vmatprep.subr.mxu0 0.0
    %3216 = vmatpush1.msra.mxu0 0.0
    %3217 = vmatprep.subr.mxu0 0.0
    %3218 = vmatpush1.msra.mxu0 0.0
    %3219 = vmatprep.subr.mxu0 0.0
    %3220 = vmatpush1.msra.mxu0 0.0
    %3221 = vmatprep.subr.mxu0 0.0
    %3222 = vmatpush1.msra.mxu0 0.0
    %3223 = vmatprep.mubr.f32.mxu0 0.0
    %3224 = vmatmul.mubr.f32.gmra.mrb[0].mxu0 %v3157
    %v3225 = vpop.f32.mrb[0].mxu0
    %v3226 = vadd.f32 0.0, %v3225
    %v3227 = vpop.f32.mrb[0].mxu0
    %3228 = vdwg.mxu0
    %3230 = vrot.lane.b32.xlu0 %v2896, 8
    %v3231 = vpop.permute.xlu0 %3230
    %3234 = vrot.lane.b32.xlu0 %v3061, 16
    %v3235 = vpop.permute.xlu0 %3234
    %3238 = vrot.lane.b32.xlu0 %v3226, 24
    %v3239 = vpop.permute.xlu0 %3238
    %v3241 = vsel %vm133, %v2730, %v3231
    %v3242 = vsel %vm804, %v3241, %v3235
    %v3243 = vsel %vm806, %v3242, %v3239
    %v3244 = vlaneseq
    %v3245 = vshrl.u32 %v3244, 7
    %v3246 = vsub.s32 3, %v3245
    %v3247 = vrot.slane %v40, %v3246
    %3248 = vrot.lane.b32.xlu0 %v1625, 32
    %v3249 = vpop.permute.xlu0 %3248
    %3250 = vrot.lane.b32.xlu0 %v1626, 32
    %v3251 = vpop.permute.xlu0 %3250
    %3252 = vrot.lane.b32.xlu0 %v1627, 32
    %v3253 = vpop.permute.xlu0 %3252
    %3254 = vrot.lane.b32.xlu0 %v1628, 32
    %v3255 = vpop.permute.xlu0 %3254
    %v3261 = vsel %vm46, %v2572, 0
    %v3264 = vsel %vm46, %v3243, 0
    %3266 = vmatprep.subr.mxu0 0.0
    %3267 = vmatpush1.msra.mxu0 %v3249
    %3268 = vmatprep.subr.mxu0 0.0
    %3269 = vmatpush1.msra.mxu0 %v3251
    %3270 = vmatprep.subr.mxu0 0.0
    %3271 = vmatpush1.msra.mxu0 %v3253
    %3272 = vmatprep.subr.mxu0 0.0
    %3273 = vmatpush1.msra.mxu0 %v3255
    %3274 = vmatprep.subr.mxu0 0.0
    %3275 = vmatpush1.msra.mxu0 0.0
    %3276 = vmatprep.subr.mxu0 0.0
    %3277 = vmatpush1.msra.mxu0 0.0
    %3278 = vmatprep.subr.mxu0 0.0
    %3279 = vmatpush1.msra.mxu0 0.0
    %3280 = vmatprep.subr.mxu0 0.0
    %3281 = vmatpush1.msra.mxu0 0.0
    %3282 = vmatprep.subr.mxu0 0.0
    %3283 = vmatpush1.msra.mxu0 0.0
    %3284 = vmatprep.subr.mxu0 0.0
    %3285 = vmatpush1.msra.mxu0 0.0
    %3286 = vmatprep.subr.mxu0 0.0
    %3287 = vmatpush1.msra.mxu0 0.0
    %3288 = vmatprep.subr.mxu0 0.0
    %3289 = vmatpush1.msra.mxu0 0.0
    %3290 = vmatprep.subr.mxu0 0.0
    %3291 = vmatpush1.msra.mxu0 0.0
    %3292 = vmatprep.subr.mxu0 0.0
    %3293 = vmatpush1.msra.mxu0 0.0
    %3294 = vmatprep.subr.mxu0 0.0
    %3295 = vmatpush1.msra.mxu0 0.0
    %3296 = vmatprep.subr.mxu0 0.0
    %3297 = vmatpush1.msra.mxu0 0.0
    %3298 = vmatprep.subr.mxu0 0.0
    %3299 = vmatpush1.msra.mxu0 0.0
    %3300 = vmatprep.subr.mxu0 0.0
    %3301 = vmatpush1.msra.mxu0 0.0
    %3302 = vmatprep.subr.mxu0 0.0
    %3303 = vmatpush1.msra.mxu0 0.0
    %3304 = vmatprep.subr.mxu0 0.0
    %3305 = vmatpush1.msra.mxu0 0.0
    %3306 = vmatprep.subr.mxu0 0.0
    %3307 = vmatpush1.msra.mxu0 0.0
    %3308 = vmatprep.subr.mxu0 0.0
    %3309 = vmatpush1.msra.mxu0 0.0
    %3310 = vmatprep.subr.mxu0 0.0
    %3311 = vmatpush1.msra.mxu0 0.0
    %3312 = vmatprep.subr.mxu0 0.0
    %3313 = vmatpush1.msra.mxu0 0.0
    %3314 = vmatprep.subr.mxu0 0.0
    %3315 = vmatpush1.msra.mxu0 0.0
    %3316 = vmatprep.subr.mxu0 0.0
    %3317 = vmatpush1.msra.mxu0 0.0
    %3318 = vmatprep.subr.mxu0 0.0
    %3319 = vmatpush1.msra.mxu0 0.0
    %3320 = vmatprep.subr.mxu0 0.0
    %3321 = vmatpush1.msra.mxu0 0.0
    %3322 = vmatprep.subr.mxu0 0.0
    %3323 = vmatpush1.msra.mxu0 0.0
    %3324 = vmatprep.subr.mxu0 0.0
    %3325 = vmatpush1.msra.mxu0 0.0
    %3326 = vmatprep.subr.mxu0 0.0
    %3327 = vmatpush1.msra.mxu0 0.0
    %3328 = vmatprep.subr.mxu0 0.0
    %3329 = vmatpush1.msra.mxu0 0.0
    %3330 = vmatprep.mubr.f32.mxu0 0.0
    %3331 = vmatmul.mubr.f32.gmra.mrb[0].mxu0 %v3261
    %v3332 = vpop.f32.mrb[0].mxu0
    %v3333 = vadd.f32 %v3247, %v3332
    %v3334 = vpop.f32.mrb[0].mxu0
    %3335 = vmatprep.mubr.f32.mxu0 0.0
    %3336 = vmatmul.mubr.f32.gmra.mrb[0].mxu0 %v3264
    %v3337 = vpop.f32.mrb[0].mxu0
    %v3338 = vadd.f32 %v3247, %v3337
    %v3339 = vpop.f32.mrb[0].mxu0
    %3340 = vdwg.mxu0
    %v3341 = vadd.f32 %v3333, %v1623
    %v3342 = vadd.f32 %v3338, %v1624
    %v3343 = vsel %vm46, %v3341, 0.0
    %3344 = vadd.xlane.f32.xlu0 %v3343
    %v3345 = vpop.xlane.xlu0 %3344
    %v3346 = vsel %vm46, %v3342, 0.0
    %3347 = vadd.xlane.f32.xlu0 %v3346
    %v3348 = vpop.xlane.xlu0 %3347
    %v3349 = vmul.f32 %v3345, %v1592
    %v3350 = vmul.f32 %v3348, %v1592
    %v3351 = vsub.f32 %v3341, %v3349
    %v3352 = vsub.f32 %v3342, %v3350
    %v3353 = vmul.f32 %v3351, %v3351
    %v3354 = vmul.f32 %v3352, %v3352
    %v3355 = vsel %vm46, %v3353, 0.0
    %3356 = vadd.xlane.f32.xlu0 %v3355
    %v3357 = vpop.xlane.xlu0 %3356
    %v3358 = vsel %vm46, %v3354, 0.0
    %3359 = vadd.xlane.f32.xlu0 %v3358
    %v3360 = vpop.xlane.xlu0 %3359
    %v3361 = vmul.f32 %v3357, %v1592
    %v3362 = vmul.f32 %v3360, %v1592
    %v3363 = vadd.f32 %v3361, 1e-05
    %v3364 = vadd.f32 %v3362, 1e-05
    %v3365 = vrsqrt.pop %v3363
    %v3366 = vrsqrt.pop %v3364
    %v3367 = vmul.f32 %v3351, %v3365
    %v3368 = vmul.f32 %v3352, %v3366
    %v3369 = vlaneseq
    %v3370 = vshrl.u32 %v3369, 7
    %v3371 = vsub.s32 4, %v3370
    %v3372 = vrot.slane %v40, %v3371
    %v3373 = vmul.f32 %v3367, %v3372
    %v3374 = vmul.f32 %v3368, %v3372
    %v3375 = vlaneseq
    %v3376 = vshrl.u32 %v3375, 7
    %v3377 = vsub.s32 5, %v3376
    %v3378 = vrot.slane %v40, %v3377
    %v3379 = vadd.f32 %v3373, %v3378
    %v3380 = vadd.f32 %v3374, %v3378
    %v3381 = vld [vmem:[%s4] sm:$0xff]
    %v3382 = vld [vmem:[%s4 + $0x8] sm:$0xff]
    %v3383 = vld [vmem:[%s4 + $0x10] sm:$0xff]
    %v3384 = vld [vmem:[%s4 + $0x18] sm:$0xff]
    %v3385 = vld [vmem:[%s5] sm:$0x1]
    %v3387 = vlaneseq
    %v3388 = vshrl.u32 %v3387, 7
    %v3389 = vsub.s32 0, %v3388
    %v3390 = vrot.slane %v3385, %v3389
    %v3393 = vsel %vm46, %v3379, 0
    %v3396 = vsel %vm46, %v3380, 0
    %3398 = vmatprep.subr.mxu0 0.0
    %3399 = vmatpush1.msra.mxu0 %v3381
    %3400 = vmatprep.subr.mxu0 0.0
    %3401 = vmatpush1.msra.mxu0 %v3382
    %3402 = vmatprep.subr.mxu0 0.0
    %3403 = vmatpush1.msra.mxu0 %v3383
    %3404 = vmatprep.subr.mxu0 0.0
    %3405 = vmatpush1.msra.mxu0 %v3384
    %3406 = vmatprep.subr.mxu0 0.0
    %3407 = vmatpush1.msra.mxu0 0.0
    %3408 = vmatprep.subr.mxu0 0.0
    %3409 = vmatpush1.msra.mxu0 0.0
    %3410 = vmatprep.subr.mxu0 0.0
    %3411 = vmatpush1.msra.mxu0 0.0
    %3412 = vmatprep.subr.mxu0 0.0
    %3413 = vmatpush1.msra.mxu0 0.0
    %3414 = vmatprep.subr.mxu0 0.0
    %3415 = vmatpush1.msra.mxu0 0.0
    %3416 = vmatprep.subr.mxu0 0.0
    %3417 = vmatpush1.msra.mxu0 0.0
    %3418 = vmatprep.subr.mxu0 0.0
    %3419 = vmatpush1.msra.mxu0 0.0
    %3420 = vmatprep.subr.mxu0 0.0
    %3421 = vmatpush1.msra.mxu0 0.0
    %3422 = vmatprep.subr.mxu0 0.0
    %3423 = vmatpush1.msra.mxu0 0.0
    %3424 = vmatprep.subr.mxu0 0.0
    %3425 = vmatpush1.msra.mxu0 0.0
    %3426 = vmatprep.subr.mxu0 0.0
    %3427 = vmatpush1.msra.mxu0 0.0
    %3428 = vmatprep.subr.mxu0 0.0
    %3429 = vmatpush1.msra.mxu0 0.0
    %3430 = vmatprep.subr.mxu0 0.0
    %3431 = vmatpush1.msra.mxu0 0.0
    %3432 = vmatprep.subr.mxu0 0.0
    %3433 = vmatpush1.msra.mxu0 0.0
    %3434 = vmatprep.subr.mxu0 0.0
    %3435 = vmatpush1.msra.mxu0 0.0
    %3436 = vmatprep.subr.mxu0 0.0
    %3437 = vmatpush1.msra.mxu0 0.0
    %3438 = vmatprep.subr.mxu0 0.0
    %3439 = vmatpush1.msra.mxu0 0.0
    %3440 = vmatprep.subr.mxu0 0.0
    %3441 = vmatpush1.msra.mxu0 0.0
    %3442 = vmatprep.subr.mxu0 0.0
    %3443 = vmatpush1.msra.mxu0 0.0
    %3444 = vmatprep.subr.mxu0 0.0
    %3445 = vmatpush1.msra.mxu0 0.0
    %3446 = vmatprep.subr.mxu0 0.0
    %3447 = vmatpush1.msra.mxu0 0.0
    %3448 = vmatprep.subr.mxu0 0.0
    %3449 = vmatpush1.msra.mxu0 0.0
    %3450 = vmatprep.subr.mxu0 0.0
    %3451 = vmatpush1.msra.mxu0 0.0
    %3452 = vmatprep.subr.mxu0 0.0
    %3453 = vmatpush1.msra.mxu0 0.0
    %3454 = vmatprep.subr.mxu0 0.0
    %3455 = vmatpush1.msra.mxu0 0.0
    %3456 = vmatprep.subr.mxu0 0.0
    %3457 = vmatpush1.msra.mxu0 0.0
    %3458 = vmatprep.subr.mxu0 0.0
    %3459 = vmatpush1.msra.mxu0 0.0
    %3460 = vmatprep.subr.mxu0 0.0
    %3461 = vmatpush1.msra.mxu0 0.0
    %3462 = vmatprep.mubr.f32.mxu0 0.0
    %3463 = vmatmul.mubr.f32.gmra.mrb[0].mxu0 %v3393
    %v3464 = vpop.f32.mrb[0].mxu0
    %v3465 = vadd.f32 %v3390, %v3464
    %v3466 = vpop.f32.mrb[0].mxu0
    %3467 = vmatprep.mubr.f32.mxu0 0.0
    %3468 = vmatmul.mubr.f32.gmra.mrb[0].mxu0 %v3396
    %v3469 = vpop.f32.mrb[0].mxu0
    %v3470 = vadd.f32 %v3390, %v3469
    %v3471 = vpop.f32.mrb[0].mxu0
    %3472 = vdwg.mxu0
    %v3473 = vmax.f32 %v3465, 0.0
    %v3474 = vmax.f32 %v3470, 0.0
    %v3475 = vld [vmem:[%s6] sm:$0xff]
    %v3476 = vld [vmem:[%s6 + $0x8] sm:$0xff]
    %v3477 = vld [vmem:[%s6 + $0x10] sm:$0xff]
    %v3478 = vld [vmem:[%s6 + $0x18] sm:$0xff]
    %v3479 = vld [vmem:[%s6 + $0x20] sm:$0xff]
    %v3480 = vld [vmem:[%s6 + $0x28] sm:$0xff]
    %v3481 = vld [vmem:[%s6 + $0x30] sm:$0xff]
    %v3482 = vld [vmem:[%s6 + $0x38] sm:$0xff]
    %v3483 = vld [vmem:[%s6 + $0x40] sm:$0xff]
    %v3484 = vld [vmem:[%s6 + $0x48] sm:$0xff]
    %v3485 = vld [vmem:[%s6 + $0x50] sm:$0xff]
    %v3486 = vld [vmem:[%s6 + $0x58] sm:$0xff]
    %v3487 = vld [vmem:[%s6 + $0x60] sm:$0xff]
    %v3488 = vld [vmem:[%s6 + $0x68] sm:$0xff]
    %v3489 = vld [vmem:[%s6 + $0x70] sm:$0xff]
    %v3490 = vld [vmem:[%s6 + $0x78] sm:$0xff]
    %v3491 = vlaneseq
    %v3492 = vshrl.u32 %v3491, 7
    %v3493 = vsub.s32 6, %v3492
    %v3494 = vrot.slane %v40, %v3493
    %3495 = vmatprep.subr.mxu0 0.0
    %3496 = vmatpush1.msra.mxu0 %v3475
    %3497 = vmatprep.subr.mxu0 0.0
    %3498 = vmatpush1.msra.mxu0 %v3476
    %3499 = vmatprep.subr.mxu0 0.0
    %3500 = vmatpush1.msra.mxu0 %v3477
    %3501 = vmatprep.subr.mxu0 0.0
    %3502 = vmatpush1.msra.mxu0 %v3478
    %3503 = vmatprep.subr.mxu0 0.0
    %3504 = vmatpush1.msra.mxu0 %v3479
    %3505 = vmatprep.subr.mxu0 0.0
    %3506 = vmatpush1.msra.mxu0 %v3480
    %3507 = vmatprep.subr.mxu0 0.0
    %3508 = vmatpush1.msra.mxu0 %v3481
    %3509 = vmatprep.subr.mxu0 0.0
    %3510 = vmatpush1.msra.mxu0 %v3482
    %3511 = vmatprep.subr.mxu0 0.0
    %3512 = vmatpush1.msra.mxu0 %v3483
    %3513 = vmatprep.subr.mxu0 0.0
    %3514 = vmatpush1.msra.mxu0 %v3484
    %3515 = vmatprep.subr.mxu0 0.0
    %3516 = vmatpush1.msra.mxu0 %v3485
    %3517 = vmatprep.subr.mxu0 0.0
    %3518 = vmatpush1.msra.mxu0 %v3486
    %3519 = vmatprep.subr.mxu0 0.0
    %3520 = vmatpush1.msra.mxu0 %v3487
    %3521 = vmatprep.subr.mxu0 0.0
    %3522 = vmatpush1.msra.mxu0 %v3488
    %3523 = vmatprep.subr.mxu0 0.0
    %3524 = vmatpush1.msra.mxu0 %v3489
    %3525 = vmatprep.subr.mxu0 0.0
    %3526 = vmatpush1.msra.mxu0 %v3490
    %3527 = vmatprep.subr.mxu0 0.0
    %3528 = vmatpush1.msra.mxu0 0.0
    %3529 = vmatprep.subr.mxu0 0.0
    %3530 = vmatpush1.msra.mxu0 0.0
    %3531 = vmatprep.subr.mxu0 0.0
    %3532 = vmatpush1.msra.mxu0 0.0
    %3533 = vmatprep.subr.mxu0 0.0
    %3534 = vmatpush1.msra.mxu0 0.0
    %3535 = vmatprep.subr.mxu0 0.0
    %3536 = vmatpush1.msra.mxu0 0.0
    %3537 = vmatprep.subr.mxu0 0.0
    %3538 = vmatpush1.msra.mxu0 0.0
    %3539 = vmatprep.subr.mxu0 0.0
    %3540 = vmatpush1.msra.mxu0 0.0
    %3541 = vmatprep.subr.mxu0 0.0
    %3542 = vmatpush1.msra.mxu0 0.0
    %3543 = vmatprep.subr.mxu0 0.0
    %3544 = vmatpush1.msra.mxu0 0.0
    %3545 = vmatprep.subr.mxu0 0.0
    %3546 = vmatpush1.msra.mxu0 0.0
    %3547 = vmatprep.subr.mxu0 0.0
    %3548 = vmatpush1.msra.mxu0 0.0
    %3549 = vmatprep.subr.mxu0 0.0
    %3550 = vmatpush1.msra.mxu0 0.0
    %3551 = vmatprep.subr.mxu0 0.0
    %3552 = vmatpush1.msra.mxu0 0.0
    %3553 = vmatprep.subr.mxu0 0.0
    %3554 = vmatpush1.msra.mxu0 0.0
    %3555 = vmatprep.subr.mxu0 0.0
    %3556 = vmatpush1.msra.mxu0 0.0
    %3557 = vmatprep.subr.mxu0 0.0
    %3558 = vmatpush1.msra.mxu0 0.0
    %3559 = vmatprep.mubr.f32.mxu0 0.0
    %3560 = vmatmul.mubr.f32.gmra.mrb[0].mxu0 %v3473
    %v3561 = vpop.f32.mrb[0].mxu0
    %v3562 = vadd.f32 %v3494, %v3561
    %v3563 = vpop.f32.mrb[0].mxu0
    %3564 = vmatprep.mubr.f32.mxu0 0.0
    %3565 = vmatmul.mubr.f32.gmra.mrb[0].mxu0 %v3474
    %v3566 = vpop.f32.mrb[0].mxu0
    %v3567 = vadd.f32 %v3494, %v3566
    %v3568 = vpop.f32.mrb[0].mxu0
    %3569 = vdwg.mxu0
    %v3570 = vadd.f32 %v3562, %v3379
    %v3571 = vadd.f32 %v3567, %v3380
    %v3572 = vsel %vm46, %v3570, 0.0
    %3573 = vadd.xlane.f32.xlu0 %v3572
    %v3574 = vpop.xlane.xlu0 %3573
    %v3575 = vsel %vm46, %v3571, 0.0
    %3576 = vadd.xlane.f32.xlu0 %v3575
    %v3577 = vpop.xlane.xlu0 %3576
    %v3578 = vmul.f32 %v3574, %v1592
    %v3579 = vmul.f32 %v3577, %v1592
    %v3580 = vsub.f32 %v3570, %v3578
    %v3581 = vsub.f32 %v3571, %v3579
    %v3582 = vmul.f32 %v3580, %v3580
    %v3583 = vmul.f32 %v3581, %v3581
    %v3584 = vsel %vm46, %v3582, 0.0
    %3585 = vadd.xlane.f32.xlu0 %v3584
    %v3586 = vpop.xlane.xlu0 %3585
    %v3587 = vsel %vm46, %v3583, 0.0
    %3588 = vadd.xlane.f32.xlu0 %v3587
    %v3589 = vpop.xlane.xlu0 %3588
    %v3590 = vmul.f32 %v3586, %v1592
    %v3591 = vmul.f32 %v3589, %v1592
    %v3592 = vadd.f32 %v3590, 1e-05
    %v3593 = vadd.f32 %v3591, 1e-05
    %v3594 = vrsqrt.pop %v3592
    %v3595 = vrsqrt.pop %v3593
    %v3596 = vmul.f32 %v3580, %v3594
    %v3597 = vmul.f32 %v3581, %v3595
    %v3598 = vlaneseq
    %v3599 = vshrl.u32 %v3598, 7
    %v3600 = vsub.s32 7, %v3599
    %v3601 = vrot.slane %v40, %v3600
    %v3602 = vmul.f32 %v3596, %v3601
    %v3603 = vmul.f32 %v3597, %v3601
    %v3604 = vlaneseq
    %v3605 = vshrl.u32 %v3604, 7
    %v3606 = vsub.s32 0, %v3605
    %v3607 = vrot.slane %v41, %v3606
    %v3608 = vadd.f32 %v3602, %v3607
    %v3609 = vadd.f32 %v3603, %v3607
    %3610 = vst.msk [vmem:[#allocation2] sm:$0xff] %vm46, %v3608
    %3611 = vst.msk [vmem:[#allocation2 + $0x8] sm:$0xff] %vm46, %v3609
    // Predicated region
    $region34: #{tpu_custom_call.1} parent=1 // pred_check
      _
    $region35: #{tpu_custom_call.1} parent=1 // pred_check_branch
      %3613 = sbr.rel (0) target = $region37
    $region36: #{tpu_custom_call.1} parent=1 // pred_region
      %s3615 = ssub.s32 256, 256
      %3616 = vsyncadd [#allocation3], %s3615
      %s3617 = sshll.u32 [#allocation2], 4
      %s3618 = int_to_ptr.vmem [resolvable:$true] %s3617
      %3623 = dma.vmem_to_hbm [thread:$0]  %s3618, 256, %s8, [#allocation3], 128, 128, 8
    $region37: #{tpu_custom_call.1} parent=1 // pred_fallthru
      _
    // Predicated region
    $region38: #{tpu_custom_call.1} parent=1 // pred_check
      _
    $region39: #{tpu_custom_call.1} parent=1 // pred_check_branch
      %3625 = sbr.rel (0) target = $region41
    $region40: #{tpu_custom_call.1} parent=1 // pred_region
      %3626 = dma.done [#allocation3], 256
    $region41: #{tpu_custom_call.1} parent=1 // pred_fallthru
      _
    %3627 = vsyncpa [#allocation3], 1

</llo_original>
